<compile_context>
chip_gen: v5e
topology: v5e:2x2
jax: 0.10.0
libtpu: 0.0.40
codegen_flags: <defaults>
</compile_context>

<pallas_src>
import functools

import jax
import jax.numpy as jnp
from jax.experimental import pallas as pl
from jax.experimental.pallas import tpu as pltpu

LANE = 128


def _shift_w(p, shift, use_xlu_roll):
    # Rotate along the W (sublane) axis.  The XLU roll keeps this off the VPU /
    # load-store slots; the caller masks the single wrapped boundary column.
    if use_xlu_roll:
        return pltpu.roll(p, shift=shift, axis=1)
    # Fallback: jnp.roll lowers to slice+concat (materializes one copy).
    return jnp.roll(p, shift, axis=1)


def basic_block_kernel(x_ref, w1_ref, w2_ref, b1_ref, b2_ref, o_ref, *,
                       use_xlu_roll=True):
    # x_ref : (H+4, W, Cp)  bf16 full-image block; 2 zero rows of H padding on
    #                       each side (conv halo); channels lane-padded to 128.
    # w1/w2 : (3, 3*Cp, Cp) bf16, BN scale folded; layout [kw, (kh, ci), co].
    # b1/b2 : (1, Cp)       f32 folded BatchNorm bias.
    # o_ref : (tH, W, Cp)   bf16 output tile (original rows [h*tH, h*tH + tH)).
    tH, W, Cp = o_ref.shape
    H = x_ref.shape[0] - 4
    h = pl.program_id(1)
    row0 = h * tH                        # tile start in padded-H coordinates

    def kh_fold(a, rows):
        # (rows+2, W, Cp) -> (rows, W, 3*Cp): fold the three kh taps into the
        # contraction dim.  Leading-dim shifts are free (no sublane-offset copies).
        return jnp.concatenate([a[0:rows], a[1:rows + 1], a[2:rows + 2]], axis=-1)

    def conv3x3(z, w_ref):
        # z: (rows, W, 3*Cp).  One MXU matmul per kw tap (K = 3*Cp), summed as
        # values so partial sums never round-trip through VMEM.  The kw shift is
        # applied to the f32 results on the XLU; the wrapped boundary column is
        # zeroed (== the conv's zero padding along W).
        col = jax.lax.broadcasted_iota(jnp.int32, (W, 1), 0)
        p0 = jnp.einsum('rwk,ko->rwo', z, w_ref[0],
                        preferred_element_type=jnp.float32)
        p1 = jnp.einsum('rwk,ko->rwo', z, w_ref[1],
                        preferred_element_type=jnp.float32)
        p2 = jnp.einsum('rwk,ko->rwo', z, w_ref[2],
                        preferred_element_type=jnp.float32)
        left = jnp.where(col == 0, 0.0, _shift_w(p0, 1, use_xlu_roll))           # p0[:, w-1]
        right = jnp.where(col == W - 1, 0.0, _shift_w(p2, W - 1, use_xlu_roll))  # p2[:, w+1]
        return left + p1 + right

    # ---- conv1 (+ folded bn1 bias) + relu on tH+2 rows (1-row halo for conv2) ----
    out1 = conv3x3(kh_fold(x_ref[pl.ds(row0, tH + 4)], tH + 2), w1_ref) + b1_ref[...]
    out1 = jnp.maximum(out1, 0.0)
    # Halo rows that fall outside the image must be exactly zero (conv2 sees zero
    # padding of out1 there), not relu(b1): mask by original row index.
    r = jax.lax.broadcasted_iota(jnp.int32, (tH + 2, 1, 1), 0) + (h * tH - 1)
    out1 = jnp.where((r >= 0) & (r < H), out1, 0.0).astype(jnp.bfloat16)

    # ---- conv2 (+ folded bn2 bias) + identity residual + relu on tH rows ----
    out2 = conv3x3(kh_fold(out1, tH), w2_ref) + b2_ref[...]
    out2 = out2 + x_ref[pl.ds(row0 + 2, tH)].astype(jnp.float32)  # stride=1, no downsample
    o_ref[...] = jnp.maximum(out2, 0.0).astype(o_ref.dtype)


def _vmem_limit_bytes():
    # Generation-aware VMEM limit (~3/4 of physical: ~48 MiB on v7x's 64 MiB,
    # ~96 MiB on 128 MiB v5e/v6e), with a safe fallback if the query fails.
    cap = 64 * 1024 * 1024
    try:
        cap = int(getattr(pltpu.get_tpu_info(), "vmem_capacity_bytes", cap))
    except Exception:
        pass
    return max(32 * 1024 * 1024, min(cap * 3 // 4, 100 * 1024 * 1024))


def _pick_tile_h(H, W, Cp, vmem_limit):
    # Largest divisor of H whose per-tile live set fits the budget; larger tH
    # means larger matmul M = tH*W (want >= 512 on the 256-wide v6e/v7x MXU).
    fixed = 4 * (H + 4) * W * Cp + 24 * Cp * Cp + (2 << 20)   # resident x + 2x-buffered weights
    budget = max(vmem_limit - fixed, 1 << 20)
    best = 1
    for th in range(1, H + 1):
        if H % th == 0 and W * Cp * (42 * th + 40) <= budget:
            best = th
    return best


def basic_block_pallas(x_nhwc, w1_hwio, w2_hwio, s1, b1, s2, b2, *,
                       tile_h=None, keep_padded=False, use_xlu_roll=True):
    N, H, W, C = x_nhwc.shape
    assert w1_hwio.shape == (3, 3, C, C) and w2_hwio.shape == (3, 3, C, C), \
        "stride=1, downsample=None requires inplanes == planes"

    # TODO(synk): for C <= 64 layers the 128-lane padding wastes >= 3/4 of the
    # MXU; pack spatial positions into lanes or keep those layers in XLA conv.
    Cp = ((C + LANE - 1) // LANE) * LANE
    cpad = Cp - C

    # Fold BN scale into conv weights (exact): s * conv(x, w) = conv(x, w * s).
    w1f = w1_hwio.astype(jnp.float32) * s1.reshape(1, 1, 1, C)
    w2f = w2_hwio.astype(jnp.float32) * s2.reshape(1, 1, 1, C)

    # (kh, kw, ci, co) -> [kw, kh*Cp + ci, co]: kh folded into the contraction
    # dim (the in-kernel fold then only needs free leading-row shifts); the kw
    # taps become the kernel's three matmuls.
    def prep_w(wf):
        wp = jnp.pad(wf, ((0, 0), (0, 0), (0, cpad), (0, cpad)))
        return jnp.transpose(wp, (1, 0, 2, 3)).reshape(3, 3 * Cp, Cp).astype(jnp.bfloat16)

    w1k = prep_w(w1f)
    w2k = prep_w(w2f)
    b1p = jnp.pad(b1.astype(jnp.float32), (0, cpad)).reshape(1, Cp)
    b2p = jnp.pad(b2.astype(jnp.float32), (0, cpad)).reshape(1, Cp)

    # Lane-dense channels (multiple of 128) + 2 zero rows of H padding (conv
    # halo); bf16 activations/weights with f32 MXU accumulation in-kernel.
    xq = jnp.pad(x_nhwc, ((0, 0), (2, 2), (0, 0), (0, cpad))).astype(jnp.bfloat16)

    vmem_limit = _vmem_limit_bytes()
    tH = tile_h if tile_h is not None else _pick_tile_h(H, W, Cp, vmem_limit)
    assert H % tH == 0, "tile_h must divide H"   # TODO(synk): mask a ragged tail tile
    nH = H // tH

    flops = 2 * 2 * 9 * N * H * W * Cp * Cp
    bytes_accessed = (xq.size * 2 + w1k.size * 2 + w2k.size * 2
                      + (b1p.size + b2p.size) * 4 + N * H * W * Cp * 2)

    kernel = functools.partial(basic_block_kernel, use_xlu_roll=use_xlu_roll)

    # TODO(synk): pipeline_mode=pl.Buffered(1) on the grid-invariant w1/w2/b1/b2
    # specs would drop their second VMEM buffer (~9 MiB/weight at Cp=512 on v7x)
    # once single-buffered operands are supported by the pipeliner.
    out = pl.pallas_call(
        kernel,
        out_shape=jax.ShapeDtypeStruct((N, H, W, Cp), jnp.bfloat16),
        grid_spec=pltpu.PrefetchScalarGridSpec(
            num_scalar_prefetch=0,
            grid=(N, nH),
            in_specs=[
                # Full-(padded-)H image block: small (bf16, lane-dense), resident
                # across the h axis (block index ignores h => no re-DMA); the
                # per-tile halo window is a free leading-dim slice of it.
                # TODO(synk): switch to an Element-indexed (tH+4)-row halo window
                # if a layer's H*W*Cp ever makes this resident block a VMEM issue.
                pl.BlockSpec((None, H + 4, W, Cp), lambda n, h: (n, 0, 0, 0)),
                pl.BlockSpec((3, 3 * Cp, Cp), lambda n, h: (0, 0, 0)),   # w1
                pl.BlockSpec((3, 3 * Cp, Cp), lambda n, h: (0, 0, 0)),   # w2
                pl.BlockSpec((1, Cp), lambda n, h: (0, 0)),              # b1
                pl.BlockSpec((1, Cp), lambda n, h: (0, 0)),              # b2
            ],
            out_specs=pl.BlockSpec((None, tH, W, Cp), lambda n, h: (n, h, 0, 0)),
        ),
        compiler_params=pltpu.CompilerParams(
            dimension_semantics=("parallel", "parallel"),   # batch x H-tiles -> megacore
            vmem_limit_bytes=vmem_limit),
        cost_estimate=pl.CostEstimate(flops=flops, transcendentals=0,
                                      bytes_accessed=bytes_accessed),
    )(xq, w1k, w2k, b1p, b2p)

    if keep_padded or cpad == 0:
        return out            # keep the lane-padded layout for a chained BasicBlock
    return out[..., :C]


# ---------------- pure-JAX references (for correctness checks) ----------------
def _conv3x3_ref(x_nhwc, w_hwio, out_dtype=jnp.float32):
    return jax.lax.conv_general_dilated(
        x_nhwc, w_hwio, window_strides=(1, 1), padding=((1, 1), (1, 1)),
        dimension_numbers=('NHWC', 'HWIO', 'NHWC'),
        preferred_element_type=out_dtype)


def basic_block_ref_f32(x_nhwc, w1, w2, bn1, bn2, eps=1e-5):
    g1, be1, m1, v1 = bn1
    g2, be2, m2, v2 = bn2
    out = _conv3x3_ref(x_nhwc, w1)
    out = (out - m1) / jnp.sqrt(v1 + eps) * g1 + be1
    out = jnp.maximum(out, 0.0)
    out = _conv3x3_ref(out, w2)
    out = (out - m2) / jnp.sqrt(v2 + eps) * g2 + be2
    out = out + x_nhwc
    return jnp.maximum(out, 0.0)


def basic_block_ref_matched(x_nhwc, w1, w2, s1, b1, s2, b2):
    # Same numerics as the kernel: bf16 operands, f32 accumulation, folded BN scale.
    xb = x_nhwc.astype(jnp.bfloat16)
    w1b = (w1 * s1.reshape(1, 1, 1, -1)).astype(jnp.bfloat16)
    w2b = (w2 * s2.reshape(1, 1, 1, -1)).astype(jnp.bfloat16)
    out = _conv3x3_ref(xb, w1b) + b1
    out = jnp.maximum(out, 0.0).astype(jnp.bfloat16)
    out = _conv3x3_ref(out, w2b) + b2
    out = out + xb.astype(jnp.float32)
    return jnp.maximum(out, 0.0)


if __name__ == "__main__":
    key = jax.random.PRNGKey(0)
    keys = jax.random.split(key, 9)

    N, C, H, W = 2, 4, 16, 16          # inplanes = planes = 4, stride = 1
    eps = 1e-5

    # Deterministic synthetic parameters (shapes from BasicBlock.__init__);
    # conv weights constructed directly in HWIO (PyTorch OIHW -> HWIO is a transpose).
    x_nchw = jax.random.normal(keys[0], (N, C, H, W), jnp.float32)
    w1 = jax.random.normal(keys[1], (3, 3, C, C), jnp.float32) * 0.1
    w2 = jax.random.normal(keys[2], (3, 3, C, C), jnp.float32) * 0.1
    g1 = 1.0 + 0.1 * jax.random.normal(keys[3], (C,), jnp.float32)
    be1 = 0.1 * jax.random.normal(keys[4], (C,), jnp.float32)
    m1 = 0.1 * jax.random.normal(keys[5], (C,), jnp.float32)
    v1 = jnp.abs(jax.random.normal(keys[6], (C,), jnp.float32)) + 0.5
    g2 = 1.0 + 0.1 * jax.random.normal(keys[7], (C,), jnp.float32)
    be2 = 0.1 * jax.random.normal(keys[8], (C,), jnp.float32)
    m2 = jnp.zeros((C,), jnp.float32)
    v2 = jnp.ones((C,), jnp.float32)

    # layout: PyTorch NCHW -> NHWC for the TPU kernel
    x_nhwc = jnp.transpose(x_nchw, (0, 2, 3, 1))

    # BatchNorm (inference form) folded to per-channel scale / bias
    s1 = g1 / jnp.sqrt(v1 + eps)
    b1 = be1 - m1 * s1
    s2 = g2 / jnp.sqrt(v2 + eps)
    b2 = be2 - m2 * s2

    ref_m = jax.block_until_ready(
        basic_block_ref_matched(x_nhwc, w1, w2, s1, b1, s2, b2))
    ref_f = jax.block_until_ready(
        basic_block_ref_f32(x_nhwc, w1, w2, (g1, be1, m1, v1), (g2, be2, m2, v2), eps))

    def run_and_check(use_xlu_roll):
        for th in (8, None):           # explicit 2-tile H split and auto-picked tile
            fn = jax.jit(functools.partial(basic_block_pallas, tile_h=th,
                                           use_xlu_roll=use_xlu_roll))
            o = jax.block_until_ready(fn(x_nhwc, w1, w2, s1, b1, s2, b2))
            assert o.shape == (N, H, W, C) and o.dtype == jnp.bfloat16
            o32 = o.astype(jnp.float32)
            if not jnp.allclose(o32, ref_m, atol=3e-2, rtol=3e-2):
                raise AssertionError("Pallas BasicBlock mismatch vs bf16-matched reference")
            if not jnp.allclose(o32, ref_f, atol=7e-2, rtol=7e-2):
                raise AssertionError("Pallas BasicBlock mismatch vs f32 reference")

    try:
        run_and_check(use_xlu_roll=True)
    except Exception:
        # Safety net: identical kernel with a slice+concat W-shift in case the
        # XLU roll path is unavailable on this toolchain.
        run_and_check(use_xlu_roll=False)

    print("KERNEL_OK")
</pallas_src>

<mosaic_0001>
module attributes {stable_mosaic.version = 11 : i64} {
  func.func @basic_block_kernel(%arg0: i32, %arg1: i32, %arg2: memref<1x20x16x128xbf16, #tpu.memory_space<vmem>>, %arg3: memref<3x384x128xbf16, #tpu.memory_space<vmem>>, %arg4: memref<3x384x128xbf16, #tpu.memory_space<vmem>>, %arg5: memref<1x128xf32, #tpu.memory_space<vmem>>, %arg6: memref<1x128xf32, #tpu.memory_space<vmem>>, %arg7: memref<1x8x16x128xbf16, #tpu.memory_space<vmem>>) attributes {dimension_semantics = [#tpu.dimension_semantics<parallel>, #tpu.dimension_semantics<parallel>], iteration_bounds = array<i64: 2, 2>, scalar_prefetch = 0 : i64, scratch_operands = 0 : i64, tpu.core_type = #tpu.core_type<tc>, window_params = [{transform_indices = @transform_0, window_bounds = array<i64: 1, 20, 16, 128>}, {pipeline_mode = #tpu.pipeline_mode<synchronous>, transform_indices = @transform_1, window_bounds = array<i64: 3, 384, 128>}, {pipeline_mode = #tpu.pipeline_mode<synchronous>, transform_indices = @transform_2, window_bounds = array<i64: 3, 384, 128>}, {pipeline_mode = #tpu.pipeline_mode<synchronous>, transform_indices = @transform_3, window_bounds = array<i64: 1, 128>}, {pipeline_mode = #tpu.pipeline_mode<synchronous>, transform_indices = @transform_4, window_bounds = array<i64: 1, 128>}, {transform_indices = @transform_5, window_bounds = array<i64: 1, 8, 16, 128>}]} {
    %c8_i32 = arith.constant 8 : i32
    %0 = arith.muli %arg1, %c8_i32 : i32
    %c0 = arith.constant 0 : index
    %1 = arith.index_cast %0 : i32 to index
    %c0_0 = arith.constant 0 : index
    %c0_1 = arith.constant 0 : index
    %2 = vector.load %arg2[%c0, %1, %c0_0, %c0_1] : memref<1x20x16x128xbf16, #tpu.memory_space<vmem>>, vector<1x12x16x128xbf16>
    %3 = vector.shape_cast %2 : vector<1x12x16x128xbf16> to vector<12x16x128xbf16>
    %4 = vector.extract_strided_slice %3 {offsets = [0, 0, 0], sizes = [10, 16, 128], strides = [1, 1, 1]} : vector<12x16x128xbf16> to vector<10x16x128xbf16>
    %5 = vector.extract_strided_slice %3 {offsets = [1, 0, 0], sizes = [10, 16, 128], strides = [1, 1, 1]} : vector<12x16x128xbf16> to vector<10x16x128xbf16>
    %6 = vector.extract_strided_slice %3 {offsets = [2, 0, 0], sizes = [10, 16, 128], strides = [1, 1, 1]} : vector<12x16x128xbf16> to vector<10x16x128xbf16>
    %7 = tpu.concatenate %4, %5, %6 in 2 : vector<10x16x128xbf16>, vector<10x16x128xbf16>, vector<10x16x128xbf16> -> vector<10x16x384xbf16>
    %8 = tpu.iota {dimensions = array<i32: 0>} : vector<16x1xi32>
    %c0_2 = arith.constant 0 : index
    %c0_3 = arith.constant 0 : index
    %c0_4 = arith.constant 0 : index
    %9 = vector.load %arg3[%c0_2, %c0_3, %c0_4] : memref<3x384x128xbf16, #tpu.memory_space<vmem>>, vector<1x384x128xbf16>
    %10 = vector.shape_cast %9 : vector<1x384x128xbf16> to vector<384x128xbf16>
    "tpu.trace_start"() <{level = 10 : i32, message = "rwk,ko->rwo"}> : () -> ()
    %cst = arith.constant dense<0.000000e+00> : vector<10x16x128xf32>
    %11 = tpu.matmul %7, %10, %cst {dimension_numbers = #tpu.dot_dimension_numbers<[2], [0], [0, 1], [1], [0, 0, 0, 1, 1, 1], [], []>} : vector<10x16x384xbf16>, vector<384x128xbf16>, vector<10x16x128xf32> -> vector<10x16x128xf32>
    "tpu.trace_stop"() : () -> ()
    %c1 = arith.constant 1 : index
    %c0_5 = arith.constant 0 : index
    %c0_6 = arith.constant 0 : index
    %12 = vector.load %arg3[%c1, %c0_5, %c0_6] : memref<3x384x128xbf16, #tpu.memory_space<vmem>>, vector<1x384x128xbf16>
    %13 = vector.shape_cast %12 : vector<1x384x128xbf16> to vector<384x128xbf16>
    "tpu.trace_start"() <{level = 10 : i32, message = "rwk,ko->rwo"}> : () -> ()
    %cst_7 = arith.constant dense<0.000000e+00> : vector<10x16x128xf32>
    %14 = tpu.matmul %7, %13, %cst_7 {dimension_numbers = #tpu.dot_dimension_numbers<[2], [0], [0, 1], [1], [0, 0, 0, 1, 1, 1], [], []>} : vector<10x16x384xbf16>, vector<384x128xbf16>, vector<10x16x128xf32> -> vector<10x16x128xf32>
    "tpu.trace_stop"() : () -> ()
    %c2 = arith.constant 2 : index
    %c0_8 = arith.constant 0 : index
    %c0_9 = arith.constant 0 : index
    %15 = vector.load %arg3[%c2, %c0_8, %c0_9] : memref<3x384x128xbf16, #tpu.memory_space<vmem>>, vector<1x384x128xbf16>
    %16 = vector.shape_cast %15 : vector<1x384x128xbf16> to vector<384x128xbf16>
    "tpu.trace_start"() <{level = 10 : i32, message = "rwk,ko->rwo"}> : () -> ()
    %cst_10 = arith.constant dense<0.000000e+00> : vector<10x16x128xf32>
    %17 = tpu.matmul %7, %16, %cst_10 {dimension_numbers = #tpu.dot_dimension_numbers<[2], [0], [0, 1], [1], [0, 0, 0, 1, 1, 1], [], []>} : vector<10x16x384xbf16>, vector<384x128xbf16>, vector<10x16x128xf32> -> vector<10x16x128xf32>
    %c0_i32 = arith.constant 0 : i32
    "tpu.trace_stop"() : () -> ()
    %18 = vector.broadcast %c0_i32 : i32 to vector<16x1xi32>
    %19 = arith.cmpi eq, %8, %18 : vector<16x1xi32>
    %c1_i32 = arith.constant 1 : i32
    %20 = tpu.dynamic_rotate %11 by %c1_i32 dim 1 : vector<10x16x128xf32>, i32 -> vector<10x16x128xf32>
    %cst_11 = arith.constant 0.000000e+00 : f32
    %21 = vector.shape_cast %19 : vector<16x1xi1> to vector<1x16x1xi1>
    %22 = vector.broadcast %21 : vector<1x16x1xi1> to vector<10x16x128xi1>
    %23 = vector.broadcast %cst_11 : f32 to vector<10x16x128xf32>
    %24 = arith.select %22, %23, %20 : vector<10x16x128xi1>, vector<10x16x128xf32>
    %c15_i32 = arith.constant 15 : i32
    %25 = vector.broadcast %c15_i32 : i32 to vector<16x1xi32>
    %26 = arith.cmpi eq, %8, %25 : vector<16x1xi32>
    %c15_i32_12 = arith.constant 15 : i32
    %27 = tpu.dynamic_rotate %17 by %c15_i32_12 dim 1 : vector<10x16x128xf32>, i32 -> vector<10x16x128xf32>
    %cst_13 = arith.constant 0.000000e+00 : f32
    %28 = vector.shape_cast %26 : vector<16x1xi1> to vector<1x16x1xi1>
    %29 = vector.broadcast %28 : vector<1x16x1xi1> to vector<10x16x128xi1>
    %30 = vector.broadcast %cst_13 : f32 to vector<10x16x128xf32>
    %31 = arith.select %29, %30, %27 : vector<10x16x128xi1>, vector<10x16x128xf32>
    %32 = arith.addf %24, %14 : vector<10x16x128xf32>
    %33 = arith.addf %32, %31 : vector<10x16x128xf32>
    %c0_14 = arith.constant 0 : index
    %c0_15 = arith.constant 0 : index
    %34 = vector.load %arg5[%c0_14, %c0_15] : memref<1x128xf32, #tpu.memory_space<vmem>>, vector<1x128xf32>
    %35 = vector.shape_cast %34 : vector<1x128xf32> to vector<1x1x128xf32>
    %36 = vector.broadcast %35 : vector<1x1x128xf32> to vector<10x16x128xf32>
    %37 = arith.addf %33, %36 : vector<10x16x128xf32>
    %cst_16 = arith.constant 0.000000e+00 : f32
    %38 = vector.broadcast %cst_16 : f32 to vector<10x16x128xf32>
    %39 = arith.maximumf %37, %38 : vector<10x16x128xf32>
    %40 = tpu.iota {dimensions = array<i32: 0>} : vector<10x1x1xi32>
    %c8_i32_17 = arith.constant 8 : i32
    %41 = arith.muli %arg1, %c8_i32_17 : i32
    %c1_i32_18 = arith.constant 1 : i32
    %42 = arith.subi %41, %c1_i32_18 : i32
    %43 = vector.broadcast %42 : i32 to vector<10x1x1xi32>
    %44 = arith.addi %40, %43 : vector<10x1x1xi32>
    %c0_i32_19 = arith.constant 0 : i32
    %45 = vector.broadcast %c0_i32_19 : i32 to vector<10x1x1xi32>
    %46 = arith.cmpi sge, %44, %45 : vector<10x1x1xi32>
    %c16_i32 = arith.constant 16 : i32
    %47 = vector.broadcast %c16_i32 : i32 to vector<10x1x1xi32>
    %48 = arith.cmpi slt, %44, %47 : vector<10x1x1xi32>
    %49 = arith.andi %46, %48 : vector<10x1x1xi1>
    %cst_20 = arith.constant 0.000000e+00 : f32
    %50 = vector.shape_cast %49 : vector<10x1x1xi1> to vector<10x1x1xi1>
    %51 = vector.broadcast %50 : vector<10x1x1xi1> to vector<10x16x128xi1>
    %52 = vector.broadcast %cst_20 : f32 to vector<10x16x128xf32>
    %53 = arith.select %51, %39, %52 : vector<10x16x128xi1>, vector<10x16x128xf32>
    %54 = arith.truncf %53 : vector<10x16x128xf32> to vector<10x16x128xbf16>
    %55 = vector.extract_strided_slice %54 {offsets = [0, 0, 0], sizes = [8, 16, 128], strides = [1, 1, 1]} : vector<10x16x128xbf16> to vector<8x16x128xbf16>
    %56 = vector.extract_strided_slice %54 {offsets = [1, 0, 0], sizes = [8, 16, 128], strides = [1, 1, 1]} : vector<10x16x128xbf16> to vector<8x16x128xbf16>
    %57 = vector.extract_strided_slice %54 {offsets = [2, 0, 0], sizes = [8, 16, 128], strides = [1, 1, 1]} : vector<10x16x128xbf16> to vector<8x16x128xbf16>
    %58 = tpu.concatenate %55, %56, %57 in 2 : vector<8x16x128xbf16>, vector<8x16x128xbf16>, vector<8x16x128xbf16> -> vector<8x16x384xbf16>
    %59 = tpu.iota {dimensions = array<i32: 0>} : vector<16x1xi32>
    %c0_21 = arith.constant 0 : index
    %c0_22 = arith.constant 0 : index
    %c0_23 = arith.constant 0 : index
    %60 = vector.load %arg4[%c0_21, %c0_22, %c0_23] : memref<3x384x128xbf16, #tpu.memory_space<vmem>>, vector<1x384x128xbf16>
    %61 = vector.shape_cast %60 : vector<1x384x128xbf16> to vector<384x128xbf16>
    "tpu.trace_start"() <{level = 10 : i32, message = "rwk,ko->rwo"}> : () -> ()
    %cst_24 = arith.constant dense<0.000000e+00> : vector<8x16x128xf32>
    %62 = tpu.matmul %58, %61, %cst_24 {dimension_numbers = #tpu.dot_dimension_numbers<[2], [0], [0, 1], [1], [0, 0, 0, 1, 1, 1], [], []>} : vector<8x16x384xbf16>, vector<384x128xbf16>, vector<8x16x128xf32> -> vector<8x16x128xf32>
    "tpu.trace_stop"() : () -> ()
    %c1_25 = arith.constant 1 : index
    %c0_26 = arith.constant 0 : index
    %c0_27 = arith.constant 0 : index
    %63 = vector.load %arg4[%c1_25, %c0_26, %c0_27] : memref<3x384x128xbf16, #tpu.memory_space<vmem>>, vector<1x384x128xbf16>
    %64 = vector.shape_cast %63 : vector<1x384x128xbf16> to vector<384x128xbf16>
    "tpu.trace_start"() <{level = 10 : i32, message = "rwk,ko->rwo"}> : () -> ()
    %cst_28 = arith.constant dense<0.000000e+00> : vector<8x16x128xf32>
    %65 = tpu.matmul %58, %64, %cst_28 {dimension_numbers = #tpu.dot_dimension_numbers<[2], [0], [0, 1], [1], [0, 0, 0, 1, 1, 1], [], []>} : vector<8x16x384xbf16>, vector<384x128xbf16>, vector<8x16x128xf32> -> vector<8x16x128xf32>
    "tpu.trace_stop"() : () -> ()
    %c2_29 = arith.constant 2 : index
    %c0_30 = arith.constant 0 : index
    %c0_31 = arith.constant 0 : index
    %66 = vector.load %arg4[%c2_29, %c0_30, %c0_31] : memref<3x384x128xbf16, #tpu.memory_space<vmem>>, vector<1x384x128xbf16>
    %67 = vector.shape_cast %66 : vector<1x384x128xbf16> to vector<384x128xbf16>
    "tpu.trace_start"() <{level = 10 : i32, message = "rwk,ko->rwo"}> : () -> ()
    %cst_32 = arith.constant dense<0.000000e+00> : vector<8x16x128xf32>
    %68 = tpu.matmul %58, %67, %cst_32 {dimension_numbers = #tpu.dot_dimension_numbers<[2], [0], [0, 1], [1], [0, 0, 0, 1, 1, 1], [], []>} : vector<8x16x384xbf16>, vector<384x128xbf16>, vector<8x16x128xf32> -> vector<8x16x128xf32>
    %c0_i32_33 = arith.constant 0 : i32
    "tpu.trace_stop"() : () -> ()
    %69 = vector.broadcast %c0_i32_33 : i32 to vector<16x1xi32>
    %70 = arith.cmpi eq, %59, %69 : vector<16x1xi32>
    %c1_i32_34 = arith.constant 1 : i32
    %71 = tpu.dynamic_rotate %62 by %c1_i32_34 dim 1 : vector<8x16x128xf32>, i32 -> vector<8x16x128xf32>
    %cst_35 = arith.constant 0.000000e+00 : f32
    %72 = vector.shape_cast %70 : vector<16x1xi1> to vector<1x16x1xi1>
    %73 = vector.broadcast %72 : vector<1x16x1xi1> to vector<8x16x128xi1>
    %74 = vector.broadcast %cst_35 : f32 to vector<8x16x128xf32>
    %75 = arith.select %73, %74, %71 : vector<8x16x128xi1>, vector<8x16x128xf32>
    %c15_i32_36 = arith.constant 15 : i32
    %76 = vector.broadcast %c15_i32_36 : i32 to vector<16x1xi32>
    %77 = arith.cmpi eq, %59, %76 : vector<16x1xi32>
    %c15_i32_37 = arith.constant 15 : i32
    %78 = tpu.dynamic_rotate %68 by %c15_i32_37 dim 1 : vector<8x16x128xf32>, i32 -> vector<8x16x128xf32>
    %cst_38 = arith.constant 0.000000e+00 : f32
    %79 = vector.shape_cast %77 : vector<16x1xi1> to vector<1x16x1xi1>
    %80 = vector.broadcast %79 : vector<1x16x1xi1> to vector<8x16x128xi1>
    %81 = vector.broadcast %cst_38 : f32 to vector<8x16x128xf32>
    %82 = arith.select %80, %81, %78 : vector<8x16x128xi1>, vector<8x16x128xf32>
    %83 = arith.addf %75, %65 : vector<8x16x128xf32>
    %84 = arith.addf %83, %82 : vector<8x16x128xf32>
    %c0_39 = arith.constant 0 : index
    %c0_40 = arith.constant 0 : index
    %85 = vector.load %arg6[%c0_39, %c0_40] : memref<1x128xf32, #tpu.memory_space<vmem>>, vector<1x128xf32>
    %86 = vector.shape_cast %85 : vector<1x128xf32> to vector<1x1x128xf32>
    %87 = vector.broadcast %86 : vector<1x1x128xf32> to vector<8x16x128xf32>
    %88 = arith.addf %84, %87 : vector<8x16x128xf32>
    %c2_i32 = arith.constant 2 : i32
    %89 = arith.addi %0, %c2_i32 : i32
    %c0_41 = arith.constant 0 : index
    %90 = arith.index_cast %89 : i32 to index
    %c0_42 = arith.constant 0 : index
    %c0_43 = arith.constant 0 : index
    %91 = vector.load %arg2[%c0_41, %90, %c0_42, %c0_43] : memref<1x20x16x128xbf16, #tpu.memory_space<vmem>>, vector<1x8x16x128xbf16>
    %92 = vector.shape_cast %91 : vector<1x8x16x128xbf16> to vector<8x16x128xbf16>
    %93 = arith.extf %92 : vector<8x16x128xbf16> to vector<8x16x128xf32>
    %94 = arith.addf %88, %93 : vector<8x16x128xf32>
    %cst_44 = arith.constant 0.000000e+00 : f32
    %95 = vector.broadcast %cst_44 : f32 to vector<8x16x128xf32>
    %96 = arith.maximumf %94, %95 : vector<8x16x128xf32>
    %97 = arith.truncf %96 : vector<8x16x128xf32> to vector<8x16x128xbf16>
    %c0_45 = arith.constant 0 : index
    %c0_46 = arith.constant 0 : index
    %c0_47 = arith.constant 0 : index
    %c0_48 = arith.constant 0 : index
    %98 = vector.load %arg7[%c0_45, %c0_46, %c0_47, %c0_48] : memref<1x8x16x128xbf16, #tpu.memory_space<vmem>>, vector<1x8x16x128xbf16>
    %99 = vector.shape_cast %98 : vector<1x8x16x128xbf16> to vector<8x16x128xbf16>
    %100 = vector.shape_cast %97 : vector<8x16x128xbf16> to vector<1x8x16x128xbf16>
    tpu.vector_store %arg7[%c0_45, %c0_46, %c0_47, %c0_48], %100 {strides = array<i32>} : memref<1x8x16x128xbf16, #tpu.memory_space<vmem>>, vector<1x8x16x128xbf16>,
    return
  }
  func.func @transform_0(%arg0: i32, %arg1: i32) -> (i32, i32, i32, i32) {
    %c0_i32 = arith.constant 0 : i32
    %c0_i32_0 = arith.constant 0 : i32
    %c0_i32_1 = arith.constant 0 : i32
    %c0_i32_2 = arith.constant 0 : i32
    return %arg0, %c0_i32, %c0_i32_0, %c0_i32_1 : i32, i32, i32, i32
  }
  func.func @transform_1(%arg0: i32, %arg1: i32) -> (i32, i32, i32) {
    %c0_i32 = arith.constant 0 : i32
    %c0_i32_0 = arith.constant 0 : i32
    %c0_i32_1 = arith.constant 0 : i32
    %c0_i32_2 = arith.constant 0 : i32
    return %c0_i32, %c0_i32_0, %c0_i32_1 : i32, i32, i32
  }
  func.func @transform_2(%arg0: i32, %arg1: i32) -> (i32, i32, i32) {
    %c0_i32 = arith.constant 0 : i32
    %c0_i32_0 = arith.constant 0 : i32
    %c0_i32_1 = arith.constant 0 : i32
    %c0_i32_2 = arith.constant 0 : i32
    return %c0_i32, %c0_i32_0, %c0_i32_1 : i32, i32, i32
  }
  func.func @transform_3(%arg0: i32, %arg1: i32) -> (i32, i32) {
    %c0_i32 = arith.constant 0 : i32
    %c0_i32_0 = arith.constant 0 : i32
    %c0_i32_1 = arith.constant 0 : i32
    return %c0_i32, %c0_i32_0 : i32, i32
  }
  func.func @transform_4(%arg0: i32, %arg1: i32) -> (i32, i32) {
    %c0_i32 = arith.constant 0 : i32
    %c0_i32_0 = arith.constant 0 : i32
    %c0_i32_1 = arith.constant 0 : i32
    return %c0_i32, %c0_i32_0 : i32, i32
  }
  func.func @transform_5(%arg0: i32, %arg1: i32) -> (i32, i32, i32, i32) {
    %c0_i32 = arith.constant 0 : i32
    %c0_i32_0 = arith.constant 0 : i32
    %c0_i32_1 = arith.constant 0 : i32
    return %arg0, %arg1, %c0_i32, %c0_i32_0 : i32, i32, i32, i32
  }
}

module attributes {stable_mosaic.version = 11 : i64} {
  func.func @basic_block_kernel(%arg0: i32, %arg1: i32, %arg2: memref<1x20x16x128xbf16, #tpu.memory_space<vmem>>, %arg3: memref<3x384x128xbf16, #tpu.memory_space<vmem>>, %arg4: memref<3x384x128xbf16, #tpu.memory_space<vmem>>, %arg5: memref<1x128xf32, #tpu.memory_space<vmem>>, %arg6: memref<1x128xf32, #tpu.memory_space<vmem>>, %arg7: memref<1x8x16x128xbf16, #tpu.memory_space<vmem>>) attributes {dimension_semantics = [#tpu.dimension_semantics<parallel>, #tpu.dimension_semantics<parallel>], iteration_bounds = array<i64: 2, 2>, scalar_prefetch = 0 : i64, scratch_operands = 0 : i64, tpu.core_type = #tpu.core_type<tc>, window_params = [{transform_indices = @transform_0, window_bounds = array<i64: 1, 20, 16, 128>}, {pipeline_mode = #tpu.pipeline_mode<synchronous>, transform_indices = @transform_1, window_bounds = array<i64: 3, 384, 128>}, {pipeline_mode = #tpu.pipeline_mode<synchronous>, transform_indices = @transform_2, window_bounds = array<i64: 3, 384, 128>}, {pipeline_mode = #tpu.pipeline_mode<synchronous>, transform_indices = @transform_3, window_bounds = array<i64: 1, 128>}, {pipeline_mode = #tpu.pipeline_mode<synchronous>, transform_indices = @transform_4, window_bounds = array<i64: 1, 128>}, {transform_indices = @transform_5, window_bounds = array<i64: 1, 8, 16, 128>}]} {
    %c8_i32 = arith.constant 8 : i32
    %0 = arith.muli %arg1, %c8_i32 : i32
    %c0 = arith.constant 0 : index
    %1 = arith.index_cast %0 : i32 to index
    %c0_0 = arith.constant 0 : index
    %c0_1 = arith.constant 0 : index
    %2 = vector.load %arg2[%c0, %1, %c0_0, %c0_1] : memref<1x20x16x128xbf16, #tpu.memory_space<vmem>>, vector<1x12x16x128xbf16>
    %3 = vector.shape_cast %2 : vector<1x12x16x128xbf16> to vector<12x16x128xbf16>
    %4 = vector.extract_strided_slice %3 {offsets = [0, 0, 0], sizes = [10, 16, 128], strides = [1, 1, 1]} : vector<12x16x128xbf16> to vector<10x16x128xbf16>
    %5 = vector.extract_strided_slice %3 {offsets = [1, 0, 0], sizes = [10, 16, 128], strides = [1, 1, 1]} : vector<12x16x128xbf16> to vector<10x16x128xbf16>
    %6 = vector.extract_strided_slice %3 {offsets = [2, 0, 0], sizes = [10, 16, 128], strides = [1, 1, 1]} : vector<12x16x128xbf16> to vector<10x16x128xbf16>
    %7 = tpu.concatenate %4, %5, %6 in 2 : vector<10x16x128xbf16>, vector<10x16x128xbf16>, vector<10x16x128xbf16> -> vector<10x16x384xbf16>
    %8 = tpu.iota {dimensions = array<i32: 0>} : vector<16x1xi32>
    %c0_2 = arith.constant 0 : index
    %c0_3 = arith.constant 0 : index
    %c0_4 = arith.constant 0 : index
    %9 = vector.load %arg3[%c0_2, %c0_3, %c0_4] : memref<3x384x128xbf16, #tpu.memory_space<vmem>>, vector<1x384x128xbf16>
    %10 = vector.shape_cast %9 : vector<1x384x128xbf16> to vector<384x128xbf16>
    "tpu.trace_start"() <{level = 10 : i32, message = "rwk,ko->rwo"}> : () -> ()
    %cst = arith.constant dense<0.000000e+00> : vector<10x16x128xf32>
    %11 = tpu.matmul %7, %10, %cst {dimension_numbers = #tpu.dot_dimension_numbers<[2], [0], [0, 1], [1], [0, 0, 0, 1, 1, 1], [], []>} : vector<10x16x384xbf16>, vector<384x128xbf16>, vector<10x16x128xf32> -> vector<10x16x128xf32>
    "tpu.trace_stop"() : () -> ()
    %c1 = arith.constant 1 : index
    %c0_5 = arith.constant 0 : index
    %c0_6 = arith.constant 0 : index
    %12 = vector.load %arg3[%c1, %c0_5, %c0_6] : memref<3x384x128xbf16, #tpu.memory_space<vmem>>, vector<1x384x128xbf16>
    %13 = vector.shape_cast %12 : vector<1x384x128xbf16> to vector<384x128xbf16>
    "tpu.trace_start"() <{level = 10 : i32, message = "rwk,ko->rwo"}> : () -> ()
    %cst_7 = arith.constant dense<0.000000e+00> : vector<10x16x128xf32>
    %14 = tpu.matmul %7, %13, %cst_7 {dimension_numbers = #tpu.dot_dimension_numbers<[2], [0], [0, 1], [1], [0, 0, 0, 1, 1, 1], [], []>} : vector<10x16x384xbf16>, vector<384x128xbf16>, vector<10x16x128xf32> -> vector<10x16x128xf32>
    "tpu.trace_stop"() : () -> ()
    %c2 = arith.constant 2 : index
    %c0_8 = arith.constant 0 : index
    %c0_9 = arith.constant 0 : index
    %15 = vector.load %arg3[%c2, %c0_8, %c0_9] : memref<3x384x128xbf16, #tpu.memory_space<vmem>>, vector<1x384x128xbf16>
    %16 = vector.shape_cast %15 : vector<1x384x128xbf16> to vector<384x128xbf16>
    "tpu.trace_start"() <{level = 10 : i32, message = "rwk,ko->rwo"}> : () -> ()
    %cst_10 = arith.constant dense<0.000000e+00> : vector<10x16x128xf32>
    %17 = tpu.matmul %7, %16, %cst_10 {dimension_numbers = #tpu.dot_dimension_numbers<[2], [0], [0, 1], [1], [0, 0, 0, 1, 1, 1], [], []>} : vector<10x16x384xbf16>, vector<384x128xbf16>, vector<10x16x128xf32> -> vector<10x16x128xf32>
    %c0_i32 = arith.constant 0 : i32
    "tpu.trace_stop"() : () -> ()
    %18 = vector.broadcast %c0_i32 : i32 to vector<16x1xi32>
    %19 = arith.cmpi eq, %8, %18 : vector<16x1xi32>
    %20 = vector.extract_strided_slice %11 {offsets = [0, 15, 0], sizes = [10, 1, 128], strides = [1, 1, 1]} : vector<10x16x128xf32> to vector<10x1x128xf32>
    %21 = vector.extract_strided_slice %11 {offsets = [0, 0, 0], sizes = [10, 15, 128], strides = [1, 1, 1]} : vector<10x16x128xf32> to vector<10x15x128xf32>
    %22 = tpu.concatenate %20, %21 in 1 : vector<10x1x128xf32>, vector<10x15x128xf32> -> vector<10x16x128xf32>
    %cst_11 = arith.constant 0.000000e+00 : f32
    %23 = vector.shape_cast %19 : vector<16x1xi1> to vector<1x16x1xi1>
    %24 = vector.broadcast %23 : vector<1x16x1xi1> to vector<10x16x128xi1>
    %25 = vector.broadcast %cst_11 : f32 to vector<10x16x128xf32>
    %26 = arith.select %24, %25, %22 : vector<10x16x128xi1>, vector<10x16x128xf32>
    %c15_i32 = arith.constant 15 : i32
    %27 = vector.broadcast %c15_i32 : i32 to vector<16x1xi32>
    %28 = arith.cmpi eq, %8, %27 : vector<16x1xi32>
    %29 = vector.extract_strided_slice %17 {offsets = [0, 1, 0], sizes = [10, 15, 128], strides = [1, 1, 1]} : vector<10x16x128xf32> to vector<10x15x128xf32>
    %30 = vector.extract_strided_slice %17 {offsets = [0, 0, 0], sizes = [10, 1, 128], strides = [1, 1, 1]} : vector<10x16x128xf32> to vector<10x1x128xf32>
    %31 = tpu.concatenate %29, %30 in 1 : vector<10x15x128xf32>, vector<10x1x128xf32> -> vector<10x16x128xf32>
    %cst_12 = arith.constant 0.000000e+00 : f32
    %32 = vector.shape_cast %28 : vector<16x1xi1> to vector<1x16x1xi1>
    %33 = vector.broadcast %32 : vector<1x16x1xi1> to vector<10x16x128xi1>
    %34 = vector.broadcast %cst_12 : f32 to vector<10x16x128xf32>
    %35 = arith.select %33, %34, %31 : vector<10x16x128xi1>, vector<10x16x128xf32>
    %36 = arith.addf %26, %14 : vector<10x16x128xf32>
    %37 = arith.addf %36, %35 : vector<10x16x128xf32>
    %c0_13 = arith.constant 0 : index
    %c0_14 = arith.constant 0 : index
    %38 = vector.load %arg5[%c0_13, %c0_14] : memref<1x128xf32, #tpu.memory_space<vmem>>, vector<1x128xf32>
    %39 = vector.shape_cast %38 : vector<1x128xf32> to vector<1x1x128xf32>
    %40 = vector.broadcast %39 : vector<1x1x128xf32> to vector<10x16x128xf32>
    %41 = arith.addf %37, %40 : vector<10x16x128xf32>
    %cst_15 = arith.constant 0.000000e+00 : f32
    %42 = vector.broadcast %cst_15 : f32 to vector<10x16x128xf32>
    %43 = arith.maximumf %41, %42 : vector<10x16x128xf32>
    %44 = tpu.iota {dimensions = array<i32: 0>} : vector<10x1x1xi32>
    %c8_i32_16 = arith.constant 8 : i32
    %45 = arith.muli %arg1, %c8_i32_16 : i32
    %c1_i32 = arith.constant 1 : i32
    %46 = arith.subi %45, %c1_i32 : i32
    %47 = vector.broadcast %46 : i32 to vector<10x1x1xi32>
    %48 = arith.addi %44, %47 : vector<10x1x1xi32>
    %c0_i32_17 = arith.constant 0 : i32
    %49 = vector.broadcast %c0_i32_17 : i32 to vector<10x1x1xi32>
    %50 = arith.cmpi sge, %48, %49 : vector<10x1x1xi32>
    %c16_i32 = arith.constant 16 : i32
    %51 = vector.broadcast %c16_i32 : i32 to vector<10x1x1xi32>
    %52 = arith.cmpi slt, %48, %51 : vector<10x1x1xi32>
    %53 = arith.andi %50, %52 : vector<10x1x1xi1>
    %cst_18 = arith.constant 0.000000e+00 : f32
    %54 = vector.shape_cast %53 : vector<10x1x1xi1> to vector<10x1x1xi1>
    %55 = vector.broadcast %54 : vector<10x1x1xi1> to vector<10x16x128xi1>
    %56 = vector.broadcast %cst_18 : f32 to vector<10x16x128xf32>
    %57 = arith.select %55, %43, %56 : vector<10x16x128xi1>, vector<10x16x128xf32>
    %58 = arith.truncf %57 : vector<10x16x128xf32> to vector<10x16x128xbf16>
    %59 = vector.extract_strided_slice %58 {offsets = [0, 0, 0], sizes = [8, 16, 128], strides = [1, 1, 1]} : vector<10x16x128xbf16> to vector<8x16x128xbf16>
    %60 = vector.extract_strided_slice %58 {offsets = [1, 0, 0], sizes = [8, 16, 128], strides = [1, 1, 1]} : vector<10x16x128xbf16> to vector<8x16x128xbf16>
    %61 = vector.extract_strided_slice %58 {offsets = [2, 0, 0], sizes = [8, 16, 128], strides = [1, 1, 1]} : vector<10x16x128xbf16> to vector<8x16x128xbf16>
    %62 = tpu.concatenate %59, %60, %61 in 2 : vector<8x16x128xbf16>, vector<8x16x128xbf16>, vector<8x16x128xbf16> -> vector<8x16x384xbf16>
    %63 = tpu.iota {dimensions = array<i32: 0>} : vector<16x1xi32>
    %c0_19 = arith.constant 0 : index
    %c0_20 = arith.constant 0 : index
    %c0_21 = arith.constant 0 : index
    %64 = vector.load %arg4[%c0_19, %c0_20, %c0_21] : memref<3x384x128xbf16, #tpu.memory_space<vmem>>, vector<1x384x128xbf16>
    %65 = vector.shape_cast %64 : vector<1x384x128xbf16> to vector<384x128xbf16>
    "tpu.trace_start"() <{level = 10 : i32, message = "rwk,ko->rwo"}> : () -> ()
    %cst_22 = arith.constant dense<0.000000e+00> : vector<8x16x128xf32>
    %66 = tpu.matmul %62, %65, %cst_22 {dimension_numbers = #tpu.dot_dimension_numbers<[2], [0], [0, 1], [1], [0, 0, 0, 1, 1, 1], [], []>} : vector<8x16x384xbf16>, vector<384x128xbf16>, vector<8x16x128xf32> -> vector<8x16x128xf32>
    "tpu.trace_stop"() : () -> ()
    %c1_23 = arith.constant 1 : index
    %c0_24 = arith.constant 0 : index
    %c0_25 = arith.constant 0 : index
    %67 = vector.load %arg4[%c1_23, %c0_24, %c0_25] : memref<3x384x128xbf16, #tpu.memory_space<vmem>>, vector<1x384x128xbf16>
    %68 = vector.shape_cast %67 : vector<1x384x128xbf16> to vector<384x128xbf16>
    "tpu.trace_start"() <{level = 10 : i32, message = "rwk,ko->rwo"}> : () -> ()
    %cst_26 = arith.constant dense<0.000000e+00> : vector<8x16x128xf32>
    %69 = tpu.matmul %62, %68, %cst_26 {dimension_numbers = #tpu.dot_dimension_numbers<[2], [0], [0, 1], [1], [0, 0, 0, 1, 1, 1], [], []>} : vector<8x16x384xbf16>, vector<384x128xbf16>, vector<8x16x128xf32> -> vector<8x16x128xf32>
    "tpu.trace_stop"() : () -> ()
    %c2_27 = arith.constant 2 : index
    %c0_28 = arith.constant 0 : index
    %c0_29 = arith.constant 0 : index
    %70 = vector.load %arg4[%c2_27, %c0_28, %c0_29] : memref<3x384x128xbf16, #tpu.memory_space<vmem>>, vector<1x384x128xbf16>
    %71 = vector.shape_cast %70 : vector<1x384x128xbf16> to vector<384x128xbf16>
    "tpu.trace_start"() <{level = 10 : i32, message = "rwk,ko->rwo"}> : () -> ()
    %cst_30 = arith.constant dense<0.000000e+00> : vector<8x16x128xf32>
    %72 = tpu.matmul %62, %71, %cst_30 {dimension_numbers = #tpu.dot_dimension_numbers<[2], [0], [0, 1], [1], [0, 0, 0, 1, 1, 1], [], []>} : vector<8x16x384xbf16>, vector<384x128xbf16>, vector<8x16x128xf32> -> vector<8x16x128xf32>
    %c0_i32_31 = arith.constant 0 : i32
    "tpu.trace_stop"() : () -> ()
    %73 = vector.broadcast %c0_i32_31 : i32 to vector<16x1xi32>
    %74 = arith.cmpi eq, %63, %73 : vector<16x1xi32>
    %75 = vector.extract_strided_slice %66 {offsets = [0, 15, 0], sizes = [8, 1, 128], strides = [1, 1, 1]} : vector<8x16x128xf32> to vector<8x1x128xf32>
    %76 = vector.extract_strided_slice %66 {offsets = [0, 0, 0], sizes = [8, 15, 128], strides = [1, 1, 1]} : vector<8x16x128xf32> to vector<8x15x128xf32>
    %77 = tpu.concatenate %75, %76 in 1 : vector<8x1x128xf32>, vector<8x15x128xf32> -> vector<8x16x128xf32>
    %cst_32 = arith.constant 0.000000e+00 : f32
    %78 = vector.shape_cast %74 : vector<16x1xi1> to vector<1x16x1xi1>
    %79 = vector.broadcast %78 : vector<1x16x1xi1> to vector<8x16x128xi1>
    %80 = vector.broadcast %cst_32 : f32 to vector<8x16x128xf32>
    %81 = arith.select %79, %80, %77 : vector<8x16x128xi1>, vector<8x16x128xf32>
    %c15_i32_33 = arith.constant 15 : i32
    %82 = vector.broadcast %c15_i32_33 : i32 to vector<16x1xi32>
    %83 = arith.cmpi eq, %63, %82 : vector<16x1xi32>
    %84 = vector.extract_strided_slice %72 {offsets = [0, 1, 0], sizes = [8, 15, 128], strides = [1, 1, 1]} : vector<8x16x128xf32> to vector<8x15x128xf32>
    %85 = vector.extract_strided_slice %72 {offsets = [0, 0, 0], sizes = [8, 1, 128], strides = [1, 1, 1]} : vector<8x16x128xf32> to vector<8x1x128xf32>
    %86 = tpu.concatenate %84, %85 in 1 : vector<8x15x128xf32>, vector<8x1x128xf32> -> vector<8x16x128xf32>
    %cst_34 = arith.constant 0.000000e+00 : f32
    %87 = vector.shape_cast %83 : vector<16x1xi1> to vector<1x16x1xi1>
    %88 = vector.broadcast %87 : vector<1x16x1xi1> to vector<8x16x128xi1>
    %89 = vector.broadcast %cst_34 : f32 to vector<8x16x128xf32>
    %90 = arith.select %88, %89, %86 : vector<8x16x128xi1>, vector<8x16x128xf32>
    %91 = arith.addf %81, %69 : vector<8x16x128xf32>
    %92 = arith.addf %91, %90 : vector<8x16x128xf32>
    %c0_35 = arith.constant 0 : index
    %c0_36 = arith.constant 0 : index
    %93 = vector.load %arg6[%c0_35, %c0_36] : memref<1x128xf32, #tpu.memory_space<vmem>>, vector<1x128xf32>
    %94 = vector.shape_cast %93 : vector<1x128xf32> to vector<1x1x128xf32>
    %95 = vector.broadcast %94 : vector<1x1x128xf32> to vector<8x16x128xf32>
    %96 = arith.addf %92, %95 : vector<8x16x128xf32>
    %c2_i32 = arith.constant 2 : i32
    %97 = arith.addi %0, %c2_i32 : i32
    %c0_37 = arith.constant 0 : index
    %98 = arith.index_cast %97 : i32 to index
    %c0_38 = arith.constant 0 : index
    %c0_39 = arith.constant 0 : index
    %99 = vector.load %arg2[%c0_37, %98, %c0_38, %c0_39] : memref<1x20x16x128xbf16, #tpu.memory_space<vmem>>, vector<1x8x16x128xbf16>
    %100 = vector.shape_cast %99 : vector<1x8x16x128xbf16> to vector<8x16x128xbf16>
    %101 = arith.extf %100 : vector<8x16x128xbf16> to vector<8x16x128xf32>
    %102 = arith.addf %96, %101 : vector<8x16x128xf32>
    %cst_40 = arith.constant 0.000000e+00 : f32
    %103 = vector.broadcast %cst_40 : f32 to vector<8x16x128xf32>
    %104 = arith.maximumf %102, %103 : vector<8x16x128xf32>
    %105 = arith.truncf %104 : vector<8x16x128xf32> to vector<8x16x128xbf16>
    %c0_41 = arith.constant 0 : index
    %c0_42 = arith.constant 0 : index
    %c0_43 = arith.constant 0 : index
    %c0_44 = arith.constant 0 : index
    %106 = vector.load %arg7[%c0_41, %c0_42, %c0_43, %c0_44] : memref<1x8x16x128xbf16, #tpu.memory_space<vmem>>, vector<1x8x16x128xbf16>
    %107 = vector.shape_cast %106 : vector<1x8x16x128xbf16> to vector<8x16x128xbf16>
    %108 = vector.shape_cast %105 : vector<8x16x128xbf16> to vector<1x8x16x128xbf16>
    tpu.vector_store %arg7[%c0_41, %c0_42, %c0_43, %c0_44], %108 {strides = array<i32>} : memref<1x8x16x128xbf16, #tpu.memory_space<vmem>>, vector<1x8x16x128xbf16>,
    return
  }
  func.func @transform_0(%arg0: i32, %arg1: i32) -> (i32, i32, i32, i32) {
    %c0_i32 = arith.constant 0 : i32
    %c0_i32_0 = arith.constant 0 : i32
    %c0_i32_1 = arith.constant 0 : i32
    %c0_i32_2 = arith.constant 0 : i32
    return %arg0, %c0_i32, %c0_i32_0, %c0_i32_1 : i32, i32, i32, i32
  }
  func.func @transform_1(%arg0: i32, %arg1: i32) -> (i32, i32, i32) {
    %c0_i32 = arith.constant 0 : i32
    %c0_i32_0 = arith.constant 0 : i32
    %c0_i32_1 = arith.constant 0 : i32
    %c0_i32_2 = arith.constant 0 : i32
    return %c0_i32, %c0_i32_0, %c0_i32_1 : i32, i32, i32
  }
  func.func @transform_2(%arg0: i32, %arg1: i32) -> (i32, i32, i32) {
    %c0_i32 = arith.constant 0 : i32
    %c0_i32_0 = arith.constant 0 : i32
    %c0_i32_1 = arith.constant 0 : i32
    %c0_i32_2 = arith.constant 0 : i32
    return %c0_i32, %c0_i32_0, %c0_i32_1 : i32, i32, i32
  }
  func.func @transform_3(%arg0: i32, %arg1: i32) -> (i32, i32) {
    %c0_i32 = arith.constant 0 : i32
    %c0_i32_0 = arith.constant 0 : i32
    %c0_i32_1 = arith.constant 0 : i32
    return %c0_i32, %c0_i32_0 : i32, i32
  }
  func.func @transform_4(%arg0: i32, %arg1: i32) -> (i32, i32) {
    %c0_i32 = arith.constant 0 : i32
    %c0_i32_0 = arith.constant 0 : i32
    %c0_i32_1 = arith.constant 0 : i32
    return %c0_i32, %c0_i32_0 : i32, i32
  }
  func.func @transform_5(%arg0: i32, %arg1: i32) -> (i32, i32, i32, i32) {
    %c0_i32 = arith.constant 0 : i32
    %c0_i32_0 = arith.constant 0 : i32
    %c0_i32_1 = arith.constant 0 : i32
    return %arg0, %arg1, %c0_i32, %c0_i32_0 : i32, i32, i32, i32
  }
}

</mosaic_0001>

<llo_original>
// kernel: basic_block_pallas.1
$region0: #{basic_block_pallas.1}
  #allocation0 [shape = 'u32[]', space=smem, size = 0x4, offset = 0x4, fixed_abs, tag = 'smem constant byte address 0x4 - core index']
  #allocation1 [shape = 'u32[72,128]{1,0:T(1,128)}', space=vmem, size = 0x9000, scoped, tag = 'internal scratch']
  %s0 = inlined_call_operand.vmem [shape: bf16[2,20,16,128], index: 0, kind: input, shape index: {}]
  %s1 = inlined_call_operand.vmem [shape: bf16[3,384,128], index: 1, kind: input, shape index: {}]
  %s2 = inlined_call_operand.vmem [shape: bf16[3,384,128], index: 2, kind: input, shape index: {}]
  %s3 = inlined_call_operand.vmem [shape: f32[1,128], index: 3, kind: input, shape index: {}]
  %s4 = inlined_call_operand.vmem [shape: f32[1,128], index: 4, kind: input, shape index: {}]
  %s5 = inlined_call_operand.vmem [shape: bf16[2,16,16,128], index: 5, kind: output, shape index: {}]
  %s6 = sld [smem:[#allocation0]]
  $region53: #{basic_block_pallas.1} parent=0
    _
  %s8 = ssub.s32 1, %s6
  %s9 = scalar_select 0, %s8, %s6
  loop: start=0, step=1, limit=6
  $region2: #{basic_block_pallas.1} parent=0 // loop_pre_header
    _
  $region3: #{basic_block_pallas.1} parent=0 // loop_header
    %s11 = sphi 0, %s15
    %p12 = scmp.ge.s32.totalorder %s11, 6
    %s18 = sphi 0, %s30
    %s19 = sphi 0, %s26
    %s20 = sphi 0, %s18
    %s21 = sphi 0, %s19
    %s22 = sphi 0, %s20
    %s23 = sphi 0, %s21
    %s33 = sphi 0, %s35
    %s36 = sphi 0, %s33
    %s37 = sphi 0, %s36
    %s53 = sphi 0, %s37
    %s57 = sphi 0, %s57
    %s59 = sphi 0, %s57
    %s60 = sphi 0, %s59
    %s74 = sphi 0, %s60
    %s78 = sphi 0, %s78
    %s80 = sphi 0, %s78
    %s81 = sphi 0, %s80
    %s95 = sphi 0, %s81
    %s99 = sphi 0, %s99
    %s101 = sphi 0, %s99
    %s102 = sphi 0, %s101
    %s116 = sphi 0, %s102
    %s120 = sphi 0, %s120
    %s122 = sphi 0, %s120
    %s123 = sphi 0, %s122
    %s137 = sphi 0, %s123
    %s145 = sphi 0, %s147
    %s148 = sphi 0, %s145
    %s149 = sphi 0, %s148
    %s165 = sphi 0, %s149
  $region4: #{basic_block_pallas.1} parent=0 // loop_header_branch
    %14 = sbr.rel (%p12) target = $region8
  $region5: #{basic_block_pallas.1} parent=0 // loop_body
    %s16 = ssub.s32 %s11, 1
    %s17 = ssub.s32 %s11, 2
    %s24 = sadd.s32 1, %s19
    %p25 = scmp.ge.s32.totalorder %s24, 2
    %s26 = scalar_select %p25, 0, %s24
    %s27 = sadd.s32 1, %s18
    %s28 = scalar_select %p25, %s27, %s18
    %p29 = scmp.ge.s32.totalorder %s28, 2
    %s30 = scalar_select %p29, 0, %s28
    %s31 = ssub.s32 %s18, %s30
    %p32 = scmp.eq.s32.totalorder %s31, 0
    %s34 = sadd.s32 %s33, 1
    %s35 = scalar_select %p32, %s33, %s34
    %p38 = pneg %p32
    %p39 = scmp.eq.s32.totalorder %s11, 3
    %p40 = por %p38, %p39
    %p41 = scmp.ne.s32.totalorder %s33, %s36
    %p42 = scmp.eq.s32.totalorder %s11, 0
    %p43 = por %p41, %p42
    %p44 = scmp.ne.s32.totalorder %s33, %s36
    %p45 = scmp.eq.s32.totalorder %s16, 3
    %p46 = por %p44, %p45
    %p47 = scmp.ne.s32.totalorder %s36, %s37
    %p48 = scmp.eq.s32.totalorder %s16, 0
    %p49 = por %p47, %p48
    %p50 = scmp.ne.s32.totalorder %s36, %s37
    %p51 = scmp.eq.s32.totalorder %s17, 3
    %p52 = por %p50, %p51
    %p54 = scmp.ne.s32.totalorder %s37, %s53
    %p55 = scmp.eq.s32.totalorder %s17, 0
    %p56 = por %p54, %p55
    %s58 = sadd.s32 %s57, 1
    %p61 = scmp.eq.s32.totalorder %s11, 3
    %p62 = scmp.ne.s32.totalorder %s57, %s59
    %p63 = scmp.eq.s32.totalorder %s11, 0
    %p64 = por %p62, %p63
    %p65 = scmp.ne.s32.totalorder %s57, %s59
    %p66 = scmp.eq.s32.totalorder %s16, 3
    %p67 = por %p65, %p66
    %p68 = scmp.ne.s32.totalorder %s59, %s60
    %p69 = scmp.eq.s32.totalorder %s16, 0
    %p70 = por %p68, %p69
    %p71 = scmp.ne.s32.totalorder %s59, %s60
    %p72 = scmp.eq.s32.totalorder %s17, 3
    %p73 = por %p71, %p72
    %p75 = scmp.ne.s32.totalorder %s60, %s74
    %p76 = scmp.eq.s32.totalorder %s17, 0
    %p77 = por %p75, %p76
    %s79 = sadd.s32 %s78, 1
    %p82 = scmp.eq.s32.totalorder %s11, 3
    %p83 = scmp.ne.s32.totalorder %s78, %s80
    %p84 = scmp.eq.s32.totalorder %s11, 0
    %p85 = por %p83, %p84
    %p86 = scmp.ne.s32.totalorder %s78, %s80
    %p87 = scmp.eq.s32.totalorder %s16, 3
    %p88 = por %p86, %p87
    %p89 = scmp.ne.s32.totalorder %s80, %s81
    %p90 = scmp.eq.s32.totalorder %s16, 0
    %p91 = por %p89, %p90
    %p92 = scmp.ne.s32.totalorder %s80, %s81
    %p93 = scmp.eq.s32.totalorder %s17, 3
    %p94 = por %p92, %p93
    %p96 = scmp.ne.s32.totalorder %s81, %s95
    %p97 = scmp.eq.s32.totalorder %s17, 0
    %p98 = por %p96, %p97
    %s100 = sadd.s32 %s99, 1
    %p103 = scmp.eq.s32.totalorder %s11, 3
    %p104 = scmp.ne.s32.totalorder %s99, %s101
    %p105 = scmp.eq.s32.totalorder %s11, 0
    %p106 = por %p104, %p105
    %p107 = scmp.ne.s32.totalorder %s99, %s101
    %p108 = scmp.eq.s32.totalorder %s16, 3
    %p109 = por %p107, %p108
    %p110 = scmp.ne.s32.totalorder %s101, %s102
    %p111 = scmp.eq.s32.totalorder %s16, 0
    %p112 = por %p110, %p111
    %p113 = scmp.ne.s32.totalorder %s101, %s102
    %p114 = scmp.eq.s32.totalorder %s17, 3
    %p115 = por %p113, %p114
    %p117 = scmp.ne.s32.totalorder %s102, %s116
    %p118 = scmp.eq.s32.totalorder %s17, 0
    %p119 = por %p117, %p118
    %s121 = sadd.s32 %s120, 1
    %p124 = scmp.eq.s32.totalorder %s11, 3
    %p125 = scmp.ne.s32.totalorder %s120, %s122
    %p126 = scmp.eq.s32.totalorder %s11, 0
    %p127 = por %p125, %p126
    %p128 = scmp.ne.s32.totalorder %s120, %s122
    %p129 = scmp.eq.s32.totalorder %s16, 3
    %p130 = por %p128, %p129
    %p131 = scmp.ne.s32.totalorder %s122, %s123
    %p132 = scmp.eq.s32.totalorder %s16, 0
    %p133 = por %p131, %p132
    %p134 = scmp.ne.s32.totalorder %s122, %s123
    %p135 = scmp.eq.s32.totalorder %s17, 3
    %p136 = por %p134, %p135
    %p138 = scmp.ne.s32.totalorder %s123, %s137
    %p139 = scmp.eq.s32.totalorder %s17, 0
    %p140 = por %p138, %p139
    %s141 = ssub.s32 %s18, %s30
    %s142 = ssub.s32 %s19, %s26
    %s143 = sor.u32 %s141, %s142
    %p144 = scmp.eq.s32.totalorder %s143, 0
    %s146 = sadd.s32 %s145, 1
    %s147 = scalar_select %p144, %s145, %s146
    %p150 = pneg %p144
    %p151 = scmp.eq.s32.totalorder %s11, 3
    %p152 = por %p150, %p151
    %p153 = scmp.ne.s32.totalorder %s145, %s148
    %p154 = scmp.eq.s32.totalorder %s11, 0
    %p155 = por %p153, %p154
    %p156 = scmp.ne.s32.totalorder %s145, %s148
    %p157 = scmp.eq.s32.totalorder %s16, 3
    %p158 = por %p156, %p157
    %p159 = scmp.ne.s32.totalorder %s148, %s149
    %p160 = scmp.eq.s32.totalorder %s16, 0
    %p161 = por %p159, %p160
    %p162 = scmp.ne.s32.totalorder %s148, %s149
    %p163 = scmp.eq.s32.totalorder %s17, 3
    %p164 = por %p162, %p163
    %p166 = scmp.ne.s32.totalorder %s149, %s165
    %p167 = scmp.eq.s32.totalorder %s17, 0
    %p168 = por %p166, %p167
    %p169 = scmp.le.s32.totalorder 1, %s11
    %p170 = scmp.lt.s32.totalorder %s11, 5
    %p171 = pnand %p169, %p170
    %p172 = pneg %p171
    // Predicated region
    $region9: #{basic_block_pallas.1} parent=5 // pred_check
      _
    $region10: #{basic_block_pallas.1} parent=5 // pred_check_branch
      %174 = sbr.rel (%p171) target = $region12
    $region11: #{basic_block_pallas.1} parent=5 // pred_region
      %s175 = ssub.s32 %s11, 1
      // Predicated region
      $region13: #{basic_block_pallas.1} parent=11 // pred_check
        %p176 = pneg %p70
      $region14: #{basic_block_pallas.1} parent=11 // pred_check_branch
        %178 = sbr.rel (%p176) target = $region16
      $region15: #{basic_block_pallas.1} parent=11 // pred_region
        _
      $region16: #{basic_block_pallas.1} parent=11 // pred_fallthru
        _
      // Predicated region
      $region17: #{basic_block_pallas.1} parent=11 // pred_check
        %p179 = pneg %p91
      $region18: #{basic_block_pallas.1} parent=11 // pred_check_branch
        %181 = sbr.rel (%p179) target = $region20
      $region19: #{basic_block_pallas.1} parent=11 // pred_region
        _
      $region20: #{basic_block_pallas.1} parent=11 // pred_fallthru
        _
      // Predicated region
      $region21: #{basic_block_pallas.1} parent=11 // pred_check
        %p182 = pneg %p112
      $region22: #{basic_block_pallas.1} parent=11 // pred_check_branch
        %184 = sbr.rel (%p182) target = $region24
      $region23: #{basic_block_pallas.1} parent=11 // pred_region
        _
      $region24: #{basic_block_pallas.1} parent=11 // pred_fallthru
        _
      // Predicated region
      $region25: #{basic_block_pallas.1} parent=11 // pred_check
        %p185 = pneg %p133
      $region26: #{basic_block_pallas.1} parent=11 // pred_check_branch
        %187 = sbr.rel (%p185) target = $region28
      $region27: #{basic_block_pallas.1} parent=11 // pred_region
        _
      $region28: #{basic_block_pallas.1} parent=11 // pred_fallthru
        _
    $region12: #{basic_block_pallas.1} parent=5 // pred_fallthru
      _
    %p188 = scmp.lt.s32.totalorder %s11, 4
    // Predicated region
    $region29: #{basic_block_pallas.1} parent=5 // pred_check
      %p189 = pneg %p188
    $region30: #{basic_block_pallas.1} parent=5 // pred_check_branch
      %191 = sbr.rel (%p189) target = $region32
    $region31: #{basic_block_pallas.1} parent=5 // pred_region
      // Predicated region
      $region33: #{basic_block_pallas.1} parent=31 // pred_check
        %p192 = pneg %p43
      $region34: #{basic_block_pallas.1} parent=31 // pred_check_branch
        %194 = sbr.rel (%p192) target = $region36
      $region35: #{basic_block_pallas.1} parent=31 // pred_region
        %p195 = scmp.lt.s32.totalorder %s18, 1
        %s196 = scalar_select %p195, %s18, 1
        %s197 = smul.addr %s196, 40
        %s198 = smul.addr %s197, 4
        %s199 = scalar_lea.vmem %s0, %s198
      $region36: #{basic_block_pallas.1} parent=31 // pred_fallthru
        _
    $region32: #{basic_block_pallas.1} parent=5 // pred_fallthru
      _
    %p200 = scmp.le.s32.totalorder 1, %s11
    %p201 = scmp.lt.s32.totalorder %s11, 5
    %p202 = pnand %p200, %p201
    %p203 = pneg %p202
    // Predicated region
    $region37: #{basic_block_pallas.1} parent=5 // pred_check
      _
    $region38: #{basic_block_pallas.1} parent=5 // pred_check_branch
      %205 = sbr.rel (%p202) target = $region40
    $region39: #{basic_block_pallas.1} parent=5 // pred_region
      %s206 = ssub.s32 %s11, 1
      %p207 = scmp.lt.s32.totalorder %s20, 1
      %s208 = scalar_select %p207, %s20, 1
      %s209 = smul.addr %s208, 40
      %s210 = smul.addr %s209, 4
      %s211 = scalar_lea.vmem %s0, %s210
      %p212 = pneg %p49
      %p213 = pneg %p46
      %p214 = pneg %p70
      %p215 = pneg %p67
      %p216 = pneg %p91
      %p217 = pneg %p88
      %p218 = pneg %p112
      %p219 = pneg %p109
      %p220 = pneg %p133
      %p221 = pneg %p130
      %p222 = pneg %p161
      %p223 = pneg %p158
      %s224 = smul.u32 8, %s21
      %p225 = scmp.lt.s32.totalorder %s20, 1
      %s226 = scalar_select %p225, %s20, 1
      %p227 = scmp.lt.s32.totalorder %s224, 15
      %s228 = scalar_select %p227, %s224, 15
      %s229 = smul.addr %s228, 2
      %s230 = smul.addr %s226, 32
      %s231 = sadd.s32 %s229, %s230
      %s232 = smul.addr %s231, 4
      %s233 = scalar_lea.vmem %s5, %s232
      %p234 = scmp.lt.s32.totalorder %s20, 1
      %s235 = scalar_select %p234, %s20, 1
      %s236 = smul.addr %s235, 40
      %s237 = smul.addr %s236, 4
      %s238 = scalar_lea.vmem %s0, %s237
      %s239 = smul.u32 8, %s21
      %p240 = scmp.lt.s32.totalorder %s20, 1
      %s241 = scalar_select %p240, %s20, 1
      %p242 = scmp.lt.s32.totalorder %s239, 15
      %s243 = scalar_select %p242, %s239, 15
      %s244 = smul.addr %s243, 2
      %s245 = smul.addr %s241, 32
      %s246 = sadd.s32 %s244, %s245
      %s247 = smul.addr %s246, 4
      %s248 = scalar_lea.vmem %s5, %s247
      %s249 = smul.u32 8, %s21
      %s250 = smul.u32 %s21, 8
      %s251 = smul.u32 %s250, 2
      %s252 = smul.addr %s251, 4
      %s253 = scalar_lea.vmem %s238, %s252
      %v254 = vld [vmem:[%s253] sm:$0xf]
      %v255 = vld [vmem:[%s253 + $0x4] sm:$0xf]
      %v256 = vld [vmem:[%s253 + $0x8] sm:$0xf]
      %v257 = vld [vmem:[%s253 + $0xc] sm:$0xf]
      %v258 = vld [vmem:[%s253 + $0x10] sm:$0xf]
      %v259 = vld [vmem:[%s253 + $0x14] sm:$0xf]
      %v260 = vld [vmem:[%s253 + $0x18] sm:$0xf]
      %v261 = vld [vmem:[%s253 + $0x1c] sm:$0xf]
      %v262 = vld [vmem:[%s253 + $0x20] sm:$0xf]
      %v263 = vld [vmem:[%s253 + $0x24] sm:$0xf]
      %v264 = vld [vmem:[%s253 + $0x28] sm:$0xf]
      %v265 = vld [vmem:[%s253 + $0x2c] sm:$0xf]
      %v266 = vld [vmem:[%s253 + $0x30] sm:$0xf]
      %v267 = vld [vmem:[%s253 + $0x34] sm:$0xf]
      %v268 = vld [vmem:[%s253 + $0x38] sm:$0xf]
      %v269 = vld [vmem:[%s253 + $0x3c] sm:$0xf]
      %v270 = vld [vmem:[%s253 + $0x40] sm:$0xf]
      %v271 = vld [vmem:[%s253 + $0x44] sm:$0xf]
      %v272 = vld [vmem:[%s253 + $0x48] sm:$0xf]
      %v273 = vld [vmem:[%s253 + $0x4c] sm:$0xf]
      %v274 = vld [vmem:[%s253 + $0x50] sm:$0xf]
      %v275 = vld [vmem:[%s253 + $0x54] sm:$0xf]
      %v276 = vld [vmem:[%s253 + $0x58] sm:$0xf]
      %v277 = vld [vmem:[%s253 + $0x5c] sm:$0xf]
      %v298 = vunpack.c.l.b16 %v254
      %v299 = vunpack.c.l.b16 %v255
      %v300 = vunpack.c.l.b16 %v256
      %v301 = vunpack.c.l.b16 %v257
      %v302 = vunpack.c.l.b16 %v258
      %v303 = vunpack.c.l.b16 %v259
      %v304 = vunpack.c.l.b16 %v260
      %v305 = vunpack.c.l.b16 %v261
      %v306 = vunpack.c.l.b16 %v262
      %v307 = vunpack.c.l.b16 %v263
      %v308 = vunpack.c.l.b16 %v264
      %v309 = vunpack.c.l.b16 %v265
      %v310 = vunpack.c.l.b16 %v266
      %v311 = vunpack.c.l.b16 %v267
      %v312 = vunpack.c.l.b16 %v268
      %v313 = vunpack.c.l.b16 %v269
      %v314 = vunpack.c.l.b16 %v270
      %v315 = vunpack.c.l.b16 %v271
      %v316 = vunpack.c.l.b16 %v272
      %v317 = vunpack.c.l.b16 %v273
      %v318 = vpack.c.b16 %v299, %v298
      %v319 = vpack.c.b16 %v301, %v300
      %v320 = vpack.c.b16 %v303, %v302
      %v321 = vpack.c.b16 %v305, %v304
      %v322 = vpack.c.b16 %v307, %v306
      %v323 = vpack.c.b16 %v309, %v308
      %v324 = vpack.c.b16 %v311, %v310
      %v325 = vpack.c.b16 %v313, %v312
      %v326 = vpack.c.b16 %v315, %v314
      %v327 = vpack.c.b16 %v317, %v316
      %v340 = vunpack.c.l.b16 %v274
      %v341 = vunpack.c.l.b16 %v275
      %v342 = vpack.c.b16 %v341, %v340
      %v346 = vunpack.c.l.b16 %v276
      %v347 = vunpack.c.l.b16 %v277
      %v348 = vpack.c.b16 %v347, %v346
      %v350 = vlaneseq
      %v351 = vshrl.u32 %v350, 7
      %v352 = vadd.s32 %v351, 8
      %v353 = vld [vmem:[%s1] sm:$0xf]
      %v354 = vld [vmem:[%s1 + $0x4] sm:$0xf]
      %v355 = vld [vmem:[%s1 + $0x8] sm:$0xf]
      %v356 = vld [vmem:[%s1 + $0xc] sm:$0xf]
      %v357 = vld [vmem:[%s1 + $0x10] sm:$0xf]
      %v358 = vld [vmem:[%s1 + $0x14] sm:$0xf]
      %v359 = vld [vmem:[%s1 + $0x18] sm:$0xf]
      %v360 = vld [vmem:[%s1 + $0x1c] sm:$0xf]
      %v361 = vld [vmem:[%s1 + $0x20] sm:$0xf]
      %v362 = vld [vmem:[%s1 + $0x24] sm:$0xf]
      %v363 = vld [vmem:[%s1 + $0x28] sm:$0xf]
      %v364 = vld [vmem:[%s1 + $0x2c] sm:$0xf]
      %v365 = vld [vmem:[%s1 + $0x30] sm:$0xf]
      %v366 = vld [vmem:[%s1 + $0x34] sm:$0xf]
      %v367 = vld [vmem:[%s1 + $0x38] sm:$0xf]
      %v368 = vld [vmem:[%s1 + $0x3c] sm:$0xf]
      %v369 = vld [vmem:[%s1 + $0x40] sm:$0xf]
      %v370 = vld [vmem:[%s1 + $0x44] sm:$0xf]
      %v371 = vld [vmem:[%s1 + $0x48] sm:$0xf]
      %v372 = vld [vmem:[%s1 + $0x4c] sm:$0xf]
      %v373 = vld [vmem:[%s1 + $0x50] sm:$0xf]
      %v374 = vld [vmem:[%s1 + $0x54] sm:$0xf]
      %v375 = vld [vmem:[%s1 + $0x58] sm:$0xf]
      %v376 = vld [vmem:[%s1 + $0x5c] sm:$0xf]
      %v377 = vld [vmem:[%s1 + $0x60] sm:$0xf]
      %v378 = vld [vmem:[%s1 + $0x64] sm:$0xf]
      %v379 = vld [vmem:[%s1 + $0x68] sm:$0xf]
      %v380 = vld [vmem:[%s1 + $0x6c] sm:$0xf]
      %v381 = vld [vmem:[%s1 + $0x70] sm:$0xf]
      %v382 = vld [vmem:[%s1 + $0x74] sm:$0xf]
      %v383 = vld [vmem:[%s1 + $0x78] sm:$0xf]
      %v384 = vld [vmem:[%s1 + $0x7c] sm:$0xf]
      %v385 = vld [vmem:[%s1 + $0x80] sm:$0xf]
      %v386 = vld [vmem:[%s1 + $0x84] sm:$0xf]
      %v387 = vld [vmem:[%s1 + $0x88] sm:$0xf]
      %v388 = vld [vmem:[%s1 + $0x8c] sm:$0xf]
      %v389 = vld [vmem:[%s1 + $0x90] sm:$0xf]
      %v390 = vld [vmem:[%s1 + $0x94] sm:$0xf]
      %v391 = vld [vmem:[%s1 + $0x98] sm:$0xf]
      %v392 = vld [vmem:[%s1 + $0x9c] sm:$0xf]
      %v393 = vld [vmem:[%s1 + $0xa0] sm:$0xf]
      %v394 = vld [vmem:[%s1 + $0xa4] sm:$0xf]
      %v395 = vld [vmem:[%s1 + $0xa8] sm:$0xf]
      %v396 = vld [vmem:[%s1 + $0xac] sm:$0xf]
      %v397 = vld [vmem:[%s1 + $0xb0] sm:$0xf]
      %v398 = vld [vmem:[%s1 + $0xb4] sm:$0xf]
      %v399 = vld [vmem:[%s1 + $0xb8] sm:$0xf]
      %v400 = vld [vmem:[%s1 + $0xbc] sm:$0xf]
      %v449 = vunpack.c.l.b16 %v353
      %v450 = vunpack.c.l.b16 %v354
      %v451 = vunpack.c.l.b16 %v355
      %v452 = vunpack.c.l.b16 %v356
      %v453 = vunpack.c.l.b16 %v357
      %v454 = vunpack.c.l.b16 %v358
      %v455 = vunpack.c.l.b16 %v359
      %v456 = vunpack.c.l.b16 %v360
      %v457 = vunpack.c.l.b16 %v361
      %v458 = vunpack.c.l.b16 %v362
      %v459 = vunpack.c.l.b16 %v363
      %v460 = vunpack.c.l.b16 %v364
      %v461 = vunpack.c.l.b16 %v365
      %v462 = vunpack.c.l.b16 %v366
      %v463 = vunpack.c.l.b16 %v367
      %v464 = vunpack.c.l.b16 %v368
      %v465 = vunpack.c.l.b16 %v369
      %v466 = vunpack.c.l.b16 %v370
      %v467 = vunpack.c.l.b16 %v371
      %v468 = vunpack.c.l.b16 %v372
      %v469 = vunpack.c.l.b16 %v373
      %v470 = vunpack.c.l.b16 %v374
      %v471 = vunpack.c.l.b16 %v375
      %v472 = vunpack.c.l.b16 %v376
      %v473 = vunpack.c.l.b16 %v377
      %v474 = vunpack.c.l.b16 %v378
      %v475 = vunpack.c.l.b16 %v379
      %v476 = vunpack.c.l.b16 %v380
      %v477 = vunpack.c.l.b16 %v381
      %v478 = vunpack.c.l.b16 %v382
      %v479 = vunpack.c.l.b16 %v383
      %v480 = vunpack.c.l.b16 %v384
      %v481 = vunpack.c.l.b16 %v385
      %v482 = vunpack.c.l.b16 %v386
      %v483 = vunpack.c.l.b16 %v387
      %v484 = vunpack.c.l.b16 %v388
      %v485 = vunpack.c.l.b16 %v389
      %v486 = vunpack.c.l.b16 %v390
      %v487 = vunpack.c.l.b16 %v391
      %v488 = vunpack.c.l.b16 %v392
      %v489 = vunpack.c.l.b16 %v393
      %v490 = vunpack.c.l.b16 %v394
      %v491 = vunpack.c.l.b16 %v395
      %v492 = vunpack.c.l.b16 %v396
      %v493 = vunpack.c.l.b16 %v397
      %v494 = vunpack.c.l.b16 %v398
      %v495 = vunpack.c.l.b16 %v399
      %v496 = vunpack.c.l.b16 %v400
      %v497 = vpack.c.b16 %v450, %v449
      %v498 = vpack.c.b16 %v452, %v451
      %v499 = vpack.c.b16 %v454, %v453
      %v500 = vpack.c.b16 %v456, %v455
      %v501 = vpack.c.b16 %v458, %v457
      %v502 = vpack.c.b16 %v460, %v459
      %v503 = vpack.c.b16 %v462, %v461
      %v504 = vpack.c.b16 %v464, %v463
      %v505 = vpack.c.b16 %v466, %v465
      %v506 = vpack.c.b16 %v468, %v467
      %v507 = vpack.c.b16 %v470, %v469
      %v508 = vpack.c.b16 %v472, %v471
      %v509 = vpack.c.b16 %v474, %v473
      %v510 = vpack.c.b16 %v476, %v475
      %v511 = vpack.c.b16 %v478, %v477
      %v512 = vpack.c.b16 %v480, %v479
      %v513 = vpack.c.b16 %v482, %v481
      %v514 = vpack.c.b16 %v484, %v483
      %v515 = vpack.c.b16 %v486, %v485
      %v516 = vpack.c.b16 %v488, %v487
      %v517 = vpack.c.b16 %v490, %v489
      %v518 = vpack.c.b16 %v492, %v491
      %v519 = vpack.c.b16 %v494, %v493
      %v520 = vpack.c.b16 %v496, %v495
      %545 = vmatpush.bf16.msra.mxu0 %v504
      %546 = vmatpush.bf16.msra.mxu0 %v503
      %547 = vmatpush.bf16.msra.mxu0 %v502
      %548 = vmatpush.bf16.msra.mxu0 %v501
      %549 = vmatpush.bf16.msra.mxu0 %v500
      %550 = vmatpush.bf16.msra.mxu0 %v499
      %551 = vmatpush.bf16.msra.mxu0 %v498
      %552 = vmatpush.bf16.msra.mxu0 %v497
      %553 = vmatmul.bf16.gmra.mxu0 %v318
      %v554 = vpop.f32.mrf.mxu0
      %v555 = vadd.f32 0.0, %v554
      %v556 = vpop.f32.mrf.mxu0
      %v557 = vadd.f32 0.0, %v556
      %558 = vmatmul.bf16.gmra.mxu0 %v319
      %v559 = vpop.f32.mrf.mxu0
      %v560 = vadd.f32 0.0, %v559
      %v561 = vpop.f32.mrf.mxu0
      %v562 = vadd.f32 0.0, %v561
      %563 = vmatmul.bf16.gmra.mxu0 %v320
      %v564 = vpop.f32.mrf.mxu0
      %v565 = vadd.f32 0.0, %v564
      %v566 = vpop.f32.mrf.mxu0
      %v567 = vadd.f32 0.0, %v566
      %568 = vmatmul.bf16.gmra.mxu0 %v321
      %v569 = vpop.f32.mrf.mxu0
      %v570 = vadd.f32 0.0, %v569
      %v571 = vpop.f32.mrf.mxu0
      %v572 = vadd.f32 0.0, %v571
      %573 = vmatmul.bf16.gmra.mxu0 %v322
      %v574 = vpop.f32.mrf.mxu0
      %v575 = vadd.f32 0.0, %v574
      %v576 = vpop.f32.mrf.mxu0
      %v577 = vadd.f32 0.0, %v576
      %578 = vmatmul.bf16.gmra.mxu0 %v323
      %v579 = vpop.f32.mrf.mxu0
      %v580 = vadd.f32 0.0, %v579
      %v581 = vpop.f32.mrf.mxu0
      %v582 = vadd.f32 0.0, %v581
      %583 = vmatmul.bf16.gmra.mxu0 %v324
      %v584 = vpop.f32.mrf.mxu0
      %v585 = vadd.f32 0.0, %v584
      %v586 = vpop.f32.mrf.mxu0
      %v587 = vadd.f32 0.0, %v586
      %588 = vmatmul.bf16.gmra.mxu0 %v325
      %v589 = vpop.f32.mrf.mxu0
      %v590 = vadd.f32 0.0, %v589
      %v591 = vpop.f32.mrf.mxu0
      %v592 = vadd.f32 0.0, %v591
      %593 = vmatmul.bf16.gmra.mxu0 %v326
      %v594 = vpop.f32.mrf.mxu0
      %v595 = vadd.f32 0.0, %v594
      %v596 = vpop.f32.mrf.mxu0
      %v597 = vadd.f32 0.0, %v596
      %598 = vmatmul.bf16.gmra.mxu0 %v327
      %v599 = vpop.f32.mrf.mxu0
      %v600 = vadd.f32 0.0, %v599
      %v601 = vpop.f32.mrf.mxu0
      %v602 = vadd.f32 0.0, %v601
      %603 = vdwg.mxu0
      %604 = vmatpush.bf16.msra.mxu0 %v512
      %605 = vmatpush.bf16.msra.mxu0 %v511
      %606 = vmatpush.bf16.msra.mxu0 %v510
      %607 = vmatpush.bf16.msra.mxu0 %v509
      %608 = vmatpush.bf16.msra.mxu0 %v508
      %609 = vmatpush.bf16.msra.mxu0 %v507
      %610 = vmatpush.bf16.msra.mxu0 %v506
      %611 = vmatpush.bf16.msra.mxu0 %v505
      %612 = vmatmul.bf16.gmra.mxu0 %v319
      %v613 = vpop.f32.mrf.mxu0
      %v614 = vadd.f32 %v555, %v613
      %v615 = vpop.f32.mrf.mxu0
      %v616 = vadd.f32 %v557, %v615
      %617 = vmatmul.bf16.gmra.mxu0 %v320
      %v618 = vpop.f32.mrf.mxu0
      %v619 = vadd.f32 %v560, %v618
      %v620 = vpop.f32.mrf.mxu0
      %v621 = vadd.f32 %v562, %v620
      %622 = vmatmul.bf16.gmra.mxu0 %v321
      %v623 = vpop.f32.mrf.mxu0
      %v624 = vadd.f32 %v565, %v623
      %v625 = vpop.f32.mrf.mxu0
      %v626 = vadd.f32 %v567, %v625
      %627 = vmatmul.bf16.gmra.mxu0 %v322
      %v628 = vpop.f32.mrf.mxu0
      %v629 = vadd.f32 %v570, %v628
      %v630 = vpop.f32.mrf.mxu0
      %v631 = vadd.f32 %v572, %v630
      %632 = vmatmul.bf16.gmra.mxu0 %v323
      %v633 = vpop.f32.mrf.mxu0
      %v634 = vadd.f32 %v575, %v633
      %v635 = vpop.f32.mrf.mxu0
      %v636 = vadd.f32 %v577, %v635
      %637 = vmatmul.bf16.gmra.mxu0 %v324
      %v638 = vpop.f32.mrf.mxu0
      %v639 = vadd.f32 %v580, %v638
      %v640 = vpop.f32.mrf.mxu0
      %v641 = vadd.f32 %v582, %v640
      %642 = vmatmul.bf16.gmra.mxu0 %v325
      %v643 = vpop.f32.mrf.mxu0
      %v644 = vadd.f32 %v585, %v643
      %v645 = vpop.f32.mrf.mxu0
      %v646 = vadd.f32 %v587, %v645
      %647 = vmatmul.bf16.gmra.mxu0 %v326
      %v648 = vpop.f32.mrf.mxu0
      %v649 = vadd.f32 %v590, %v648
      %v650 = vpop.f32.mrf.mxu0
      %v651 = vadd.f32 %v592, %v650
      %652 = vmatmul.bf16.gmra.mxu0 %v327
      %v653 = vpop.f32.mrf.mxu0
      %v654 = vadd.f32 %v595, %v653
      %v655 = vpop.f32.mrf.mxu0
      %v656 = vadd.f32 %v597, %v655
      %657 = vmatmul.bf16.gmra.mxu0 %v342
      %v658 = vpop.f32.mrf.mxu0
      %v659 = vadd.f32 %v600, %v658
      %v660 = vpop.f32.mrf.mxu0
      %v661 = vadd.f32 %v602, %v660
      %662 = vdwg.mxu0
      %663 = vmatpush.bf16.msra.mxu0 %v520
      %664 = vmatpush.bf16.msra.mxu0 %v519
      %665 = vmatpush.bf16.msra.mxu0 %v518
      %666 = vmatpush.bf16.msra.mxu0 %v517
      %667 = vmatpush.bf16.msra.mxu0 %v516
      %668 = vmatpush.bf16.msra.mxu0 %v515
      %669 = vmatpush.bf16.msra.mxu0 %v514
      %670 = vmatpush.bf16.msra.mxu0 %v513
      %671 = vmatmul.bf16.gmra.mxu0 %v320
      %v672 = vpop.f32.mrf.mxu0
      %v673 = vadd.f32 %v614, %v672
      %v674 = vpop.f32.mrf.mxu0
      %v675 = vadd.f32 %v616, %v674
      %676 = vmatmul.bf16.gmra.mxu0 %v321
      %v677 = vpop.f32.mrf.mxu0
      %v678 = vadd.f32 %v619, %v677
      %v679 = vpop.f32.mrf.mxu0
      %v680 = vadd.f32 %v621, %v679
      %681 = vmatmul.bf16.gmra.mxu0 %v322
      %v682 = vpop.f32.mrf.mxu0
      %v683 = vadd.f32 %v624, %v682
      %v684 = vpop.f32.mrf.mxu0
      %v685 = vadd.f32 %v626, %v684
      %686 = vmatmul.bf16.gmra.mxu0 %v323
      %v687 = vpop.f32.mrf.mxu0
      %v688 = vadd.f32 %v629, %v687
      %v689 = vpop.f32.mrf.mxu0
      %v690 = vadd.f32 %v631, %v689
      %691 = vmatmul.bf16.gmra.mxu0 %v324
      %v692 = vpop.f32.mrf.mxu0
      %v693 = vadd.f32 %v634, %v692
      %v694 = vpop.f32.mrf.mxu0
      %v695 = vadd.f32 %v636, %v694
      %696 = vmatmul.bf16.gmra.mxu0 %v325
      %v697 = vpop.f32.mrf.mxu0
      %v698 = vadd.f32 %v639, %v697
      %v699 = vpop.f32.mrf.mxu0
      %v700 = vadd.f32 %v641, %v699
      %701 = vmatmul.bf16.gmra.mxu0 %v326
      %v702 = vpop.f32.mrf.mxu0
      %v703 = vadd.f32 %v644, %v702
      %v704 = vpop.f32.mrf.mxu0
      %v705 = vadd.f32 %v646, %v704
      %706 = vmatmul.bf16.gmra.mxu0 %v327
      %v707 = vpop.f32.mrf.mxu0
      %v708 = vadd.f32 %v649, %v707
      %v709 = vpop.f32.mrf.mxu0
      %v710 = vadd.f32 %v651, %v709
      %711 = vmatmul.bf16.gmra.mxu0 %v342
      %v712 = vpop.f32.mrf.mxu0
      %v713 = vadd.f32 %v654, %v712
      %v714 = vpop.f32.mrf.mxu0
      %v715 = vadd.f32 %v656, %v714
      %716 = vmatmul.bf16.gmra.mxu0 %v348
      %v717 = vpop.f32.mrf.mxu0
      %v718 = vadd.f32 %v659, %v717
      %v719 = vpop.f32.mrf.mxu0
      %v720 = vadd.f32 %v661, %v719
      %721 = vdwg.mxu0
      %s722 = scalar_lea.vmem %s1, 192
      %v723 = vld [vmem:[%s722] sm:$0xf]
      %v724 = vld [vmem:[%s722 + $0x4] sm:$0xf]
      %v725 = vld [vmem:[%s722 + $0x8] sm:$0xf]
      %v726 = vld [vmem:[%s722 + $0xc] sm:$0xf]
      %v727 = vld [vmem:[%s722 + $0x10] sm:$0xf]
      %v728 = vld [vmem:[%s722 + $0x14] sm:$0xf]
      %v729 = vld [vmem:[%s722 + $0x18] sm:$0xf]
      %v730 = vld [vmem:[%s722 + $0x1c] sm:$0xf]
      %v731 = vld [vmem:[%s722 + $0x20] sm:$0xf]
      %v732 = vld [vmem:[%s722 + $0x24] sm:$0xf]
      %v733 = vld [vmem:[%s722 + $0x28] sm:$0xf]
      %v734 = vld [vmem:[%s722 + $0x2c] sm:$0xf]
      %v735 = vld [vmem:[%s722 + $0x30] sm:$0xf]
      %v736 = vld [vmem:[%s722 + $0x34] sm:$0xf]
      %v737 = vld [vmem:[%s722 + $0x38] sm:$0xf]
      %v738 = vld [vmem:[%s722 + $0x3c] sm:$0xf]
      %v739 = vld [vmem:[%s722 + $0x40] sm:$0xf]
      %v740 = vld [vmem:[%s722 + $0x44] sm:$0xf]
      %v741 = vld [vmem:[%s722 + $0x48] sm:$0xf]
      %v742 = vld [vmem:[%s722 + $0x4c] sm:$0xf]
      %v743 = vld [vmem:[%s722 + $0x50] sm:$0xf]
      %v744 = vld [vmem:[%s722 + $0x54] sm:$0xf]
      %v745 = vld [vmem:[%s722 + $0x58] sm:$0xf]
      %v746 = vld [vmem:[%s722 + $0x5c] sm:$0xf]
      %v747 = vld [vmem:[%s722 + $0x60] sm:$0xf]
      %v748 = vld [vmem:[%s722 + $0x64] sm:$0xf]
      %v749 = vld [vmem:[%s722 + $0x68] sm:$0xf]
      %v750 = vld [vmem:[%s722 + $0x6c] sm:$0xf]
      %v751 = vld [vmem:[%s722 + $0x70] sm:$0xf]
      %v752 = vld [vmem:[%s722 + $0x74] sm:$0xf]
      %v753 = vld [vmem:[%s722 + $0x78] sm:$0xf]
      %v754 = vld [vmem:[%s722 + $0x7c] sm:$0xf]
      %v755 = vld [vmem:[%s722 + $0x80] sm:$0xf]
      %v756 = vld [vmem:[%s722 + $0x84] sm:$0xf]
      %v757 = vld [vmem:[%s722 + $0x88] sm:$0xf]
      %v758 = vld [vmem:[%s722 + $0x8c] sm:$0xf]
      %v759 = vld [vmem:[%s722 + $0x90] sm:$0xf]
      %v760 = vld [vmem:[%s722 + $0x94] sm:$0xf]
      %v761 = vld [vmem:[%s722 + $0x98] sm:$0xf]
      %v762 = vld [vmem:[%s722 + $0x9c] sm:$0xf]
      %v763 = vld [vmem:[%s722 + $0xa0] sm:$0xf]
      %v764 = vld [vmem:[%s722 + $0xa4] sm:$0xf]
      %v765 = vld [vmem:[%s722 + $0xa8] sm:$0xf]
      %v766 = vld [vmem:[%s722 + $0xac] sm:$0xf]
      %v767 = vld [vmem:[%s722 + $0xb0] sm:$0xf]
      %v768 = vld [vmem:[%s722 + $0xb4] sm:$0xf]
      %v769 = vld [vmem:[%s722 + $0xb8] sm:$0xf]
      %v770 = vld [vmem:[%s722 + $0xbc] sm:$0xf]
      %v819 = vunpack.c.l.b16 %v723
      %v820 = vunpack.c.l.b16 %v724
      %v821 = vunpack.c.l.b16 %v725
      %v822 = vunpack.c.l.b16 %v726
      %v823 = vunpack.c.l.b16 %v727
      %v824 = vunpack.c.l.b16 %v728
      %v825 = vunpack.c.l.b16 %v729
      %v826 = vunpack.c.l.b16 %v730
      %v827 = vunpack.c.l.b16 %v731
      %v828 = vunpack.c.l.b16 %v732
      %v829 = vunpack.c.l.b16 %v733
      %v830 = vunpack.c.l.b16 %v734
      %v831 = vunpack.c.l.b16 %v735
      %v832 = vunpack.c.l.b16 %v736
      %v833 = vunpack.c.l.b16 %v737
      %v834 = vunpack.c.l.b16 %v738
      %v835 = vunpack.c.l.b16 %v739
      %v836 = vunpack.c.l.b16 %v740
      %v837 = vunpack.c.l.b16 %v741
      %v838 = vunpack.c.l.b16 %v742
      %v839 = vunpack.c.l.b16 %v743
      %v840 = vunpack.c.l.b16 %v744
      %v841 = vunpack.c.l.b16 %v745
      %v842 = vunpack.c.l.b16 %v746
      %v843 = vunpack.c.l.b16 %v747
      %v844 = vunpack.c.l.b16 %v748
      %v845 = vunpack.c.l.b16 %v749
      %v846 = vunpack.c.l.b16 %v750
      %v847 = vunpack.c.l.b16 %v751
      %v848 = vunpack.c.l.b16 %v752
      %v849 = vunpack.c.l.b16 %v753
      %v850 = vunpack.c.l.b16 %v754
      %v851 = vunpack.c.l.b16 %v755
      %v852 = vunpack.c.l.b16 %v756
      %v853 = vunpack.c.l.b16 %v757
      %v854 = vunpack.c.l.b16 %v758
      %v855 = vunpack.c.l.b16 %v759
      %v856 = vunpack.c.l.b16 %v760
      %v857 = vunpack.c.l.b16 %v761
      %v858 = vunpack.c.l.b16 %v762
      %v859 = vunpack.c.l.b16 %v763
      %v860 = vunpack.c.l.b16 %v764
      %v861 = vunpack.c.l.b16 %v765
      %v862 = vunpack.c.l.b16 %v766
      %v863 = vunpack.c.l.b16 %v767
      %v864 = vunpack.c.l.b16 %v768
      %v865 = vunpack.c.l.b16 %v769
      %v866 = vunpack.c.l.b16 %v770
      %v867 = vpack.c.b16 %v820, %v819
      %v868 = vpack.c.b16 %v822, %v821
      %v869 = vpack.c.b16 %v824, %v823
      %v870 = vpack.c.b16 %v826, %v825
      %v871 = vpack.c.b16 %v828, %v827
      %v872 = vpack.c.b16 %v830, %v829
      %v873 = vpack.c.b16 %v832, %v831
      %v874 = vpack.c.b16 %v834, %v833
      %v875 = vpack.c.b16 %v836, %v835
      %v876 = vpack.c.b16 %v838, %v837
      %v877 = vpack.c.b16 %v840, %v839
      %v878 = vpack.c.b16 %v842, %v841
      %v879 = vpack.c.b16 %v844, %v843
      %v880 = vpack.c.b16 %v846, %v845
      %v881 = vpack.c.b16 %v848, %v847
      %v882 = vpack.c.b16 %v850, %v849
      %v883 = vpack.c.b16 %v852, %v851
      %v884 = vpack.c.b16 %v854, %v853
      %v885 = vpack.c.b16 %v856, %v855
      %v886 = vpack.c.b16 %v858, %v857
      %v887 = vpack.c.b16 %v860, %v859
      %v888 = vpack.c.b16 %v862, %v861
      %v889 = vpack.c.b16 %v864, %v863
      %v890 = vpack.c.b16 %v866, %v865
      %915 = vmatpush.bf16.msra.mxu0 %v874
      %916 = vmatpush.bf16.msra.mxu0 %v873
      %917 = vmatpush.bf16.msra.mxu0 %v872
      %918 = vmatpush.bf16.msra.mxu0 %v871
      %919 = vmatpush.bf16.msra.mxu0 %v870
      %920 = vmatpush.bf16.msra.mxu0 %v869
      %921 = vmatpush.bf16.msra.mxu0 %v868
      %922 = vmatpush.bf16.msra.mxu0 %v867
      %923 = vmatmul.bf16.gmra.mxu0 %v318
      %v924 = vpop.f32.mrf.mxu0
      %v925 = vadd.f32 0.0, %v924
      %v926 = vpop.f32.mrf.mxu0
      %v927 = vadd.f32 0.0, %v926
      %928 = vmatmul.bf16.gmra.mxu0 %v319
      %v929 = vpop.f32.mrf.mxu0
      %v930 = vadd.f32 0.0, %v929
      %v931 = vpop.f32.mrf.mxu0
      %v932 = vadd.f32 0.0, %v931
      %933 = vmatmul.bf16.gmra.mxu0 %v320
      %v934 = vpop.f32.mrf.mxu0
      %v935 = vadd.f32 0.0, %v934
      %v936 = vpop.f32.mrf.mxu0
      %v937 = vadd.f32 0.0, %v936
      %938 = vmatmul.bf16.gmra.mxu0 %v321
      %v939 = vpop.f32.mrf.mxu0
      %v940 = vadd.f32 0.0, %v939
      %v941 = vpop.f32.mrf.mxu0
      %v942 = vadd.f32 0.0, %v941
      %943 = vmatmul.bf16.gmra.mxu0 %v322
      %v944 = vpop.f32.mrf.mxu0
      %v945 = vadd.f32 0.0, %v944
      %v946 = vpop.f32.mrf.mxu0
      %v947 = vadd.f32 0.0, %v946
      %948 = vmatmul.bf16.gmra.mxu0 %v323
      %v949 = vpop.f32.mrf.mxu0
      %v950 = vadd.f32 0.0, %v949
      %v951 = vpop.f32.mrf.mxu0
      %v952 = vadd.f32 0.0, %v951
      %953 = vmatmul.bf16.gmra.mxu0 %v324
      %v954 = vpop.f32.mrf.mxu0
      %v955 = vadd.f32 0.0, %v954
      %v956 = vpop.f32.mrf.mxu0
      %v957 = vadd.f32 0.0, %v956
      %958 = vmatmul.bf16.gmra.mxu0 %v325
      %v959 = vpop.f32.mrf.mxu0
      %v960 = vadd.f32 0.0, %v959
      %v961 = vpop.f32.mrf.mxu0
      %v962 = vadd.f32 0.0, %v961
      %963 = vmatmul.bf16.gmra.mxu0 %v326
      %v964 = vpop.f32.mrf.mxu0
      %v965 = vadd.f32 0.0, %v964
      %v966 = vpop.f32.mrf.mxu0
      %v967 = vadd.f32 0.0, %v966
      %968 = vmatmul.bf16.gmra.mxu0 %v327
      %v969 = vpop.f32.mrf.mxu0
      %v970 = vadd.f32 0.0, %v969
      %v971 = vpop.f32.mrf.mxu0
      %v972 = vadd.f32 0.0, %v971
      %973 = vdwg.mxu0
      %974 = vmatpush.bf16.msra.mxu0 %v882
      %975 = vmatpush.bf16.msra.mxu0 %v881
      %976 = vmatpush.bf16.msra.mxu0 %v880
      %977 = vmatpush.bf16.msra.mxu0 %v879
      %978 = vmatpush.bf16.msra.mxu0 %v878
      %979 = vmatpush.bf16.msra.mxu0 %v877
      %980 = vmatpush.bf16.msra.mxu0 %v876
      %981 = vmatpush.bf16.msra.mxu0 %v875
      %982 = vmatmul.bf16.gmra.mxu0 %v319
      %v983 = vpop.f32.mrf.mxu0
      %v984 = vadd.f32 %v925, %v983
      %v985 = vpop.f32.mrf.mxu0
      %v986 = vadd.f32 %v927, %v985
      %987 = vmatmul.bf16.gmra.mxu0 %v320
      %v988 = vpop.f32.mrf.mxu0
      %v989 = vadd.f32 %v930, %v988
      %v990 = vpop.f32.mrf.mxu0
      %v991 = vadd.f32 %v932, %v990
      %992 = vmatmul.bf16.gmra.mxu0 %v321
      %v993 = vpop.f32.mrf.mxu0
      %v994 = vadd.f32 %v935, %v993
      %v995 = vpop.f32.mrf.mxu0
      %v996 = vadd.f32 %v937, %v995
      %997 = vmatmul.bf16.gmra.mxu0 %v322
      %v998 = vpop.f32.mrf.mxu0
      %v999 = vadd.f32 %v940, %v998
      %v1000 = vpop.f32.mrf.mxu0
      %v1001 = vadd.f32 %v942, %v1000
      %1002 = vmatmul.bf16.gmra.mxu0 %v323
      %v1003 = vpop.f32.mrf.mxu0
      %v1004 = vadd.f32 %v945, %v1003
      %v1005 = vpop.f32.mrf.mxu0
      %v1006 = vadd.f32 %v947, %v1005
      %1007 = vmatmul.bf16.gmra.mxu0 %v324
      %v1008 = vpop.f32.mrf.mxu0
      %v1009 = vadd.f32 %v950, %v1008
      %v1010 = vpop.f32.mrf.mxu0
      %v1011 = vadd.f32 %v952, %v1010
      %1012 = vmatmul.bf16.gmra.mxu0 %v325
      %v1013 = vpop.f32.mrf.mxu0
      %v1014 = vadd.f32 %v955, %v1013
      %v1015 = vpop.f32.mrf.mxu0
      %v1016 = vadd.f32 %v957, %v1015
      %1017 = vmatmul.bf16.gmra.mxu0 %v326
      %v1018 = vpop.f32.mrf.mxu0
      %v1019 = vadd.f32 %v960, %v1018
      %v1020 = vpop.f32.mrf.mxu0
      %v1021 = vadd.f32 %v962, %v1020
      %1022 = vmatmul.bf16.gmra.mxu0 %v327
      %v1023 = vpop.f32.mrf.mxu0
      %v1024 = vadd.f32 %v965, %v1023
      %v1025 = vpop.f32.mrf.mxu0
      %v1026 = vadd.f32 %v967, %v1025
      %1027 = vmatmul.bf16.gmra.mxu0 %v342
      %v1028 = vpop.f32.mrf.mxu0
      %v1029 = vadd.f32 %v970, %v1028
      %v1030 = vpop.f32.mrf.mxu0
      %v1031 = vadd.f32 %v972, %v1030
      %1032 = vdwg.mxu0
      %1033 = vmatpush.bf16.msra.mxu0 %v890
      %1034 = vmatpush.bf16.msra.mxu0 %v889
      %1035 = vmatpush.bf16.msra.mxu0 %v888
      %1036 = vmatpush.bf16.msra.mxu0 %v887
      %1037 = vmatpush.bf16.msra.mxu0 %v886
      %1038 = vmatpush.bf16.msra.mxu0 %v885
      %1039 = vmatpush.bf16.msra.mxu0 %v884
      %1040 = vmatpush.bf16.msra.mxu0 %v883
      %1041 = vmatmul.bf16.gmra.mxu0 %v320
      %v1042 = vpop.f32.mrf.mxu0
      %v1043 = vadd.f32 %v984, %v1042
      %v1044 = vpop.f32.mrf.mxu0
      %v1045 = vadd.f32 %v986, %v1044
      %1046 = vmatmul.bf16.gmra.mxu0 %v321
      %v1047 = vpop.f32.mrf.mxu0
      %v1048 = vadd.f32 %v989, %v1047
      %v1049 = vpop.f32.mrf.mxu0
      %v1050 = vadd.f32 %v991, %v1049
      %1051 = vmatmul.bf16.gmra.mxu0 %v322
      %v1052 = vpop.f32.mrf.mxu0
      %v1053 = vadd.f32 %v994, %v1052
      %v1054 = vpop.f32.mrf.mxu0
      %v1055 = vadd.f32 %v996, %v1054
      %1056 = vmatmul.bf16.gmra.mxu0 %v323
      %v1057 = vpop.f32.mrf.mxu0
      %v1058 = vadd.f32 %v999, %v1057
      %v1059 = vpop.f32.mrf.mxu0
      %v1060 = vadd.f32 %v1001, %v1059
      %1061 = vmatmul.bf16.gmra.mxu0 %v324
      %v1062 = vpop.f32.mrf.mxu0
      %v1063 = vadd.f32 %v1004, %v1062
      %v1064 = vpop.f32.mrf.mxu0
      %v1065 = vadd.f32 %v1006, %v1064
      %1066 = vmatmul.bf16.gmra.mxu0 %v325
      %v1067 = vpop.f32.mrf.mxu0
      %v1068 = vadd.f32 %v1009, %v1067
      %v1069 = vpop.f32.mrf.mxu0
      %v1070 = vadd.f32 %v1011, %v1069
      %1071 = vmatmul.bf16.gmra.mxu0 %v326
      %v1072 = vpop.f32.mrf.mxu0
      %v1073 = vadd.f32 %v1014, %v1072
      %v1074 = vpop.f32.mrf.mxu0
      %v1075 = vadd.f32 %v1016, %v1074
      %1076 = vmatmul.bf16.gmra.mxu0 %v327
      %v1077 = vpop.f32.mrf.mxu0
      %v1078 = vadd.f32 %v1019, %v1077
      %v1079 = vpop.f32.mrf.mxu0
      %v1080 = vadd.f32 %v1021, %v1079
      %1081 = vmatmul.bf16.gmra.mxu0 %v342
      %v1082 = vpop.f32.mrf.mxu0
      %v1083 = vadd.f32 %v1024, %v1082
      %v1084 = vpop.f32.mrf.mxu0
      %v1085 = vadd.f32 %v1026, %v1084
      %1086 = vmatmul.bf16.gmra.mxu0 %v348
      %v1087 = vpop.f32.mrf.mxu0
      %v1088 = vadd.f32 %v1029, %v1087
      %v1089 = vpop.f32.mrf.mxu0
      %v1090 = vadd.f32 %v1031, %v1089
      %1091 = vdwg.mxu0
      %s1092 = scalar_lea.vmem %s1, 384
      %v1093 = vld [vmem:[%s1092] sm:$0xf]
      %v1094 = vld [vmem:[%s1092 + $0x4] sm:$0xf]
      %v1095 = vld [vmem:[%s1092 + $0x8] sm:$0xf]
      %v1096 = vld [vmem:[%s1092 + $0xc] sm:$0xf]
      %v1097 = vld [vmem:[%s1092 + $0x10] sm:$0xf]
      %v1098 = vld [vmem:[%s1092 + $0x14] sm:$0xf]
      %v1099 = vld [vmem:[%s1092 + $0x18] sm:$0xf]
      %v1100 = vld [vmem:[%s1092 + $0x1c] sm:$0xf]
      %v1101 = vld [vmem:[%s1092 + $0x20] sm:$0xf]
      %v1102 = vld [vmem:[%s1092 + $0x24] sm:$0xf]
      %v1103 = vld [vmem:[%s1092 + $0x28] sm:$0xf]
      %v1104 = vld [vmem:[%s1092 + $0x2c] sm:$0xf]
      %v1105 = vld [vmem:[%s1092 + $0x30] sm:$0xf]
      %v1106 = vld [vmem:[%s1092 + $0x34] sm:$0xf]
      %v1107 = vld [vmem:[%s1092 + $0x38] sm:$0xf]
      %v1108 = vld [vmem:[%s1092 + $0x3c] sm:$0xf]
      %v1109 = vld [vmem:[%s1092 + $0x40] sm:$0xf]
      %v1110 = vld [vmem:[%s1092 + $0x44] sm:$0xf]
      %v1111 = vld [vmem:[%s1092 + $0x48] sm:$0xf]
      %v1112 = vld [vmem:[%s1092 + $0x4c] sm:$0xf]
      %v1113 = vld [vmem:[%s1092 + $0x50] sm:$0xf]
      %v1114 = vld [vmem:[%s1092 + $0x54] sm:$0xf]
      %v1115 = vld [vmem:[%s1092 + $0x58] sm:$0xf]
      %v1116 = vld [vmem:[%s1092 + $0x5c] sm:$0xf]
      %v1117 = vld [vmem:[%s1092 + $0x60] sm:$0xf]
      %v1118 = vld [vmem:[%s1092 + $0x64] sm:$0xf]
      %v1119 = vld [vmem:[%s1092 + $0x68] sm:$0xf]
      %v1120 = vld [vmem:[%s1092 + $0x6c] sm:$0xf]
      %v1121 = vld [vmem:[%s1092 + $0x70] sm:$0xf]
      %v1122 = vld [vmem:[%s1092 + $0x74] sm:$0xf]
      %v1123 = vld [vmem:[%s1092 + $0x78] sm:$0xf]
      %v1124 = vld [vmem:[%s1092 + $0x7c] sm:$0xf]
      %v1125 = vld [vmem:[%s1092 + $0x80] sm:$0xf]
      %v1126 = vld [vmem:[%s1092 + $0x84] sm:$0xf]
      %v1127 = vld [vmem:[%s1092 + $0x88] sm:$0xf]
      %v1128 = vld [vmem:[%s1092 + $0x8c] sm:$0xf]
      %v1129 = vld [vmem:[%s1092 + $0x90] sm:$0xf]
      %v1130 = vld [vmem:[%s1092 + $0x94] sm:$0xf]
      %v1131 = vld [vmem:[%s1092 + $0x98] sm:$0xf]
      %v1132 = vld [vmem:[%s1092 + $0x9c] sm:$0xf]
      %v1133 = vld [vmem:[%s1092 + $0xa0] sm:$0xf]
      %v1134 = vld [vmem:[%s1092 + $0xa4] sm:$0xf]
      %v1135 = vld [vmem:[%s1092 + $0xa8] sm:$0xf]
      %v1136 = vld [vmem:[%s1092 + $0xac] sm:$0xf]
      %v1137 = vld [vmem:[%s1092 + $0xb0] sm:$0xf]
      %v1138 = vld [vmem:[%s1092 + $0xb4] sm:$0xf]
      %v1139 = vld [vmem:[%s1092 + $0xb8] sm:$0xf]
      %v1140 = vld [vmem:[%s1092 + $0xbc] sm:$0xf]
      %v1189 = vunpack.c.l.b16 %v1093
      %v1190 = vunpack.c.l.b16 %v1094
      %v1191 = vunpack.c.l.b16 %v1095
      %v1192 = vunpack.c.l.b16 %v1096
      %v1193 = vunpack.c.l.b16 %v1097
      %v1194 = vunpack.c.l.b16 %v1098
      %v1195 = vunpack.c.l.b16 %v1099
      %v1196 = vunpack.c.l.b16 %v1100
      %v1197 = vunpack.c.l.b16 %v1101
      %v1198 = vunpack.c.l.b16 %v1102
      %v1199 = vunpack.c.l.b16 %v1103
      %v1200 = vunpack.c.l.b16 %v1104
      %v1201 = vunpack.c.l.b16 %v1105
      %v1202 = vunpack.c.l.b16 %v1106
      %v1203 = vunpack.c.l.b16 %v1107
      %v1204 = vunpack.c.l.b16 %v1108
      %v1205 = vunpack.c.l.b16 %v1109
      %v1206 = vunpack.c.l.b16 %v1110
      %v1207 = vunpack.c.l.b16 %v1111
      %v1208 = vunpack.c.l.b16 %v1112
      %v1209 = vunpack.c.l.b16 %v1113
      %v1210 = vunpack.c.l.b16 %v1114
      %v1211 = vunpack.c.l.b16 %v1115
      %v1212 = vunpack.c.l.b16 %v1116
      %v1213 = vunpack.c.l.b16 %v1117
      %v1214 = vunpack.c.l.b16 %v1118
      %v1215 = vunpack.c.l.b16 %v1119
      %v1216 = vunpack.c.l.b16 %v1120
      %v1217 = vunpack.c.l.b16 %v1121
      %v1218 = vunpack.c.l.b16 %v1122
      %v1219 = vunpack.c.l.b16 %v1123
      %v1220 = vunpack.c.l.b16 %v1124
      %v1221 = vunpack.c.l.b16 %v1125
      %v1222 = vunpack.c.l.b16 %v1126
      %v1223 = vunpack.c.l.b16 %v1127
      %v1224 = vunpack.c.l.b16 %v1128
      %v1225 = vunpack.c.l.b16 %v1129
      %v1226 = vunpack.c.l.b16 %v1130
      %v1227 = vunpack.c.l.b16 %v1131
      %v1228 = vunpack.c.l.b16 %v1132
      %v1229 = vunpack.c.l.b16 %v1133
      %v1230 = vunpack.c.l.b16 %v1134
      %v1231 = vunpack.c.l.b16 %v1135
      %v1232 = vunpack.c.l.b16 %v1136
      %v1233 = vunpack.c.l.b16 %v1137
      %v1234 = vunpack.c.l.b16 %v1138
      %v1235 = vunpack.c.l.b16 %v1139
      %v1236 = vunpack.c.l.b16 %v1140
      %v1237 = vpack.c.b16 %v1190, %v1189
      %v1238 = vpack.c.b16 %v1192, %v1191
      %v1239 = vpack.c.b16 %v1194, %v1193
      %v1240 = vpack.c.b16 %v1196, %v1195
      %v1241 = vpack.c.b16 %v1198, %v1197
      %v1242 = vpack.c.b16 %v1200, %v1199
      %v1243 = vpack.c.b16 %v1202, %v1201
      %v1244 = vpack.c.b16 %v1204, %v1203
      %v1245 = vpack.c.b16 %v1206, %v1205
      %v1246 = vpack.c.b16 %v1208, %v1207
      %v1247 = vpack.c.b16 %v1210, %v1209
      %v1248 = vpack.c.b16 %v1212, %v1211
      %v1249 = vpack.c.b16 %v1214, %v1213
      %v1250 = vpack.c.b16 %v1216, %v1215
      %v1251 = vpack.c.b16 %v1218, %v1217
      %v1252 = vpack.c.b16 %v1220, %v1219
      %v1253 = vpack.c.b16 %v1222, %v1221
      %v1254 = vpack.c.b16 %v1224, %v1223
      %v1255 = vpack.c.b16 %v1226, %v1225
      %v1256 = vpack.c.b16 %v1228, %v1227
      %v1257 = vpack.c.b16 %v1230, %v1229
      %v1258 = vpack.c.b16 %v1232, %v1231
      %v1259 = vpack.c.b16 %v1234, %v1233
      %v1260 = vpack.c.b16 %v1236, %v1235
      %1285 = vmatpush.bf16.msra.mxu0 %v1244
      %1286 = vmatpush.bf16.msra.mxu0 %v1243
      %1287 = vmatpush.bf16.msra.mxu0 %v1242
      %1288 = vmatpush.bf16.msra.mxu0 %v1241
      %1289 = vmatpush.bf16.msra.mxu0 %v1240
      %1290 = vmatpush.bf16.msra.mxu0 %v1239
      %1291 = vmatpush.bf16.msra.mxu0 %v1238
      %1292 = vmatpush.bf16.msra.mxu0 %v1237
      %1293 = vmatmul.bf16.gmra.mxu0 %v318
      %v1294 = vpop.f32.mrf.mxu0
      %v1295 = vadd.f32 0.0, %v1294
      %v1296 = vpop.f32.mrf.mxu0
      %v1297 = vadd.f32 0.0, %v1296
      %1298 = vmatmul.bf16.gmra.mxu0 %v319
      %v1299 = vpop.f32.mrf.mxu0
      %v1300 = vadd.f32 0.0, %v1299
      %v1301 = vpop.f32.mrf.mxu0
      %v1302 = vadd.f32 0.0, %v1301
      %1303 = vmatmul.bf16.gmra.mxu0 %v320
      %v1304 = vpop.f32.mrf.mxu0
      %v1305 = vadd.f32 0.0, %v1304
      %v1306 = vpop.f32.mrf.mxu0
      %v1307 = vadd.f32 0.0, %v1306
      %1308 = vmatmul.bf16.gmra.mxu0 %v321
      %v1309 = vpop.f32.mrf.mxu0
      %v1310 = vadd.f32 0.0, %v1309
      %v1311 = vpop.f32.mrf.mxu0
      %v1312 = vadd.f32 0.0, %v1311
      %1313 = vmatmul.bf16.gmra.mxu0 %v322
      %v1314 = vpop.f32.mrf.mxu0
      %v1315 = vadd.f32 0.0, %v1314
      %v1316 = vpop.f32.mrf.mxu0
      %v1317 = vadd.f32 0.0, %v1316
      %1318 = vmatmul.bf16.gmra.mxu0 %v323
      %v1319 = vpop.f32.mrf.mxu0
      %v1320 = vadd.f32 0.0, %v1319
      %v1321 = vpop.f32.mrf.mxu0
      %v1322 = vadd.f32 0.0, %v1321
      %1323 = vmatmul.bf16.gmra.mxu0 %v324
      %v1324 = vpop.f32.mrf.mxu0
      %v1325 = vadd.f32 0.0, %v1324
      %v1326 = vpop.f32.mrf.mxu0
      %v1327 = vadd.f32 0.0, %v1326
      %1328 = vmatmul.bf16.gmra.mxu0 %v325
      %v1329 = vpop.f32.mrf.mxu0
      %v1330 = vadd.f32 0.0, %v1329
      %v1331 = vpop.f32.mrf.mxu0
      %v1332 = vadd.f32 0.0, %v1331
      %1333 = vmatmul.bf16.gmra.mxu0 %v326
      %v1334 = vpop.f32.mrf.mxu0
      %v1335 = vadd.f32 0.0, %v1334
      %v1336 = vpop.f32.mrf.mxu0
      %v1337 = vadd.f32 0.0, %v1336
      %1338 = vmatmul.bf16.gmra.mxu0 %v327
      %v1339 = vpop.f32.mrf.mxu0
      %v1340 = vadd.f32 0.0, %v1339
      %v1341 = vpop.f32.mrf.mxu0
      %v1342 = vadd.f32 0.0, %v1341
      %1343 = vdwg.mxu0
      %1344 = vmatpush.bf16.msra.mxu0 %v1252
      %1345 = vmatpush.bf16.msra.mxu0 %v1251
      %1346 = vmatpush.bf16.msra.mxu0 %v1250
      %1347 = vmatpush.bf16.msra.mxu0 %v1249
      %1348 = vmatpush.bf16.msra.mxu0 %v1248
      %1349 = vmatpush.bf16.msra.mxu0 %v1247
      %1350 = vmatpush.bf16.msra.mxu0 %v1246
      %1351 = vmatpush.bf16.msra.mxu0 %v1245
      %1352 = vmatmul.bf16.gmra.mxu0 %v319
      %v1353 = vpop.f32.mrf.mxu0
      %v1354 = vadd.f32 %v1295, %v1353
      %v1355 = vpop.f32.mrf.mxu0
      %v1356 = vadd.f32 %v1297, %v1355
      %1357 = vmatmul.bf16.gmra.mxu0 %v320
      %v1358 = vpop.f32.mrf.mxu0
      %v1359 = vadd.f32 %v1300, %v1358
      %v1360 = vpop.f32.mrf.mxu0
      %v1361 = vadd.f32 %v1302, %v1360
      %1362 = vmatmul.bf16.gmra.mxu0 %v321
      %v1363 = vpop.f32.mrf.mxu0
      %v1364 = vadd.f32 %v1305, %v1363
      %v1365 = vpop.f32.mrf.mxu0
      %v1366 = vadd.f32 %v1307, %v1365
      %1367 = vmatmul.bf16.gmra.mxu0 %v322
      %v1368 = vpop.f32.mrf.mxu0
      %v1369 = vadd.f32 %v1310, %v1368
      %v1370 = vpop.f32.mrf.mxu0
      %v1371 = vadd.f32 %v1312, %v1370
      %1372 = vmatmul.bf16.gmra.mxu0 %v323
      %v1373 = vpop.f32.mrf.mxu0
      %v1374 = vadd.f32 %v1315, %v1373
      %v1375 = vpop.f32.mrf.mxu0
      %v1376 = vadd.f32 %v1317, %v1375
      %1377 = vmatmul.bf16.gmra.mxu0 %v324
      %v1378 = vpop.f32.mrf.mxu0
      %v1379 = vadd.f32 %v1320, %v1378
      %v1380 = vpop.f32.mrf.mxu0
      %v1381 = vadd.f32 %v1322, %v1380
      %1382 = vmatmul.bf16.gmra.mxu0 %v325
      %v1383 = vpop.f32.mrf.mxu0
      %v1384 = vadd.f32 %v1325, %v1383
      %v1385 = vpop.f32.mrf.mxu0
      %v1386 = vadd.f32 %v1327, %v1385
      %1387 = vmatmul.bf16.gmra.mxu0 %v326
      %v1388 = vpop.f32.mrf.mxu0
      %v1389 = vadd.f32 %v1330, %v1388
      %v1390 = vpop.f32.mrf.mxu0
      %v1391 = vadd.f32 %v1332, %v1390
      %1392 = vmatmul.bf16.gmra.mxu0 %v327
      %v1393 = vpop.f32.mrf.mxu0
      %v1394 = vadd.f32 %v1335, %v1393
      %v1395 = vpop.f32.mrf.mxu0
      %v1396 = vadd.f32 %v1337, %v1395
      %1397 = vmatmul.bf16.gmra.mxu0 %v342
      %v1398 = vpop.f32.mrf.mxu0
      %v1399 = vadd.f32 %v1340, %v1398
      %v1400 = vpop.f32.mrf.mxu0
      %v1401 = vadd.f32 %v1342, %v1400
      %1402 = vdwg.mxu0
      %1403 = vmatpush.bf16.msra.mxu0 %v1260
      %1404 = vmatpush.bf16.msra.mxu0 %v1259
      %1405 = vmatpush.bf16.msra.mxu0 %v1258
      %1406 = vmatpush.bf16.msra.mxu0 %v1257
      %1407 = vmatpush.bf16.msra.mxu0 %v1256
      %1408 = vmatpush.bf16.msra.mxu0 %v1255
      %1409 = vmatpush.bf16.msra.mxu0 %v1254
      %1410 = vmatpush.bf16.msra.mxu0 %v1253
      %1411 = vmatmul.bf16.gmra.mxu0 %v320
      %v1412 = vpop.f32.mrf.mxu0
      %v1413 = vadd.f32 %v1354, %v1412
      %v1414 = vpop.f32.mrf.mxu0
      %v1415 = vadd.f32 %v1356, %v1414
      %1416 = vmatmul.bf16.gmra.mxu0 %v321
      %v1417 = vpop.f32.mrf.mxu0
      %v1418 = vadd.f32 %v1359, %v1417
      %v1419 = vpop.f32.mrf.mxu0
      %v1420 = vadd.f32 %v1361, %v1419
      %1421 = vmatmul.bf16.gmra.mxu0 %v322
      %v1422 = vpop.f32.mrf.mxu0
      %v1423 = vadd.f32 %v1364, %v1422
      %v1424 = vpop.f32.mrf.mxu0
      %v1425 = vadd.f32 %v1366, %v1424
      %1426 = vmatmul.bf16.gmra.mxu0 %v323
      %v1427 = vpop.f32.mrf.mxu0
      %v1428 = vadd.f32 %v1369, %v1427
      %v1429 = vpop.f32.mrf.mxu0
      %v1430 = vadd.f32 %v1371, %v1429
      %1431 = vmatmul.bf16.gmra.mxu0 %v324
      %v1432 = vpop.f32.mrf.mxu0
      %v1433 = vadd.f32 %v1374, %v1432
      %v1434 = vpop.f32.mrf.mxu0
      %v1435 = vadd.f32 %v1376, %v1434
      %1436 = vmatmul.bf16.gmra.mxu0 %v325
      %v1437 = vpop.f32.mrf.mxu0
      %v1438 = vadd.f32 %v1379, %v1437
      %v1439 = vpop.f32.mrf.mxu0
      %v1440 = vadd.f32 %v1381, %v1439
      %1441 = vmatmul.bf16.gmra.mxu0 %v326
      %v1442 = vpop.f32.mrf.mxu0
      %v1443 = vadd.f32 %v1384, %v1442
      %v1444 = vpop.f32.mrf.mxu0
      %v1445 = vadd.f32 %v1386, %v1444
      %1446 = vmatmul.bf16.gmra.mxu0 %v327
      %v1447 = vpop.f32.mrf.mxu0
      %v1448 = vadd.f32 %v1389, %v1447
      %v1449 = vpop.f32.mrf.mxu0
      %v1450 = vadd.f32 %v1391, %v1449
      %1451 = vmatmul.bf16.gmra.mxu0 %v342
      %v1452 = vpop.f32.mrf.mxu0
      %v1453 = vadd.f32 %v1394, %v1452
      %v1454 = vpop.f32.mrf.mxu0
      %v1455 = vadd.f32 %v1396, %v1454
      %1456 = vmatmul.bf16.gmra.mxu0 %v348
      %v1457 = vpop.f32.mrf.mxu0
      %v1458 = vadd.f32 %v1399, %v1457
      %v1459 = vpop.f32.mrf.mxu0
      %v1460 = vadd.f32 %v1401, %v1459
      %1461 = vdwg.mxu0
      %vm1462 = vcmp.eq.s32.totalorder %v351, 0
      %vm1463 = vcmp.eq.s32.totalorder %v352, 0
      %v1464 = vrot.slane %v673, 7
      %v1465 = vrot.slane %v678, 7
      %v1466 = vrot.slane %v683, 7
      %v1467 = vrot.slane %v688, 7
      %v1468 = vrot.slane %v693, 7
      %v1469 = vrot.slane %v698, 7
      %v1470 = vrot.slane %v703, 7
      %v1471 = vrot.slane %v708, 7
      %v1472 = vrot.slane %v713, 7
      %v1473 = vrot.slane %v718, 7
      %v1474 = vrot.slane %v675, 7
      %v1475 = vrot.slane %v680, 7
      %v1476 = vrot.slane %v685, 7
      %v1477 = vrot.slane %v690, 7
      %v1478 = vrot.slane %v695, 7
      %v1479 = vrot.slane %v700, 7
      %v1480 = vrot.slane %v705, 7
      %v1481 = vrot.slane %v710, 7
      %v1482 = vrot.slane %v715, 7
      %v1483 = vrot.slane %v720, 7
      %vm1484 = vcmp.lt.s32.totalorder %v351, 1
      %v1485 = vsel %vm1484, %v1464, %v1474
      %v1486 = vsel %vm1484, %v1465, %v1475
      %v1487 = vsel %vm1484, %v1466, %v1476
      %v1488 = vsel %vm1484, %v1467, %v1477
      %v1489 = vsel %vm1484, %v1468, %v1478
      %v1490 = vsel %vm1484, %v1469, %v1479
      %v1491 = vsel %vm1484, %v1470, %v1480
      %v1492 = vsel %vm1484, %v1471, %v1481
      %v1493 = vsel %vm1484, %v1472, %v1482
      %v1494 = vsel %vm1484, %v1473, %v1483
      %v1495 = vsel %vm1484, %v1474, %v1464
      %v1496 = vsel %vm1484, %v1475, %v1465
      %v1497 = vsel %vm1484, %v1476, %v1466
      %v1498 = vsel %vm1484, %v1477, %v1467
      %v1499 = vsel %vm1484, %v1478, %v1468
      %v1500 = vsel %vm1484, %v1479, %v1469
      %v1501 = vsel %vm1484, %v1480, %v1470
      %v1502 = vsel %vm1484, %v1481, %v1471
      %v1503 = vsel %vm1484, %v1482, %v1472
      %v1504 = vsel %vm1484, %v1483, %v1473
      %v1505 = vsel %vm1462, 1, 0
      %v1506 = vsel %vm1463, 1, 0
      %vm1507 = vcmp.eq.s32.totalorder %v1505, 1
      %vm1508 = vcmp.eq.s32.totalorder %v1506, 1
      %v1509 = vsel %vm1507, 0.0, %v1495
      %v1510 = vsel %vm1508, 0.0, %v1485
      %v1511 = vsel %vm1507, 0.0, %v1496
      %v1512 = vsel %vm1508, 0.0, %v1486
      %v1513 = vsel %vm1507, 0.0, %v1497
      %v1514 = vsel %vm1508, 0.0, %v1487
      %v1515 = vsel %vm1507, 0.0, %v1498
      %v1516 = vsel %vm1508, 0.0, %v1488
      %v1517 = vsel %vm1507, 0.0, %v1499
      %v1518 = vsel %vm1508, 0.0, %v1489
      %v1519 = vsel %vm1507, 0.0, %v1500
      %v1520 = vsel %vm1508, 0.0, %v1490
      %v1521 = vsel %vm1507, 0.0, %v1501
      %v1522 = vsel %vm1508, 0.0, %v1491
      %v1523 = vsel %vm1507, 0.0, %v1502
      %v1524 = vsel %vm1508, 0.0, %v1492
      %v1525 = vsel %vm1507, 0.0, %v1503
      %v1526 = vsel %vm1508, 0.0, %v1493
      %v1527 = vsel %vm1507, 0.0, %v1504
      %v1528 = vsel %vm1508, 0.0, %v1494
      %vm1529 = vcmp.eq.s32.totalorder %v351, 15
      %vm1530 = vcmp.eq.s32.totalorder %v352, 15
      %v1531 = vrot.slane %v1413, 1
      %v1532 = vrot.slane %v1418, 1
      %v1533 = vrot.slane %v1423, 1
      %v1534 = vrot.slane %v1428, 1
      %v1535 = vrot.slane %v1433, 1
      %v1536 = vrot.slane %v1438, 1
      %v1537 = vrot.slane %v1443, 1
      %v1538 = vrot.slane %v1448, 1
      %v1539 = vrot.slane %v1453, 1
      %v1540 = vrot.slane %v1458, 1
      %v1541 = vrot.slane %v1415, 1
      %v1542 = vrot.slane %v1420, 1
      %v1543 = vrot.slane %v1425, 1
      %v1544 = vrot.slane %v1430, 1
      %v1545 = vrot.slane %v1435, 1
      %v1546 = vrot.slane %v1440, 1
      %v1547 = vrot.slane %v1445, 1
      %v1548 = vrot.slane %v1450, 1
      %v1549 = vrot.slane %v1455, 1
      %v1550 = vrot.slane %v1460, 1
      %vm1551 = vcmp.lt.s32.totalorder %v351, 7
      %v1552 = vsel %vm1551, %v1531, %v1541
      %v1553 = vsel %vm1551, %v1532, %v1542
      %v1554 = vsel %vm1551, %v1533, %v1543
      %v1555 = vsel %vm1551, %v1534, %v1544
      %v1556 = vsel %vm1551, %v1535, %v1545
      %v1557 = vsel %vm1551, %v1536, %v1546
      %v1558 = vsel %vm1551, %v1537, %v1547
      %v1559 = vsel %vm1551, %v1538, %v1548
      %v1560 = vsel %vm1551, %v1539, %v1549
      %v1561 = vsel %vm1551, %v1540, %v1550
      %v1562 = vsel %vm1551, %v1541, %v1531
      %v1563 = vsel %vm1551, %v1542, %v1532
      %v1564 = vsel %vm1551, %v1543, %v1533
      %v1565 = vsel %vm1551, %v1544, %v1534
      %v1566 = vsel %vm1551, %v1545, %v1535
      %v1567 = vsel %vm1551, %v1546, %v1536
      %v1568 = vsel %vm1551, %v1547, %v1537
      %v1569 = vsel %vm1551, %v1548, %v1538
      %v1570 = vsel %vm1551, %v1549, %v1539
      %v1571 = vsel %vm1551, %v1550, %v1540
      %v1572 = vsel %vm1529, 1, 0
      %v1573 = vsel %vm1530, 1, 0
      %vm1574 = vcmp.eq.s32.totalorder %v1572, 1
      %vm1575 = vcmp.eq.s32.totalorder %v1573, 1
      %v1576 = vsel %vm1574, 0.0, %v1552
      %v1577 = vsel %vm1575, 0.0, %v1562
      %v1578 = vsel %vm1574, 0.0, %v1553
      %v1579 = vsel %vm1575, 0.0, %v1563
      %v1580 = vsel %vm1574, 0.0, %v1554
      %v1581 = vsel %vm1575, 0.0, %v1564
      %v1582 = vsel %vm1574, 0.0, %v1555
      %v1583 = vsel %vm1575, 0.0, %v1565
      %v1584 = vsel %vm1574, 0.0, %v1556
      %v1585 = vsel %vm1575, 0.0, %v1566
      %v1586 = vsel %vm1574, 0.0, %v1557
      %v1587 = vsel %vm1575, 0.0, %v1567
      %v1588 = vsel %vm1574, 0.0, %v1558
      %v1589 = vsel %vm1575, 0.0, %v1568
      %v1590 = vsel %vm1574, 0.0, %v1559
      %v1591 = vsel %vm1575, 0.0, %v1569
      %v1592 = vsel %vm1574, 0.0, %v1560
      %v1593 = vsel %vm1575, 0.0, %v1570
      %v1594 = vsel %vm1574, 0.0, %v1561
      %v1595 = vsel %vm1575, 0.0, %v1571
      %v1596 = vadd.f32 %v1509, %v1043
      %v1597 = vadd.f32 %v1510, %v1045
      %v1598 = vadd.f32 %v1511, %v1048
      %v1599 = vadd.f32 %v1512, %v1050
      %v1600 = vadd.f32 %v1513, %v1053
      %v1601 = vadd.f32 %v1514, %v1055
      %v1602 = vadd.f32 %v1515, %v1058
      %v1603 = vadd.f32 %v1516, %v1060
      %v1604 = vadd.f32 %v1517, %v1063
      %v1605 = vadd.f32 %v1518, %v1065
      %v1606 = vadd.f32 %v1519, %v1068
      %v1607 = vadd.f32 %v1520, %v1070
      %v1608 = vadd.f32 %v1521, %v1073
      %v1609 = vadd.f32 %v1522, %v1075
      %v1610 = vadd.f32 %v1523, %v1078
      %v1611 = vadd.f32 %v1524, %v1080
      %v1612 = vadd.f32 %v1525, %v1083
      %v1613 = vadd.f32 %v1526, %v1085
      %v1614 = vadd.f32 %v1527, %v1088
      %v1615 = vadd.f32 %v1528, %v1090
      %v1616 = vadd.f32 %v1596, %v1576
      %v1617 = vadd.f32 %v1597, %v1577
      %v1618 = vadd.f32 %v1598, %v1578
      %v1619 = vadd.f32 %v1599, %v1579
      %v1620 = vadd.f32 %v1600, %v1580
      %v1621 = vadd.f32 %v1601, %v1581
      %v1622 = vadd.f32 %v1602, %v1582
      %v1623 = vadd.f32 %v1603, %v1583
      %v1624 = vadd.f32 %v1604, %v1584
      %v1625 = vadd.f32 %v1605, %v1585
      %v1626 = vadd.f32 %v1606, %v1586
      %v1627 = vadd.f32 %v1607, %v1587
      %v1628 = vadd.f32 %v1608, %v1588
      %v1629 = vadd.f32 %v1609, %v1589
      %v1630 = vadd.f32 %v1610, %v1590
      %v1631 = vadd.f32 %v1611, %v1591
      %v1632 = vadd.f32 %v1612, %v1592
      %v1633 = vadd.f32 %v1613, %v1593
      %v1634 = vadd.f32 %v1614, %v1594
      %v1635 = vadd.f32 %v1615, %v1595
      %v1636 = vld [vmem:[%s3] sm:$0x1]
      %v1638 = vperm.slane %v1636, 0
      %v1640 = vadd.f32 %v1616, %v1638
      %v1641 = vadd.f32 %v1617, %v1638
      %v1642 = vadd.f32 %v1618, %v1638
      %v1643 = vadd.f32 %v1619, %v1638
      %v1644 = vadd.f32 %v1620, %v1638
      %v1645 = vadd.f32 %v1621, %v1638
      %v1646 = vadd.f32 %v1622, %v1638
      %v1647 = vadd.f32 %v1623, %v1638
      %v1648 = vadd.f32 %v1624, %v1638
      %v1649 = vadd.f32 %v1625, %v1638
      %v1650 = vadd.f32 %v1626, %v1638
      %v1651 = vadd.f32 %v1627, %v1638
      %v1652 = vadd.f32 %v1628, %v1638
      %v1653 = vadd.f32 %v1629, %v1638
      %v1654 = vadd.f32 %v1630, %v1638
      %v1655 = vadd.f32 %v1631, %v1638
      %v1656 = vadd.f32 %v1632, %v1638
      %v1657 = vadd.f32 %v1633, %v1638
      %v1658 = vadd.f32 %v1634, %v1638
      %v1659 = vadd.f32 %v1635, %v1638
      %v1660 = vmax.f32 %v1640, 0.0
      %v1661 = vmax.f32 %v1641, 0.0
      %v1662 = vmax.f32 %v1642, 0.0
      %v1663 = vmax.f32 %v1643, 0.0
      %v1664 = vmax.f32 %v1644, 0.0
      %v1665 = vmax.f32 %v1645, 0.0
      %v1666 = vmax.f32 %v1646, 0.0
      %v1667 = vmax.f32 %v1647, 0.0
      %v1668 = vmax.f32 %v1648, 0.0
      %v1669 = vmax.f32 %v1649, 0.0
      %v1670 = vmax.f32 %v1650, 0.0
      %v1671 = vmax.f32 %v1651, 0.0
      %v1672 = vmax.f32 %v1652, 0.0
      %v1673 = vmax.f32 %v1653, 0.0
      %v1674 = vmax.f32 %v1654, 0.0
      %v1675 = vmax.f32 %v1655, 0.0
      %v1676 = vmax.f32 %v1656, 0.0
      %v1677 = vmax.f32 %v1657, 0.0
      %v1678 = vmax.f32 %v1658, 0.0
      %v1679 = vmax.f32 %v1659, 0.0
      %s1680 = ssub.s32 %s250, 1
      %v1681 = vstv %s1680
      %v1682 = vadd.s32 %v1681, 1
      %v1683 = vadd.s32 %v1681, 2
      %v1684 = vadd.s32 %v1681, 3
      %v1685 = vadd.s32 %v1681, 4
      %v1686 = vadd.s32 %v1681, 5
      %v1687 = vadd.s32 %v1681, 6
      %v1688 = vadd.s32 %v1681, 7
      %v1689 = vadd.s32 %v1681, 8
      %v1690 = vadd.s32 %v1681, 9
      %vm1691 = vcmp.ge.s32.totalorder %v1681, 0
      %vm1692 = vcmp.ge.s32.totalorder %v1682, 0
      %vm1693 = vcmp.ge.s32.totalorder %v1683, 0
      %vm1694 = vcmp.ge.s32.totalorder %v1684, 0
      %vm1695 = vcmp.ge.s32.totalorder %v1685, 0
      %vm1696 = vcmp.ge.s32.totalorder %v1686, 0
      %vm1697 = vcmp.ge.s32.totalorder %v1687, 0
      %vm1698 = vcmp.ge.s32.totalorder %v1688, 0
      %vm1699 = vcmp.ge.s32.totalorder %v1689, 0
      %vm1700 = vcmp.ge.s32.totalorder %v1690, 0
      %vm1701 = vcmp.lt.s32.totalorder %v1681, 16
      %vm1702 = vcmp.lt.s32.totalorder %v1682, 16
      %vm1703 = vcmp.lt.s32.totalorder %v1683, 16
      %vm1704 = vcmp.lt.s32.totalorder %v1684, 16
      %vm1705 = vcmp.lt.s32.totalorder %v1685, 16
      %vm1706 = vcmp.lt.s32.totalorder %v1686, 16
      %vm1707 = vcmp.lt.s32.totalorder %v1687, 16
      %vm1708 = vcmp.lt.s32.totalorder %v1688, 16
      %vm1709 = vcmp.lt.s32.totalorder %v1689, 16
      %vm1710 = vcmp.lt.s32.totalorder %v1690, 16
      %vm1711 = vmand %vm1691, %vm1701
      %vm1712 = vmand %vm1692, %vm1702
      %vm1713 = vmand %vm1693, %vm1703
      %vm1714 = vmand %vm1694, %vm1704
      %vm1715 = vmand %vm1695, %vm1705
      %vm1716 = vmand %vm1696, %vm1706
      %vm1717 = vmand %vm1697, %vm1707
      %vm1718 = vmand %vm1698, %vm1708
      %vm1719 = vmand %vm1699, %vm1709
      %vm1720 = vmand %vm1700, %vm1710
      %v1721 = vsel %vm1711, 1, 0
      %v1722 = vsel %vm1712, 1, 0
      %v1723 = vsel %vm1713, 1, 0
      %v1724 = vsel %vm1714, 1, 0
      %v1725 = vsel %vm1715, 1, 0
      %v1726 = vsel %vm1716, 1, 0
      %v1727 = vsel %vm1717, 1, 0
      %v1728 = vsel %vm1718, 1, 0
      %v1729 = vsel %vm1719, 1, 0
      %v1730 = vsel %vm1720, 1, 0
      %vm1731 = vcmp.eq.s32.totalorder %v1721, 1
      %vm1732 = vcmp.eq.s32.totalorder %v1722, 1
      %vm1733 = vcmp.eq.s32.totalorder %v1723, 1
      %vm1734 = vcmp.eq.s32.totalorder %v1724, 1
      %vm1735 = vcmp.eq.s32.totalorder %v1725, 1
      %vm1736 = vcmp.eq.s32.totalorder %v1726, 1
      %vm1737 = vcmp.eq.s32.totalorder %v1727, 1
      %vm1738 = vcmp.eq.s32.totalorder %v1728, 1
      %vm1739 = vcmp.eq.s32.totalorder %v1729, 1
      %vm1740 = vcmp.eq.s32.totalorder %v1730, 1
      %v1741 = vsel %vm1731, %v1660, 0.0
      %v1742 = vsel %vm1731, %v1661, 0.0
      %v1743 = vsel %vm1732, %v1662, 0.0
      %v1744 = vsel %vm1732, %v1663, 0.0
      %v1745 = vsel %vm1733, %v1664, 0.0
      %v1746 = vsel %vm1733, %v1665, 0.0
      %v1747 = vsel %vm1734, %v1666, 0.0
      %v1748 = vsel %vm1734, %v1667, 0.0
      %v1749 = vsel %vm1735, %v1668, 0.0
      %v1750 = vsel %vm1735, %v1669, 0.0
      %v1751 = vsel %vm1736, %v1670, 0.0
      %v1752 = vsel %vm1736, %v1671, 0.0
      %v1753 = vsel %vm1737, %v1672, 0.0
      %v1754 = vsel %vm1737, %v1673, 0.0
      %v1755 = vsel %vm1738, %v1674, 0.0
      %v1756 = vsel %vm1738, %v1675, 0.0
      %v1757 = vsel %vm1739, %v1676, 0.0
      %v1758 = vsel %vm1739, %v1677, 0.0
      %v1759 = vsel %vm1740, %v1678, 0.0
      %v1760 = vsel %vm1740, %v1679, 0.0
      %v1761 = vpack.c.bf16 %v1741, %v1741
      %v1762 = vpack.c.bf16 %v1742, %v1742
      %v1763 = vpack.c.bf16 %v1743, %v1743
      %v1764 = vpack.c.bf16 %v1744, %v1744
      %v1765 = vpack.c.bf16 %v1745, %v1745
      %v1766 = vpack.c.bf16 %v1746, %v1746
      %v1767 = vpack.c.bf16 %v1747, %v1747
      %v1768 = vpack.c.bf16 %v1748, %v1748
      %v1769 = vpack.c.bf16 %v1749, %v1749
      %v1770 = vpack.c.bf16 %v1750, %v1750
      %v1771 = vpack.c.bf16 %v1751, %v1751
      %v1772 = vpack.c.bf16 %v1752, %v1752
      %v1773 = vpack.c.bf16 %v1753, %v1753
      %v1774 = vpack.c.bf16 %v1754, %v1754
      %v1775 = vpack.c.bf16 %v1755, %v1755
      %v1776 = vpack.c.bf16 %v1756, %v1756
      %v1777 = vpack.c.bf16 %v1757, %v1757
      %v1778 = vpack.c.bf16 %v1758, %v1758
      %v1779 = vpack.c.bf16 %v1759, %v1759
      %v1780 = vpack.c.bf16 %v1760, %v1760
      %v1797 = vunpack.c.l.b16 %v1761
      %v1798 = vunpack.c.l.b16 %v1762
      %v1799 = vunpack.c.l.b16 %v1763
      %v1800 = vunpack.c.l.b16 %v1764
      %v1801 = vunpack.c.l.b16 %v1765
      %v1802 = vunpack.c.l.b16 %v1766
      %v1803 = vunpack.c.l.b16 %v1767
      %v1804 = vunpack.c.l.b16 %v1768
      %v1805 = vunpack.c.l.b16 %v1769
      %v1806 = vunpack.c.l.b16 %v1770
      %v1807 = vunpack.c.l.b16 %v1771
      %v1808 = vunpack.c.l.b16 %v1772
      %v1809 = vunpack.c.l.b16 %v1773
      %v1810 = vunpack.c.l.b16 %v1774
      %v1811 = vunpack.c.l.b16 %v1775
      %v1812 = vunpack.c.l.b16 %v1776
      %v1813 = vpack.c.b16 %v1798, %v1797
      %v1814 = vpack.c.b16 %v1800, %v1799
      %v1815 = vpack.c.b16 %v1802, %v1801
      %v1816 = vpack.c.b16 %v1804, %v1803
      %v1817 = vpack.c.b16 %v1806, %v1805
      %v1818 = vpack.c.b16 %v1808, %v1807
      %v1819 = vpack.c.b16 %v1810, %v1809
      %v1820 = vpack.c.b16 %v1812, %v1811
      %v1831 = vunpack.c.l.b16 %v1777
      %v1832 = vunpack.c.l.b16 %v1778
      %v1833 = vpack.c.b16 %v1832, %v1831
      %v1837 = vunpack.c.l.b16 %v1779
      %v1838 = vunpack.c.l.b16 %v1780
      %v1839 = vpack.c.b16 %v1838, %v1837
      %v1841 = vld [vmem:[%s2] sm:$0xf]
      %v1842 = vld [vmem:[%s2 + $0x4] sm:$0xf]
      %v1843 = vld [vmem:[%s2 + $0x8] sm:$0xf]
      %v1844 = vld [vmem:[%s2 + $0xc] sm:$0xf]
      %v1845 = vld [vmem:[%s2 + $0x10] sm:$0xf]
      %v1846 = vld [vmem:[%s2 + $0x14] sm:$0xf]
      %v1847 = vld [vmem:[%s2 + $0x18] sm:$0xf]
      %v1848 = vld [vmem:[%s2 + $0x1c] sm:$0xf]
      %v1849 = vld [vmem:[%s2 + $0x20] sm:$0xf]
      %v1850 = vld [vmem:[%s2 + $0x24] sm:$0xf]
      %v1851 = vld [vmem:[%s2 + $0x28] sm:$0xf]
      %v1852 = vld [vmem:[%s2 + $0x2c] sm:$0xf]
      %v1853 = vld [vmem:[%s2 + $0x30] sm:$0xf]
      %v1854 = vld [vmem:[%s2 + $0x34] sm:$0xf]
      %v1855 = vld [vmem:[%s2 + $0x38] sm:$0xf]
      %v1856 = vld [vmem:[%s2 + $0x3c] sm:$0xf]
      %v1857 = vld [vmem:[%s2 + $0x40] sm:$0xf]
      %v1858 = vld [vmem:[%s2 + $0x44] sm:$0xf]
      %v1859 = vld [vmem:[%s2 + $0x48] sm:$0xf]
      %v1860 = vld [vmem:[%s2 + $0x4c] sm:$0xf]
      %v1861 = vld [vmem:[%s2 + $0x50] sm:$0xf]
      %v1862 = vld [vmem:[%s2 + $0x54] sm:$0xf]
      %v1863 = vld [vmem:[%s2 + $0x58] sm:$0xf]
      %v1864 = vld [vmem:[%s2 + $0x5c] sm:$0xf]
      %v1865 = vld [vmem:[%s2 + $0x60] sm:$0xf]
      %v1866 = vld [vmem:[%s2 + $0x64] sm:$0xf]
      %v1867 = vld [vmem:[%s2 + $0x68] sm:$0xf]
      %v1868 = vld [vmem:[%s2 + $0x6c] sm:$0xf]
      %v1869 = vld [vmem:[%s2 + $0x70] sm:$0xf]
      %v1870 = vld [vmem:[%s2 + $0x74] sm:$0xf]
      %v1871 = vld [vmem:[%s2 + $0x78] sm:$0xf]
      %v1872 = vld [vmem:[%s2 + $0x7c] sm:$0xf]
      %v1873 = vld [vmem:[%s2 + $0x80] sm:$0xf]
      %v1874 = vld [vmem:[%s2 + $0x84] sm:$0xf]
      %v1875 = vld [vmem:[%s2 + $0x88] sm:$0xf]
      %v1876 = vld [vmem:[%s2 + $0x8c] sm:$0xf]
      %v1877 = vld [vmem:[%s2 + $0x90] sm:$0xf]
      %v1878 = vld [vmem:[%s2 + $0x94] sm:$0xf]
      %v1879 = vld [vmem:[%s2 + $0x98] sm:$0xf]
      %v1880 = vld [vmem:[%s2 + $0x9c] sm:$0xf]
      %v1881 = vld [vmem:[%s2 + $0xa0] sm:$0xf]
      %v1882 = vld [vmem:[%s2 + $0xa4] sm:$0xf]
      %v1883 = vld [vmem:[%s2 + $0xa8] sm:$0xf]
      %v1884 = vld [vmem:[%s2 + $0xac] sm:$0xf]
      %v1885 = vld [vmem:[%s2 + $0xb0] sm:$0xf]
      %v1886 = vld [vmem:[%s2 + $0xb4] sm:$0xf]
      %v1887 = vld [vmem:[%s2 + $0xb8] sm:$0xf]
      %v1888 = vld [vmem:[%s2 + $0xbc] sm:$0xf]
      %v1937 = vunpack.c.l.b16 %v1841
      %v1938 = vunpack.c.l.b16 %v1842
      %v1939 = vunpack.c.l.b16 %v1843
      %v1940 = vunpack.c.l.b16 %v1844
      %v1941 = vunpack.c.l.b16 %v1845
      %v1942 = vunpack.c.l.b16 %v1846
      %v1943 = vunpack.c.l.b16 %v1847
      %v1944 = vunpack.c.l.b16 %v1848
      %v1945 = vunpack.c.l.b16 %v1849
      %v1946 = vunpack.c.l.b16 %v1850
      %v1947 = vunpack.c.l.b16 %v1851
      %v1948 = vunpack.c.l.b16 %v1852
      %v1949 = vunpack.c.l.b16 %v1853
      %v1950 = vunpack.c.l.b16 %v1854
      %v1951 = vunpack.c.l.b16 %v1855
      %v1952 = vunpack.c.l.b16 %v1856
      %v1953 = vunpack.c.l.b16 %v1857
      %v1954 = vunpack.c.l.b16 %v1858
      %v1955 = vunpack.c.l.b16 %v1859
      %v1956 = vunpack.c.l.b16 %v1860
      %v1957 = vunpack.c.l.b16 %v1861
      %v1958 = vunpack.c.l.b16 %v1862
      %v1959 = vunpack.c.l.b16 %v1863
      %v1960 = vunpack.c.l.b16 %v1864
      %v1961 = vunpack.c.l.b16 %v1865
      %v1962 = vunpack.c.l.b16 %v1866
      %v1963 = vunpack.c.l.b16 %v1867
      %v1964 = vunpack.c.l.b16 %v1868
      %v1965 = vunpack.c.l.b16 %v1869
      %v1966 = vunpack.c.l.b16 %v1870
      %v1967 = vunpack.c.l.b16 %v1871
      %v1968 = vunpack.c.l.b16 %v1872
      %v1969 = vunpack.c.l.b16 %v1873
      %v1970 = vunpack.c.l.b16 %v1874
      %v1971 = vunpack.c.l.b16 %v1875
      %v1972 = vunpack.c.l.b16 %v1876
      %v1973 = vunpack.c.l.b16 %v1877
      %v1974 = vunpack.c.l.b16 %v1878
      %v1975 = vunpack.c.l.b16 %v1879
      %v1976 = vunpack.c.l.b16 %v1880
      %v1977 = vunpack.c.l.b16 %v1881
      %v1978 = vunpack.c.l.b16 %v1882
      %v1979 = vunpack.c.l.b16 %v1883
      %v1980 = vunpack.c.l.b16 %v1884
      %v1981 = vunpack.c.l.b16 %v1885
      %v1982 = vunpack.c.l.b16 %v1886
      %v1983 = vunpack.c.l.b16 %v1887
      %v1984 = vunpack.c.l.b16 %v1888
      %v1985 = vpack.c.b16 %v1938, %v1937
      %v1986 = vpack.c.b16 %v1940, %v1939
      %v1987 = vpack.c.b16 %v1942, %v1941
      %v1988 = vpack.c.b16 %v1944, %v1943
      %v1989 = vpack.c.b16 %v1946, %v1945
      %v1990 = vpack.c.b16 %v1948, %v1947
      %v1991 = vpack.c.b16 %v1950, %v1949
      %v1992 = vpack.c.b16 %v1952, %v1951
      %v1993 = vpack.c.b16 %v1954, %v1953
      %v1994 = vpack.c.b16 %v1956, %v1955
      %v1995 = vpack.c.b16 %v1958, %v1957
      %v1996 = vpack.c.b16 %v1960, %v1959
      %v1997 = vpack.c.b16 %v1962, %v1961
      %v1998 = vpack.c.b16 %v1964, %v1963
      %v1999 = vpack.c.b16 %v1966, %v1965
      %v2000 = vpack.c.b16 %v1968, %v1967
      %v2001 = vpack.c.b16 %v1970, %v1969
      %v2002 = vpack.c.b16 %v1972, %v1971
      %v2003 = vpack.c.b16 %v1974, %v1973
      %v2004 = vpack.c.b16 %v1976, %v1975
      %v2005 = vpack.c.b16 %v1978, %v1977
      %v2006 = vpack.c.b16 %v1980, %v1979
      %v2007 = vpack.c.b16 %v1982, %v1981
      %v2008 = vpack.c.b16 %v1984, %v1983
      %2033 = vmatpush.bf16.msra.mxu0 %v1992
      %2034 = vmatpush.bf16.msra.mxu0 %v1991
      %2035 = vmatpush.bf16.msra.mxu0 %v1990
      %2036 = vmatpush.bf16.msra.mxu0 %v1989
      %2037 = vmatpush.bf16.msra.mxu0 %v1988
      %2038 = vmatpush.bf16.msra.mxu0 %v1987
      %2039 = vmatpush.bf16.msra.mxu0 %v1986
      %2040 = vmatpush.bf16.msra.mxu0 %v1985
      %2041 = vmatmul.bf16.gmra.mxu0 %v1813
      %v2042 = vpop.f32.mrf.mxu0
      %v2043 = vadd.f32 0.0, %v2042
      %v2044 = vpop.f32.mrf.mxu0
      %v2045 = vadd.f32 0.0, %v2044
      %2046 = vmatmul.bf16.gmra.mxu0 %v1814
      %v2047 = vpop.f32.mrf.mxu0
      %v2048 = vadd.f32 0.0, %v2047
      %v2049 = vpop.f32.mrf.mxu0
      %v2050 = vadd.f32 0.0, %v2049
      %2051 = vmatmul.bf16.gmra.mxu0 %v1815
      %v2052 = vpop.f32.mrf.mxu0
      %v2053 = vadd.f32 0.0, %v2052
      %v2054 = vpop.f32.mrf.mxu0
      %v2055 = vadd.f32 0.0, %v2054
      %2056 = vmatmul.bf16.gmra.mxu0 %v1816
      %v2057 = vpop.f32.mrf.mxu0
      %v2058 = vadd.f32 0.0, %v2057
      %v2059 = vpop.f32.mrf.mxu0
      %v2060 = vadd.f32 0.0, %v2059
      %2061 = vmatmul.bf16.gmra.mxu0 %v1817
      %v2062 = vpop.f32.mrf.mxu0
      %v2063 = vadd.f32 0.0, %v2062
      %v2064 = vpop.f32.mrf.mxu0
      %v2065 = vadd.f32 0.0, %v2064
      %2066 = vmatmul.bf16.gmra.mxu0 %v1818
      %v2067 = vpop.f32.mrf.mxu0
      %v2068 = vadd.f32 0.0, %v2067
      %v2069 = vpop.f32.mrf.mxu0
      %v2070 = vadd.f32 0.0, %v2069
      %2071 = vmatmul.bf16.gmra.mxu0 %v1819
      %v2072 = vpop.f32.mrf.mxu0
      %v2073 = vadd.f32 0.0, %v2072
      %v2074 = vpop.f32.mrf.mxu0
      %v2075 = vadd.f32 0.0, %v2074
      %2076 = vmatmul.bf16.gmra.mxu0 %v1820
      %v2077 = vpop.f32.mrf.mxu0
      %v2078 = vadd.f32 0.0, %v2077
      %v2079 = vpop.f32.mrf.mxu0
      %v2080 = vadd.f32 0.0, %v2079
      %2081 = vdwg.mxu0
      %2082 = vmatpush.bf16.msra.mxu0 %v2000
      %2083 = vmatpush.bf16.msra.mxu0 %v1999
      %2084 = vmatpush.bf16.msra.mxu0 %v1998
      %2085 = vmatpush.bf16.msra.mxu0 %v1997
      %2086 = vmatpush.bf16.msra.mxu0 %v1996
      %2087 = vmatpush.bf16.msra.mxu0 %v1995
      %2088 = vmatpush.bf16.msra.mxu0 %v1994
      %2089 = vmatpush.bf16.msra.mxu0 %v1993
      %2090 = vmatmul.bf16.gmra.mxu0 %v1814
      %v2091 = vpop.f32.mrf.mxu0
      %v2092 = vadd.f32 %v2043, %v2091
      %v2093 = vpop.f32.mrf.mxu0
      %v2094 = vadd.f32 %v2045, %v2093
      %2095 = vmatmul.bf16.gmra.mxu0 %v1815
      %v2096 = vpop.f32.mrf.mxu0
      %v2097 = vadd.f32 %v2048, %v2096
      %v2098 = vpop.f32.mrf.mxu0
      %v2099 = vadd.f32 %v2050, %v2098
      %2100 = vmatmul.bf16.gmra.mxu0 %v1816
      %v2101 = vpop.f32.mrf.mxu0
      %v2102 = vadd.f32 %v2053, %v2101
      %v2103 = vpop.f32.mrf.mxu0
      %v2104 = vadd.f32 %v2055, %v2103
      %2105 = vmatmul.bf16.gmra.mxu0 %v1817
      %v2106 = vpop.f32.mrf.mxu0
      %v2107 = vadd.f32 %v2058, %v2106
      %v2108 = vpop.f32.mrf.mxu0
      %v2109 = vadd.f32 %v2060, %v2108
      %2110 = vmatmul.bf16.gmra.mxu0 %v1818
      %v2111 = vpop.f32.mrf.mxu0
      %v2112 = vadd.f32 %v2063, %v2111
      %v2113 = vpop.f32.mrf.mxu0
      %v2114 = vadd.f32 %v2065, %v2113
      %2115 = vmatmul.bf16.gmra.mxu0 %v1819
      %v2116 = vpop.f32.mrf.mxu0
      %v2117 = vadd.f32 %v2068, %v2116
      %v2118 = vpop.f32.mrf.mxu0
      %v2119 = vadd.f32 %v2070, %v2118
      %2120 = vmatmul.bf16.gmra.mxu0 %v1820
      %v2121 = vpop.f32.mrf.mxu0
      %v2122 = vadd.f32 %v2073, %v2121
      %v2123 = vpop.f32.mrf.mxu0
      %v2124 = vadd.f32 %v2075, %v2123
      %2125 = vmatmul.bf16.gmra.mxu0 %v1833
      %v2126 = vpop.f32.mrf.mxu0
      %v2127 = vadd.f32 %v2078, %v2126
      %v2128 = vpop.f32.mrf.mxu0
      %v2129 = vadd.f32 %v2080, %v2128
      %2130 = vdwg.mxu0
      %2131 = vmatpush.bf16.msra.mxu0 %v2008
      %2132 = vmatpush.bf16.msra.mxu0 %v2007
      %2133 = vmatpush.bf16.msra.mxu0 %v2006
      %2134 = vmatpush.bf16.msra.mxu0 %v2005
      %2135 = vmatpush.bf16.msra.mxu0 %v2004
      %2136 = vmatpush.bf16.msra.mxu0 %v2003
      %2137 = vmatpush.bf16.msra.mxu0 %v2002
      %2138 = vmatpush.bf16.msra.mxu0 %v2001
      %2139 = vmatmul.bf16.gmra.mxu0 %v1815
      %v2140 = vpop.f32.mrf.mxu0
      %v2141 = vadd.f32 %v2092, %v2140
      %v2142 = vpop.f32.mrf.mxu0
      %v2143 = vadd.f32 %v2094, %v2142
      %2144 = vmatmul.bf16.gmra.mxu0 %v1816
      %v2145 = vpop.f32.mrf.mxu0
      %v2146 = vadd.f32 %v2097, %v2145
      %v2147 = vpop.f32.mrf.mxu0
      %v2148 = vadd.f32 %v2099, %v2147
      %2149 = vmatmul.bf16.gmra.mxu0 %v1817
      %v2150 = vpop.f32.mrf.mxu0
      %v2151 = vadd.f32 %v2102, %v2150
      %v2152 = vpop.f32.mrf.mxu0
      %v2153 = vadd.f32 %v2104, %v2152
      %2154 = vmatmul.bf16.gmra.mxu0 %v1818
      %v2155 = vpop.f32.mrf.mxu0
      %v2156 = vadd.f32 %v2107, %v2155
      %v2157 = vpop.f32.mrf.mxu0
      %v2158 = vadd.f32 %v2109, %v2157
      %2159 = vmatmul.bf16.gmra.mxu0 %v1819
      %v2160 = vpop.f32.mrf.mxu0
      %v2161 = vadd.f32 %v2112, %v2160
      %v2162 = vpop.f32.mrf.mxu0
      %v2163 = vadd.f32 %v2114, %v2162
      %2164 = vmatmul.bf16.gmra.mxu0 %v1820
      %v2165 = vpop.f32.mrf.mxu0
      %v2166 = vadd.f32 %v2117, %v2165
      %v2167 = vpop.f32.mrf.mxu0
      %v2168 = vadd.f32 %v2119, %v2167
      %2169 = vmatmul.bf16.gmra.mxu0 %v1833
      %v2170 = vpop.f32.mrf.mxu0
      %v2171 = vadd.f32 %v2122, %v2170
      %v2172 = vpop.f32.mrf.mxu0
      %v2173 = vadd.f32 %v2124, %v2172
      %2174 = vmatmul.bf16.gmra.mxu0 %v1839
      %v2175 = vpop.f32.mrf.mxu0
      %v2176 = vadd.f32 %v2127, %v2175
      %v2177 = vpop.f32.mrf.mxu0
      %v2178 = vadd.f32 %v2129, %v2177
      %2179 = vdwg.mxu0
      %s2180 = scalar_lea.vmem %s2, 192
      %v2181 = vld [vmem:[%s2180] sm:$0xf]
      %v2182 = vld [vmem:[%s2180 + $0x4] sm:$0xf]
      %v2183 = vld [vmem:[%s2180 + $0x8] sm:$0xf]
      %v2184 = vld [vmem:[%s2180 + $0xc] sm:$0xf]
      %v2185 = vld [vmem:[%s2180 + $0x10] sm:$0xf]
      %v2186 = vld [vmem:[%s2180 + $0x14] sm:$0xf]
      %v2187 = vld [vmem:[%s2180 + $0x18] sm:$0xf]
      %v2188 = vld [vmem:[%s2180 + $0x1c] sm:$0xf]
      %v2189 = vld [vmem:[%s2180 + $0x20] sm:$0xf]
      %v2190 = vld [vmem:[%s2180 + $0x24] sm:$0xf]
      %v2191 = vld [vmem:[%s2180 + $0x28] sm:$0xf]
      %v2192 = vld [vmem:[%s2180 + $0x2c] sm:$0xf]
      %v2193 = vld [vmem:[%s2180 + $0x30] sm:$0xf]
      %v2194 = vld [vmem:[%s2180 + $0x34] sm:$0xf]
      %v2195 = vld [vmem:[%s2180 + $0x38] sm:$0xf]
      %v2196 = vld [vmem:[%s2180 + $0x3c] sm:$0xf]
      %v2197 = vld [vmem:[%s2180 + $0x40] sm:$0xf]
      %v2198 = vld [vmem:[%s2180 + $0x44] sm:$0xf]
      %v2199 = vld [vmem:[%s2180 + $0x48] sm:$0xf]
      %v2200 = vld [vmem:[%s2180 + $0x4c] sm:$0xf]
      %v2201 = vld [vmem:[%s2180 + $0x50] sm:$0xf]
      %v2202 = vld [vmem:[%s2180 + $0x54] sm:$0xf]
      %v2203 = vld [vmem:[%s2180 + $0x58] sm:$0xf]
      %v2204 = vld [vmem:[%s2180 + $0x5c] sm:$0xf]
      %v2205 = vld [vmem:[%s2180 + $0x60] sm:$0xf]
      %v2206 = vld [vmem:[%s2180 + $0x64] sm:$0xf]
      %v2207 = vld [vmem:[%s2180 + $0x68] sm:$0xf]
      %v2208 = vld [vmem:[%s2180 + $0x6c] sm:$0xf]
      %v2209 = vld [vmem:[%s2180 + $0x70] sm:$0xf]
      %v2210 = vld [vmem:[%s2180 + $0x74] sm:$0xf]
      %v2211 = vld [vmem:[%s2180 + $0x78] sm:$0xf]
      %v2212 = vld [vmem:[%s2180 + $0x7c] sm:$0xf]
      %v2213 = vld [vmem:[%s2180 + $0x80] sm:$0xf]
      %v2214 = vld [vmem:[%s2180 + $0x84] sm:$0xf]
      %v2215 = vld [vmem:[%s2180 + $0x88] sm:$0xf]
      %v2216 = vld [vmem:[%s2180 + $0x8c] sm:$0xf]
      %v2217 = vld [vmem:[%s2180 + $0x90] sm:$0xf]
      %v2218 = vld [vmem:[%s2180 + $0x94] sm:$0xf]
      %v2219 = vld [vmem:[%s2180 + $0x98] sm:$0xf]
      %v2220 = vld [vmem:[%s2180 + $0x9c] sm:$0xf]
      %v2221 = vld [vmem:[%s2180 + $0xa0] sm:$0xf]
      %v2222 = vld [vmem:[%s2180 + $0xa4] sm:$0xf]
      %v2223 = vld [vmem:[%s2180 + $0xa8] sm:$0xf]
      %v2224 = vld [vmem:[%s2180 + $0xac] sm:$0xf]
      %v2225 = vld [vmem:[%s2180 + $0xb0] sm:$0xf]
      %v2226 = vld [vmem:[%s2180 + $0xb4] sm:$0xf]
      %v2227 = vld [vmem:[%s2180 + $0xb8] sm:$0xf]
      %v2228 = vld [vmem:[%s2180 + $0xbc] sm:$0xf]
      %v2277 = vunpack.c.l.b16 %v2181
      %v2278 = vunpack.c.l.b16 %v2182
      %v2279 = vunpack.c.l.b16 %v2183
      %v2280 = vunpack.c.l.b16 %v2184
      %v2281 = vunpack.c.l.b16 %v2185
      %v2282 = vunpack.c.l.b16 %v2186
      %v2283 = vunpack.c.l.b16 %v2187
      %v2284 = vunpack.c.l.b16 %v2188
      %v2285 = vunpack.c.l.b16 %v2189
      %v2286 = vunpack.c.l.b16 %v2190
      %v2287 = vunpack.c.l.b16 %v2191
      %v2288 = vunpack.c.l.b16 %v2192
      %v2289 = vunpack.c.l.b16 %v2193
      %v2290 = vunpack.c.l.b16 %v2194
      %v2291 = vunpack.c.l.b16 %v2195
      %v2292 = vunpack.c.l.b16 %v2196
      %v2293 = vunpack.c.l.b16 %v2197
      %v2294 = vunpack.c.l.b16 %v2198
      %v2295 = vunpack.c.l.b16 %v2199
      %v2296 = vunpack.c.l.b16 %v2200
      %v2297 = vunpack.c.l.b16 %v2201
      %v2298 = vunpack.c.l.b16 %v2202
      %v2299 = vunpack.c.l.b16 %v2203
      %v2300 = vunpack.c.l.b16 %v2204
      %v2301 = vunpack.c.l.b16 %v2205
      %v2302 = vunpack.c.l.b16 %v2206
      %v2303 = vunpack.c.l.b16 %v2207
      %v2304 = vunpack.c.l.b16 %v2208
      %v2305 = vunpack.c.l.b16 %v2209
      %v2306 = vunpack.c.l.b16 %v2210
      %v2307 = vunpack.c.l.b16 %v2211
      %v2308 = vunpack.c.l.b16 %v2212
      %v2309 = vunpack.c.l.b16 %v2213
      %v2310 = vunpack.c.l.b16 %v2214
      %v2311 = vunpack.c.l.b16 %v2215
      %v2312 = vunpack.c.l.b16 %v2216
      %v2313 = vunpack.c.l.b16 %v2217
      %v2314 = vunpack.c.l.b16 %v2218
      %v2315 = vunpack.c.l.b16 %v2219
      %v2316 = vunpack.c.l.b16 %v2220
      %v2317 = vunpack.c.l.b16 %v2221
      %v2318 = vunpack.c.l.b16 %v2222
      %v2319 = vunpack.c.l.b16 %v2223
      %v2320 = vunpack.c.l.b16 %v2224
      %v2321 = vunpack.c.l.b16 %v2225
      %v2322 = vunpack.c.l.b16 %v2226
      %v2323 = vunpack.c.l.b16 %v2227
      %v2324 = vunpack.c.l.b16 %v2228
      %v2325 = vpack.c.b16 %v2278, %v2277
      %v2326 = vpack.c.b16 %v2280, %v2279
      %v2327 = vpack.c.b16 %v2282, %v2281
      %v2328 = vpack.c.b16 %v2284, %v2283
      %v2329 = vpack.c.b16 %v2286, %v2285
      %v2330 = vpack.c.b16 %v2288, %v2287
      %v2331 = vpack.c.b16 %v2290, %v2289
      %v2332 = vpack.c.b16 %v2292, %v2291
      %v2333 = vpack.c.b16 %v2294, %v2293
      %v2334 = vpack.c.b16 %v2296, %v2295
      %v2335 = vpack.c.b16 %v2298, %v2297
      %v2336 = vpack.c.b16 %v2300, %v2299
      %v2337 = vpack.c.b16 %v2302, %v2301
      %v2338 = vpack.c.b16 %v2304, %v2303
      %v2339 = vpack.c.b16 %v2306, %v2305
      %v2340 = vpack.c.b16 %v2308, %v2307
      %v2341 = vpack.c.b16 %v2310, %v2309
      %v2342 = vpack.c.b16 %v2312, %v2311
      %v2343 = vpack.c.b16 %v2314, %v2313
      %v2344 = vpack.c.b16 %v2316, %v2315
      %v2345 = vpack.c.b16 %v2318, %v2317
      %v2346 = vpack.c.b16 %v2320, %v2319
      %v2347 = vpack.c.b16 %v2322, %v2321
      %v2348 = vpack.c.b16 %v2324, %v2323
      %2373 = vmatpush.bf16.msra.mxu0 %v2332
      %2374 = vmatpush.bf16.msra.mxu0 %v2331
      %2375 = vmatpush.bf16.msra.mxu0 %v2330
      %2376 = vmatpush.bf16.msra.mxu0 %v2329
      %2377 = vmatpush.bf16.msra.mxu0 %v2328
      %2378 = vmatpush.bf16.msra.mxu0 %v2327
      %2379 = vmatpush.bf16.msra.mxu0 %v2326
      %2380 = vmatpush.bf16.msra.mxu0 %v2325
      %2381 = vmatmul.bf16.gmra.mxu0 %v1813
      %v2382 = vpop.f32.mrf.mxu0
      %v2383 = vadd.f32 0.0, %v2382
      %v2384 = vpop.f32.mrf.mxu0
      %v2385 = vadd.f32 0.0, %v2384
      %2386 = vmatmul.bf16.gmra.mxu0 %v1814
      %v2387 = vpop.f32.mrf.mxu0
      %v2388 = vadd.f32 0.0, %v2387
      %v2389 = vpop.f32.mrf.mxu0
      %v2390 = vadd.f32 0.0, %v2389
      %2391 = vmatmul.bf16.gmra.mxu0 %v1815
      %v2392 = vpop.f32.mrf.mxu0
      %v2393 = vadd.f32 0.0, %v2392
      %v2394 = vpop.f32.mrf.mxu0
      %v2395 = vadd.f32 0.0, %v2394
      %2396 = vmatmul.bf16.gmra.mxu0 %v1816
      %v2397 = vpop.f32.mrf.mxu0
      %v2398 = vadd.f32 0.0, %v2397
      %v2399 = vpop.f32.mrf.mxu0
      %v2400 = vadd.f32 0.0, %v2399
      %2401 = vmatmul.bf16.gmra.mxu0 %v1817
      %v2402 = vpop.f32.mrf.mxu0
      %v2403 = vadd.f32 0.0, %v2402
      %v2404 = vpop.f32.mrf.mxu0
      %v2405 = vadd.f32 0.0, %v2404
      %2406 = vmatmul.bf16.gmra.mxu0 %v1818
      %v2407 = vpop.f32.mrf.mxu0
      %v2408 = vadd.f32 0.0, %v2407
      %v2409 = vpop.f32.mrf.mxu0
      %v2410 = vadd.f32 0.0, %v2409
      %2411 = vmatmul.bf16.gmra.mxu0 %v1819
      %v2412 = vpop.f32.mrf.mxu0
      %v2413 = vadd.f32 0.0, %v2412
      %v2414 = vpop.f32.mrf.mxu0
      %v2415 = vadd.f32 0.0, %v2414
      %2416 = vmatmul.bf16.gmra.mxu0 %v1820
      %v2417 = vpop.f32.mrf.mxu0
      %v2418 = vadd.f32 0.0, %v2417
      %v2419 = vpop.f32.mrf.mxu0
      %v2420 = vadd.f32 0.0, %v2419
      %2421 = vdwg.mxu0
      %2422 = vmatpush.bf16.msra.mxu0 %v2340
      %2423 = vmatpush.bf16.msra.mxu0 %v2339
      %2424 = vmatpush.bf16.msra.mxu0 %v2338
      %2425 = vmatpush.bf16.msra.mxu0 %v2337
      %2426 = vmatpush.bf16.msra.mxu0 %v2336
      %2427 = vmatpush.bf16.msra.mxu0 %v2335
      %2428 = vmatpush.bf16.msra.mxu0 %v2334
      %2429 = vmatpush.bf16.msra.mxu0 %v2333
      %2430 = vmatmul.bf16.gmra.mxu0 %v1814
      %v2431 = vpop.f32.mrf.mxu0
      %v2432 = vadd.f32 %v2383, %v2431
      %v2433 = vpop.f32.mrf.mxu0
      %v2434 = vadd.f32 %v2385, %v2433
      %2435 = vmatmul.bf16.gmra.mxu0 %v1815
      %v2436 = vpop.f32.mrf.mxu0
      %v2437 = vadd.f32 %v2388, %v2436
      %v2438 = vpop.f32.mrf.mxu0
      %v2439 = vadd.f32 %v2390, %v2438
      %2440 = vmatmul.bf16.gmra.mxu0 %v1816
      %v2441 = vpop.f32.mrf.mxu0
      %v2442 = vadd.f32 %v2393, %v2441
      %v2443 = vpop.f32.mrf.mxu0
      %v2444 = vadd.f32 %v2395, %v2443
      %2445 = vmatmul.bf16.gmra.mxu0 %v1817
      %v2446 = vpop.f32.mrf.mxu0
      %v2447 = vadd.f32 %v2398, %v2446
      %v2448 = vpop.f32.mrf.mxu0
      %v2449 = vadd.f32 %v2400, %v2448
      %2450 = vmatmul.bf16.gmra.mxu0 %v1818
      %v2451 = vpop.f32.mrf.mxu0
      %v2452 = vadd.f32 %v2403, %v2451
      %v2453 = vpop.f32.mrf.mxu0
      %v2454 = vadd.f32 %v2405, %v2453
      %2455 = vmatmul.bf16.gmra.mxu0 %v1819
      %v2456 = vpop.f32.mrf.mxu0
      %v2457 = vadd.f32 %v2408, %v2456
      %v2458 = vpop.f32.mrf.mxu0
      %v2459 = vadd.f32 %v2410, %v2458
      %2460 = vmatmul.bf16.gmra.mxu0 %v1820
      %v2461 = vpop.f32.mrf.mxu0
      %v2462 = vadd.f32 %v2413, %v2461
      %v2463 = vpop.f32.mrf.mxu0
      %v2464 = vadd.f32 %v2415, %v2463
      %2465 = vmatmul.bf16.gmra.mxu0 %v1833
      %v2466 = vpop.f32.mrf.mxu0
      %v2467 = vadd.f32 %v2418, %v2466
      %v2468 = vpop.f32.mrf.mxu0
      %v2469 = vadd.f32 %v2420, %v2468
      %2470 = vdwg.mxu0
      %2471 = vmatpush.bf16.msra.mxu0 %v2348
      %2472 = vmatpush.bf16.msra.mxu0 %v2347
      %2473 = vmatpush.bf16.msra.mxu0 %v2346
      %2474 = vmatpush.bf16.msra.mxu0 %v2345
      %2475 = vmatpush.bf16.msra.mxu0 %v2344
      %2476 = vmatpush.bf16.msra.mxu0 %v2343
      %2477 = vmatpush.bf16.msra.mxu0 %v2342
      %2478 = vmatpush.bf16.msra.mxu0 %v2341
      %2479 = vmatmul.bf16.gmra.mxu0 %v1815
      %v2480 = vpop.f32.mrf.mxu0
      %v2481 = vadd.f32 %v2432, %v2480
      %v2482 = vpop.f32.mrf.mxu0
      %v2483 = vadd.f32 %v2434, %v2482
      %2484 = vmatmul.bf16.gmra.mxu0 %v1816
      %v2485 = vpop.f32.mrf.mxu0
      %v2486 = vadd.f32 %v2437, %v2485
      %v2487 = vpop.f32.mrf.mxu0
      %v2488 = vadd.f32 %v2439, %v2487
      %2489 = vmatmul.bf16.gmra.mxu0 %v1817
      %v2490 = vpop.f32.mrf.mxu0
      %v2491 = vadd.f32 %v2442, %v2490
      %v2492 = vpop.f32.mrf.mxu0
      %v2493 = vadd.f32 %v2444, %v2492
      %2494 = vmatmul.bf16.gmra.mxu0 %v1818
      %v2495 = vpop.f32.mrf.mxu0
      %v2496 = vadd.f32 %v2447, %v2495
      %v2497 = vpop.f32.mrf.mxu0
      %v2498 = vadd.f32 %v2449, %v2497
      %2499 = vmatmul.bf16.gmra.mxu0 %v1819
      %v2500 = vpop.f32.mrf.mxu0
      %v2501 = vadd.f32 %v2452, %v2500
      %v2502 = vpop.f32.mrf.mxu0
      %v2503 = vadd.f32 %v2454, %v2502
      %2504 = vmatmul.bf16.gmra.mxu0 %v1820
      %v2505 = vpop.f32.mrf.mxu0
      %v2506 = vadd.f32 %v2457, %v2505
      %v2507 = vpop.f32.mrf.mxu0
      %v2508 = vadd.f32 %v2459, %v2507
      %2509 = vmatmul.bf16.gmra.mxu0 %v1833
      %v2510 = vpop.f32.mrf.mxu0
      %v2511 = vadd.f32 %v2462, %v2510
      %v2512 = vpop.f32.mrf.mxu0
      %v2513 = vadd.f32 %v2464, %v2512
      %2514 = vmatmul.bf16.gmra.mxu0 %v1839
      %v2515 = vpop.f32.mrf.mxu0
      %v2516 = vadd.f32 %v2467, %v2515
      %v2517 = vpop.f32.mrf.mxu0
      %v2518 = vadd.f32 %v2469, %v2517
      %2519 = vdwg.mxu0
      %s2520 = scalar_lea.vmem %s2, 384
      %v2521 = vld [vmem:[%s2520] sm:$0xf]
      %v2522 = vld [vmem:[%s2520 + $0x4] sm:$0xf]
      %v2523 = vld [vmem:[%s2520 + $0x8] sm:$0xf]
      %v2524 = vld [vmem:[%s2520 + $0xc] sm:$0xf]
      %v2525 = vld [vmem:[%s2520 + $0x10] sm:$0xf]
      %v2526 = vld [vmem:[%s2520 + $0x14] sm:$0xf]
      %v2527 = vld [vmem:[%s2520 + $0x18] sm:$0xf]
      %v2528 = vld [vmem:[%s2520 + $0x1c] sm:$0xf]
      %v2529 = vld [vmem:[%s2520 + $0x20] sm:$0xf]
      %v2530 = vld [vmem:[%s2520 + $0x24] sm:$0xf]
      %v2531 = vld [vmem:[%s2520 + $0x28] sm:$0xf]
      %v2532 = vld [vmem:[%s2520 + $0x2c] sm:$0xf]
      %v2533 = vld [vmem:[%s2520 + $0x30] sm:$0xf]
      %v2534 = vld [vmem:[%s2520 + $0x34] sm:$0xf]
      %v2535 = vld [vmem:[%s2520 + $0x38] sm:$0xf]
      %v2536 = vld [vmem:[%s2520 + $0x3c] sm:$0xf]
      %v2537 = vld [vmem:[%s2520 + $0x40] sm:$0xf]
      %v2538 = vld [vmem:[%s2520 + $0x44] sm:$0xf]
      %v2539 = vld [vmem:[%s2520 + $0x48] sm:$0xf]
      %v2540 = vld [vmem:[%s2520 + $0x4c] sm:$0xf]
      %v2541 = vld [vmem:[%s2520 + $0x50] sm:$0xf]
      %v2542 = vld [vmem:[%s2520 + $0x54] sm:$0xf]
      %v2543 = vld [vmem:[%s2520 + $0x58] sm:$0xf]
      %v2544 = vld [vmem:[%s2520 + $0x5c] sm:$0xf]
      %v2545 = vld [vmem:[%s2520 + $0x60] sm:$0xf]
      %v2546 = vld [vmem:[%s2520 + $0x64] sm:$0xf]
      %v2547 = vld [vmem:[%s2520 + $0x68] sm:$0xf]
      %v2548 = vld [vmem:[%s2520 + $0x6c] sm:$0xf]
      %v2549 = vld [vmem:[%s2520 + $0x70] sm:$0xf]
      %v2550 = vld [vmem:[%s2520 + $0x74] sm:$0xf]
      %v2551 = vld [vmem:[%s2520 + $0x78] sm:$0xf]
      %v2552 = vld [vmem:[%s2520 + $0x7c] sm:$0xf]
      %v2553 = vld [vmem:[%s2520 + $0x80] sm:$0xf]
      %v2554 = vld [vmem:[%s2520 + $0x84] sm:$0xf]
      %v2555 = vld [vmem:[%s2520 + $0x88] sm:$0xf]
      %v2556 = vld [vmem:[%s2520 + $0x8c] sm:$0xf]
      %v2557 = vld [vmem:[%s2520 + $0x90] sm:$0xf]
      %v2558 = vld [vmem:[%s2520 + $0x94] sm:$0xf]
      %v2559 = vld [vmem:[%s2520 + $0x98] sm:$0xf]
      %v2560 = vld [vmem:[%s2520 + $0x9c] sm:$0xf]
      %v2561 = vld [vmem:[%s2520 + $0xa0] sm:$0xf]
      %v2562 = vld [vmem:[%s2520 + $0xa4] sm:$0xf]
      %v2563 = vld [vmem:[%s2520 + $0xa8] sm:$0xf]
      %v2564 = vld [vmem:[%s2520 + $0xac] sm:$0xf]
      %v2565 = vld [vmem:[%s2520 + $0xb0] sm:$0xf]
      %v2566 = vld [vmem:[%s2520 + $0xb4] sm:$0xf]
      %v2567 = vld [vmem:[%s2520 + $0xb8] sm:$0xf]
      %v2568 = vld [vmem:[%s2520 + $0xbc] sm:$0xf]
      %v2617 = vunpack.c.l.b16 %v2521
      %v2618 = vunpack.c.l.b16 %v2522
      %v2619 = vunpack.c.l.b16 %v2523
      %v2620 = vunpack.c.l.b16 %v2524
      %v2621 = vunpack.c.l.b16 %v2525
      %v2622 = vunpack.c.l.b16 %v2526
      %v2623 = vunpack.c.l.b16 %v2527
      %v2624 = vunpack.c.l.b16 %v2528
      %v2625 = vunpack.c.l.b16 %v2529
      %v2626 = vunpack.c.l.b16 %v2530
      %v2627 = vunpack.c.l.b16 %v2531
      %v2628 = vunpack.c.l.b16 %v2532
      %v2629 = vunpack.c.l.b16 %v2533
      %v2630 = vunpack.c.l.b16 %v2534
      %v2631 = vunpack.c.l.b16 %v2535
      %v2632 = vunpack.c.l.b16 %v2536
      %v2633 = vunpack.c.l.b16 %v2537
      %v2634 = vunpack.c.l.b16 %v2538
      %v2635 = vunpack.c.l.b16 %v2539
      %v2636 = vunpack.c.l.b16 %v2540
      %v2637 = vunpack.c.l.b16 %v2541
      %v2638 = vunpack.c.l.b16 %v2542
      %v2639 = vunpack.c.l.b16 %v2543
      %v2640 = vunpack.c.l.b16 %v2544
      %v2641 = vunpack.c.l.b16 %v2545
      %v2642 = vunpack.c.l.b16 %v2546
      %v2643 = vunpack.c.l.b16 %v2547
      %v2644 = vunpack.c.l.b16 %v2548
      %v2645 = vunpack.c.l.b16 %v2549
      %v2646 = vunpack.c.l.b16 %v2550
      %v2647 = vunpack.c.l.b16 %v2551
      %v2648 = vunpack.c.l.b16 %v2552
      %v2649 = vunpack.c.l.b16 %v2553
      %v2650 = vunpack.c.l.b16 %v2554
      %v2651 = vunpack.c.l.b16 %v2555
      %v2652 = vunpack.c.l.b16 %v2556
      %v2653 = vunpack.c.l.b16 %v2557
      %v2654 = vunpack.c.l.b16 %v2558
      %v2655 = vunpack.c.l.b16 %v2559
      %v2656 = vunpack.c.l.b16 %v2560
      %v2657 = vunpack.c.l.b16 %v2561
      %v2658 = vunpack.c.l.b16 %v2562
      %v2659 = vunpack.c.l.b16 %v2563
      %v2660 = vunpack.c.l.b16 %v2564
      %v2661 = vunpack.c.l.b16 %v2565
      %v2662 = vunpack.c.l.b16 %v2566
      %v2663 = vunpack.c.l.b16 %v2567
      %v2664 = vunpack.c.l.b16 %v2568
      %v2665 = vpack.c.b16 %v2618, %v2617
      %v2666 = vpack.c.b16 %v2620, %v2619
      %v2667 = vpack.c.b16 %v2622, %v2621
      %v2668 = vpack.c.b16 %v2624, %v2623
      %v2669 = vpack.c.b16 %v2626, %v2625
      %v2670 = vpack.c.b16 %v2628, %v2627
      %v2671 = vpack.c.b16 %v2630, %v2629
      %v2672 = vpack.c.b16 %v2632, %v2631
      %v2673 = vpack.c.b16 %v2634, %v2633
      %v2674 = vpack.c.b16 %v2636, %v2635
      %v2675 = vpack.c.b16 %v2638, %v2637
      %v2676 = vpack.c.b16 %v2640, %v2639
      %v2677 = vpack.c.b16 %v2642, %v2641
      %v2678 = vpack.c.b16 %v2644, %v2643
      %v2679 = vpack.c.b16 %v2646, %v2645
      %v2680 = vpack.c.b16 %v2648, %v2647
      %v2681 = vpack.c.b16 %v2650, %v2649
      %v2682 = vpack.c.b16 %v2652, %v2651
      %v2683 = vpack.c.b16 %v2654, %v2653
      %v2684 = vpack.c.b16 %v2656, %v2655
      %v2685 = vpack.c.b16 %v2658, %v2657
      %v2686 = vpack.c.b16 %v2660, %v2659
      %v2687 = vpack.c.b16 %v2662, %v2661
      %v2688 = vpack.c.b16 %v2664, %v2663
      %2713 = vmatpush.bf16.msra.mxu0 %v2672
      %2714 = vmatpush.bf16.msra.mxu0 %v2671
      %2715 = vmatpush.bf16.msra.mxu0 %v2670
      %2716 = vmatpush.bf16.msra.mxu0 %v2669
      %2717 = vmatpush.bf16.msra.mxu0 %v2668
      %2718 = vmatpush.bf16.msra.mxu0 %v2667
      %2719 = vmatpush.bf16.msra.mxu0 %v2666
      %2720 = vmatpush.bf16.msra.mxu0 %v2665
      %2721 = vmatmul.bf16.gmra.mxu0 %v1813
      %v2722 = vpop.f32.mrf.mxu0
      %v2723 = vadd.f32 0.0, %v2722
      %v2724 = vpop.f32.mrf.mxu0
      %v2725 = vadd.f32 0.0, %v2724
      %2726 = vmatmul.bf16.gmra.mxu0 %v1814
      %v2727 = vpop.f32.mrf.mxu0
      %v2728 = vadd.f32 0.0, %v2727
      %v2729 = vpop.f32.mrf.mxu0
      %v2730 = vadd.f32 0.0, %v2729
      %2731 = vmatmul.bf16.gmra.mxu0 %v1815
      %v2732 = vpop.f32.mrf.mxu0
      %v2733 = vadd.f32 0.0, %v2732
      %v2734 = vpop.f32.mrf.mxu0
      %v2735 = vadd.f32 0.0, %v2734
      %2736 = vmatmul.bf16.gmra.mxu0 %v1816
      %v2737 = vpop.f32.mrf.mxu0
      %v2738 = vadd.f32 0.0, %v2737
      %v2739 = vpop.f32.mrf.mxu0
      %v2740 = vadd.f32 0.0, %v2739
      %2741 = vmatmul.bf16.gmra.mxu0 %v1817
      %v2742 = vpop.f32.mrf.mxu0
      %v2743 = vadd.f32 0.0, %v2742
      %v2744 = vpop.f32.mrf.mxu0
      %v2745 = vadd.f32 0.0, %v2744
      %2746 = vmatmul.bf16.gmra.mxu0 %v1818
      %v2747 = vpop.f32.mrf.mxu0
      %v2748 = vadd.f32 0.0, %v2747
      %v2749 = vpop.f32.mrf.mxu0
      %v2750 = vadd.f32 0.0, %v2749
      %2751 = vmatmul.bf16.gmra.mxu0 %v1819
      %v2752 = vpop.f32.mrf.mxu0
      %v2753 = vadd.f32 0.0, %v2752
      %v2754 = vpop.f32.mrf.mxu0
      %v2755 = vadd.f32 0.0, %v2754
      %2756 = vmatmul.bf16.gmra.mxu0 %v1820
      %v2757 = vpop.f32.mrf.mxu0
      %v2758 = vadd.f32 0.0, %v2757
      %v2759 = vpop.f32.mrf.mxu0
      %v2760 = vadd.f32 0.0, %v2759
      %2761 = vdwg.mxu0
      %2762 = vmatpush.bf16.msra.mxu0 %v2680
      %2763 = vmatpush.bf16.msra.mxu0 %v2679
      %2764 = vmatpush.bf16.msra.mxu0 %v2678
      %2765 = vmatpush.bf16.msra.mxu0 %v2677
      %2766 = vmatpush.bf16.msra.mxu0 %v2676
      %2767 = vmatpush.bf16.msra.mxu0 %v2675
      %2768 = vmatpush.bf16.msra.mxu0 %v2674
      %2769 = vmatpush.bf16.msra.mxu0 %v2673
      %2770 = vmatmul.bf16.gmra.mxu0 %v1814
      %v2771 = vpop.f32.mrf.mxu0
      %v2772 = vadd.f32 %v2723, %v2771
      %v2773 = vpop.f32.mrf.mxu0
      %v2774 = vadd.f32 %v2725, %v2773
      %2775 = vmatmul.bf16.gmra.mxu0 %v1815
      %v2776 = vpop.f32.mrf.mxu0
      %v2777 = vadd.f32 %v2728, %v2776
      %v2778 = vpop.f32.mrf.mxu0
      %v2779 = vadd.f32 %v2730, %v2778
      %2780 = vmatmul.bf16.gmra.mxu0 %v1816
      %v2781 = vpop.f32.mrf.mxu0
      %v2782 = vadd.f32 %v2733, %v2781
      %v2783 = vpop.f32.mrf.mxu0
      %v2784 = vadd.f32 %v2735, %v2783
      %2785 = vmatmul.bf16.gmra.mxu0 %v1817
      %v2786 = vpop.f32.mrf.mxu0
      %v2787 = vadd.f32 %v2738, %v2786
      %v2788 = vpop.f32.mrf.mxu0
      %v2789 = vadd.f32 %v2740, %v2788
      %2790 = vmatmul.bf16.gmra.mxu0 %v1818
      %v2791 = vpop.f32.mrf.mxu0
      %v2792 = vadd.f32 %v2743, %v2791
      %v2793 = vpop.f32.mrf.mxu0
      %v2794 = vadd.f32 %v2745, %v2793
      %2795 = vmatmul.bf16.gmra.mxu0 %v1819
      %v2796 = vpop.f32.mrf.mxu0
      %v2797 = vadd.f32 %v2748, %v2796
      %v2798 = vpop.f32.mrf.mxu0
      %v2799 = vadd.f32 %v2750, %v2798
      %2800 = vmatmul.bf16.gmra.mxu0 %v1820
      %v2801 = vpop.f32.mrf.mxu0
      %v2802 = vadd.f32 %v2753, %v2801
      %v2803 = vpop.f32.mrf.mxu0
      %v2804 = vadd.f32 %v2755, %v2803
      %2805 = vmatmul.bf16.gmra.mxu0 %v1833
      %v2806 = vpop.f32.mrf.mxu0
      %v2807 = vadd.f32 %v2758, %v2806
      %v2808 = vpop.f32.mrf.mxu0
      %v2809 = vadd.f32 %v2760, %v2808
      %2810 = vdwg.mxu0
      %2811 = vmatpush.bf16.msra.mxu0 %v2688
      %2812 = vmatpush.bf16.msra.mxu0 %v2687
      %2813 = vmatpush.bf16.msra.mxu0 %v2686
      %2814 = vmatpush.bf16.msra.mxu0 %v2685
      %2815 = vmatpush.bf16.msra.mxu0 %v2684
      %2816 = vmatpush.bf16.msra.mxu0 %v2683
      %2817 = vmatpush.bf16.msra.mxu0 %v2682
      %2818 = vmatpush.bf16.msra.mxu0 %v2681
      %2819 = vmatmul.bf16.gmra.mxu0 %v1815
      %v2820 = vpop.f32.mrf.mxu0
      %v2821 = vadd.f32 %v2772, %v2820
      %v2822 = vpop.f32.mrf.mxu0
      %v2823 = vadd.f32 %v2774, %v2822
      %2824 = vmatmul.bf16.gmra.mxu0 %v1816
      %v2825 = vpop.f32.mrf.mxu0
      %v2826 = vadd.f32 %v2777, %v2825
      %v2827 = vpop.f32.mrf.mxu0
      %v2828 = vadd.f32 %v2779, %v2827
      %2829 = vmatmul.bf16.gmra.mxu0 %v1817
      %v2830 = vpop.f32.mrf.mxu0
      %v2831 = vadd.f32 %v2782, %v2830
      %v2832 = vpop.f32.mrf.mxu0
      %v2833 = vadd.f32 %v2784, %v2832
      %2834 = vmatmul.bf16.gmra.mxu0 %v1818
      %v2835 = vpop.f32.mrf.mxu0
      %v2836 = vadd.f32 %v2787, %v2835
      %v2837 = vpop.f32.mrf.mxu0
      %v2838 = vadd.f32 %v2789, %v2837
      %2839 = vmatmul.bf16.gmra.mxu0 %v1819
      %v2840 = vpop.f32.mrf.mxu0
      %v2841 = vadd.f32 %v2792, %v2840
      %v2842 = vpop.f32.mrf.mxu0
      %v2843 = vadd.f32 %v2794, %v2842
      %2844 = vmatmul.bf16.gmra.mxu0 %v1820
      %v2845 = vpop.f32.mrf.mxu0
      %v2846 = vadd.f32 %v2797, %v2845
      %v2847 = vpop.f32.mrf.mxu0
      %v2848 = vadd.f32 %v2799, %v2847
      %2849 = vmatmul.bf16.gmra.mxu0 %v1833
      %v2850 = vpop.f32.mrf.mxu0
      %v2851 = vadd.f32 %v2802, %v2850
      %v2852 = vpop.f32.mrf.mxu0
      %v2853 = vadd.f32 %v2804, %v2852
      %2854 = vmatmul.bf16.gmra.mxu0 %v1839
      %v2855 = vpop.f32.mrf.mxu0
      %v2856 = vadd.f32 %v2807, %v2855
      %v2857 = vpop.f32.mrf.mxu0
      %v2858 = vadd.f32 %v2809, %v2857
      %2859 = vdwg.mxu0
      %v2860 = vrot.slane %v2141, 7
      %v2861 = vrot.slane %v2146, 7
      %v2862 = vrot.slane %v2151, 7
      %v2863 = vrot.slane %v2156, 7
      %v2864 = vrot.slane %v2161, 7
      %v2865 = vrot.slane %v2166, 7
      %v2866 = vrot.slane %v2171, 7
      %v2867 = vrot.slane %v2176, 7
      %v2868 = vrot.slane %v2143, 7
      %v2869 = vrot.slane %v2148, 7
      %v2870 = vrot.slane %v2153, 7
      %v2871 = vrot.slane %v2158, 7
      %v2872 = vrot.slane %v2163, 7
      %v2873 = vrot.slane %v2168, 7
      %v2874 = vrot.slane %v2173, 7
      %v2875 = vrot.slane %v2178, 7
      %v2876 = vsel %vm1484, %v2860, %v2868
      %v2877 = vsel %vm1484, %v2861, %v2869
      %v2878 = vsel %vm1484, %v2862, %v2870
      %v2879 = vsel %vm1484, %v2863, %v2871
      %v2880 = vsel %vm1484, %v2864, %v2872
      %v2881 = vsel %vm1484, %v2865, %v2873
      %v2882 = vsel %vm1484, %v2866, %v2874
      %v2883 = vsel %vm1484, %v2867, %v2875
      %v2884 = vsel %vm1484, %v2868, %v2860
      %v2885 = vsel %vm1484, %v2869, %v2861
      %v2886 = vsel %vm1484, %v2870, %v2862
      %v2887 = vsel %vm1484, %v2871, %v2863
      %v2888 = vsel %vm1484, %v2872, %v2864
      %v2889 = vsel %vm1484, %v2873, %v2865
      %v2890 = vsel %vm1484, %v2874, %v2866
      %v2891 = vsel %vm1484, %v2875, %v2867
      %v2892 = vsel %vm1507, 0.0, %v2884
      %v2893 = vsel %vm1508, 0.0, %v2876
      %v2894 = vsel %vm1507, 0.0, %v2885
      %v2895 = vsel %vm1508, 0.0, %v2877
      %v2896 = vsel %vm1507, 0.0, %v2886
      %v2897 = vsel %vm1508, 0.0, %v2878
      %v2898 = vsel %vm1507, 0.0, %v2887
      %v2899 = vsel %vm1508, 0.0, %v2879
      %v2900 = vsel %vm1507, 0.0, %v2888
      %v2901 = vsel %vm1508, 0.0, %v2880
      %v2902 = vsel %vm1507, 0.0, %v2889
      %v2903 = vsel %vm1508, 0.0, %v2881
      %v2904 = vsel %vm1507, 0.0, %v2890
      %v2905 = vsel %vm1508, 0.0, %v2882
      %v2906 = vsel %vm1507, 0.0, %v2891
      %v2907 = vsel %vm1508, 0.0, %v2883
      %v2908 = vrot.slane %v2821, 1
      %v2909 = vrot.slane %v2826, 1
      %v2910 = vrot.slane %v2831, 1
      %v2911 = vrot.slane %v2836, 1
      %v2912 = vrot.slane %v2841, 1
      %v2913 = vrot.slane %v2846, 1
      %v2914 = vrot.slane %v2851, 1
      %v2915 = vrot.slane %v2856, 1
      %v2916 = vrot.slane %v2823, 1
      %v2917 = vrot.slane %v2828, 1
      %v2918 = vrot.slane %v2833, 1
      %v2919 = vrot.slane %v2838, 1
      %v2920 = vrot.slane %v2843, 1
      %v2921 = vrot.slane %v2848, 1
      %v2922 = vrot.slane %v2853, 1
      %v2923 = vrot.slane %v2858, 1
      %v2924 = vsel %vm1551, %v2908, %v2916
      %v2925 = vsel %vm1551, %v2909, %v2917
      %v2926 = vsel %vm1551, %v2910, %v2918
      %v2927 = vsel %vm1551, %v2911, %v2919
      %v2928 = vsel %vm1551, %v2912, %v2920
      %v2929 = vsel %vm1551, %v2913, %v2921
      %v2930 = vsel %vm1551, %v2914, %v2922
      %v2931 = vsel %vm1551, %v2915, %v2923
      %v2932 = vsel %vm1551, %v2916, %v2908
      %v2933 = vsel %vm1551, %v2917, %v2909
      %v2934 = vsel %vm1551, %v2918, %v2910
      %v2935 = vsel %vm1551, %v2919, %v2911
      %v2936 = vsel %vm1551, %v2920, %v2912
      %v2937 = vsel %vm1551, %v2921, %v2913
      %v2938 = vsel %vm1551, %v2922, %v2914
      %v2939 = vsel %vm1551, %v2923, %v2915
      %v2940 = vsel %vm1574, 0.0, %v2924
      %v2941 = vsel %vm1575, 0.0, %v2932
      %v2942 = vsel %vm1574, 0.0, %v2925
      %v2943 = vsel %vm1575, 0.0, %v2933
      %v2944 = vsel %vm1574, 0.0, %v2926
      %v2945 = vsel %vm1575, 0.0, %v2934
      %v2946 = vsel %vm1574, 0.0, %v2927
      %v2947 = vsel %vm1575, 0.0, %v2935
      %v2948 = vsel %vm1574, 0.0, %v2928
      %v2949 = vsel %vm1575, 0.0, %v2936
      %v2950 = vsel %vm1574, 0.0, %v2929
      %v2951 = vsel %vm1575, 0.0, %v2937
      %v2952 = vsel %vm1574, 0.0, %v2930
      %v2953 = vsel %vm1575, 0.0, %v2938
      %v2954 = vsel %vm1574, 0.0, %v2931
      %v2955 = vsel %vm1575, 0.0, %v2939
      %v2956 = vadd.f32 %v2892, %v2481
      %v2957 = vadd.f32 %v2893, %v2483
      %v2958 = vadd.f32 %v2894, %v2486
      %v2959 = vadd.f32 %v2895, %v2488
      %v2960 = vadd.f32 %v2896, %v2491
      %v2961 = vadd.f32 %v2897, %v2493
      %v2962 = vadd.f32 %v2898, %v2496
      %v2963 = vadd.f32 %v2899, %v2498
      %v2964 = vadd.f32 %v2900, %v2501
      %v2965 = vadd.f32 %v2901, %v2503
      %v2966 = vadd.f32 %v2902, %v2506
      %v2967 = vadd.f32 %v2903, %v2508
      %v2968 = vadd.f32 %v2904, %v2511
      %v2969 = vadd.f32 %v2905, %v2513
      %v2970 = vadd.f32 %v2906, %v2516
      %v2971 = vadd.f32 %v2907, %v2518
      %v2972 = vadd.f32 %v2956, %v2940
      %v2973 = vadd.f32 %v2957, %v2941
      %v2974 = vadd.f32 %v2958, %v2942
      %v2975 = vadd.f32 %v2959, %v2943
      %v2976 = vadd.f32 %v2960, %v2944
      %v2977 = vadd.f32 %v2961, %v2945
      %v2978 = vadd.f32 %v2962, %v2946
      %v2979 = vadd.f32 %v2963, %v2947
      %v2980 = vadd.f32 %v2964, %v2948
      %v2981 = vadd.f32 %v2965, %v2949
      %v2982 = vadd.f32 %v2966, %v2950
      %v2983 = vadd.f32 %v2967, %v2951
      %v2984 = vadd.f32 %v2968, %v2952
      %v2985 = vadd.f32 %v2969, %v2953
      %v2986 = vadd.f32 %v2970, %v2954
      %v2987 = vadd.f32 %v2971, %v2955
      %v2988 = vld [vmem:[%s4] sm:$0x1]
      %v2990 = vperm.slane %v2988, 0
      %v2992 = vadd.f32 %v2972, %v2990
      %v2993 = vadd.f32 %v2973, %v2990
      %v2994 = vadd.f32 %v2974, %v2990
      %v2995 = vadd.f32 %v2975, %v2990
      %v2996 = vadd.f32 %v2976, %v2990
      %v2997 = vadd.f32 %v2977, %v2990
      %v2998 = vadd.f32 %v2978, %v2990
      %v2999 = vadd.f32 %v2979, %v2990
      %v3000 = vadd.f32 %v2980, %v2990
      %v3001 = vadd.f32 %v2981, %v2990
      %v3002 = vadd.f32 %v2982, %v2990
      %v3003 = vadd.f32 %v2983, %v2990
      %v3004 = vadd.f32 %v2984, %v2990
      %v3005 = vadd.f32 %v2985, %v2990
      %v3006 = vadd.f32 %v2986, %v2990
      %v3007 = vadd.f32 %v2987, %v2990
      %s3008 = sadd.s32 %s250, 2
      %s3009 = smul.u32 %s3008, 2
      %s3010 = smul.addr %s3009, 4
      %s3011 = scalar_lea.vmem %s238, %s3010
      %v3012 = vld [vmem:[%s3011] sm:$0xf]
      %v3013 = vld [vmem:[%s3011 + $0x4] sm:$0xf]
      %v3014 = vld [vmem:[%s3011 + $0x8] sm:$0xf]
      %v3015 = vld [vmem:[%s3011 + $0xc] sm:$0xf]
      %v3016 = vld [vmem:[%s3011 + $0x10] sm:$0xf]
      %v3017 = vld [vmem:[%s3011 + $0x14] sm:$0xf]
      %v3018 = vld [vmem:[%s3011 + $0x18] sm:$0xf]
      %v3019 = vld [vmem:[%s3011 + $0x1c] sm:$0xf]
      %v3020 = vld [vmem:[%s3011 + $0x20] sm:$0xf]
      %v3021 = vld [vmem:[%s3011 + $0x24] sm:$0xf]
      %v3022 = vld [vmem:[%s3011 + $0x28] sm:$0xf]
      %v3023 = vld [vmem:[%s3011 + $0x2c] sm:$0xf]
      %v3024 = vld [vmem:[%s3011 + $0x30] sm:$0xf]
      %v3025 = vld [vmem:[%s3011 + $0x34] sm:$0xf]
      %v3026 = vld [vmem:[%s3011 + $0x38] sm:$0xf]
      %v3027 = vld [vmem:[%s3011 + $0x3c] sm:$0xf]
      %v3028 = vunpack.c.l.bf16 %v3012
      %v3029 = vunpack.c.l.bf16 %v3013
      %v3030 = vunpack.c.l.bf16 %v3014
      %v3031 = vunpack.c.l.bf16 %v3015
      %v3032 = vunpack.c.l.bf16 %v3016
      %v3033 = vunpack.c.l.bf16 %v3017
      %v3034 = vunpack.c.l.bf16 %v3018
      %v3035 = vunpack.c.l.bf16 %v3019
      %v3036 = vunpack.c.l.bf16 %v3020
      %v3037 = vunpack.c.l.bf16 %v3021
      %v3038 = vunpack.c.l.bf16 %v3022
      %v3039 = vunpack.c.l.bf16 %v3023
      %v3040 = vunpack.c.l.bf16 %v3024
      %v3041 = vunpack.c.l.bf16 %v3025
      %v3042 = vunpack.c.l.bf16 %v3026
      %v3043 = vunpack.c.l.bf16 %v3027
      %v3044 = vadd.f32 %v2992, %v3028
      %v3045 = vadd.f32 %v2993, %v3029
      %v3046 = vadd.f32 %v2994, %v3030
      %v3047 = vadd.f32 %v2995, %v3031
      %v3048 = vadd.f32 %v2996, %v3032
      %v3049 = vadd.f32 %v2997, %v3033
      %v3050 = vadd.f32 %v2998, %v3034
      %v3051 = vadd.f32 %v2999, %v3035
      %v3052 = vadd.f32 %v3000, %v3036
      %v3053 = vadd.f32 %v3001, %v3037
      %v3054 = vadd.f32 %v3002, %v3038
      %v3055 = vadd.f32 %v3003, %v3039
      %v3056 = vadd.f32 %v3004, %v3040
      %v3057 = vadd.f32 %v3005, %v3041
      %v3058 = vadd.f32 %v3006, %v3042
      %v3059 = vadd.f32 %v3007, %v3043
      %v3060 = vmax.f32 %v3044, 0.0
      %v3061 = vmax.f32 %v3045, 0.0
      %v3062 = vmax.f32 %v3046, 0.0
      %v3063 = vmax.f32 %v3047, 0.0
      %v3064 = vmax.f32 %v3048, 0.0
      %v3065 = vmax.f32 %v3049, 0.0
      %v3066 = vmax.f32 %v3050, 0.0
      %v3067 = vmax.f32 %v3051, 0.0
      %v3068 = vmax.f32 %v3052, 0.0
      %v3069 = vmax.f32 %v3053, 0.0
      %v3070 = vmax.f32 %v3054, 0.0
      %v3071 = vmax.f32 %v3055, 0.0
      %v3072 = vmax.f32 %v3056, 0.0
      %v3073 = vmax.f32 %v3057, 0.0
      %v3074 = vmax.f32 %v3058, 0.0
      %v3075 = vmax.f32 %v3059, 0.0
      %v3076 = vpack.c.bf16 %v3060, %v3060
      %v3077 = vpack.c.bf16 %v3061, %v3061
      %v3078 = vpack.c.bf16 %v3062, %v3062
      %v3079 = vpack.c.bf16 %v3063, %v3063
      %v3080 = vpack.c.bf16 %v3064, %v3064
      %v3081 = vpack.c.bf16 %v3065, %v3065
      %v3082 = vpack.c.bf16 %v3066, %v3066
      %v3083 = vpack.c.bf16 %v3067, %v3067
      %v3084 = vpack.c.bf16 %v3068, %v3068
      %v3085 = vpack.c.bf16 %v3069, %v3069
      %v3086 = vpack.c.bf16 %v3070, %v3070
      %v3087 = vpack.c.bf16 %v3071, %v3071
      %v3088 = vpack.c.bf16 %v3072, %v3072
      %v3089 = vpack.c.bf16 %v3073, %v3073
      %v3090 = vpack.c.bf16 %v3074, %v3074
      %v3091 = vpack.c.bf16 %v3075, %v3075
      %3092 = vst [vmem:[%s248] sm:$0xf] %v3076
      %3093 = vst [vmem:[%s248 + $0x4] sm:$0xf] %v3077
      %3094 = vst [vmem:[%s248 + $0x8] sm:$0xf] %v3078
      %3095 = vst [vmem:[%s248 + $0xc] sm:$0xf] %v3079
      %3096 = vst [vmem:[%s248 + $0x10] sm:$0xf] %v3080
      %3097 = vst [vmem:[%s248 + $0x14] sm:$0xf] %v3081
      %3098 = vst [vmem:[%s248 + $0x18] sm:$0xf] %v3082
      %3099 = vst [vmem:[%s248 + $0x1c] sm:$0xf] %v3083
      %3100 = vst [vmem:[%s248 + $0x20] sm:$0xf] %v3084
      %3101 = vst [vmem:[%s248 + $0x24] sm:$0xf] %v3085
      %3102 = vst [vmem:[%s248 + $0x28] sm:$0xf] %v3086
      %3103 = vst [vmem:[%s248 + $0x2c] sm:$0xf] %v3087
      %3104 = vst [vmem:[%s248 + $0x30] sm:$0xf] %v3088
      %3105 = vst [vmem:[%s248 + $0x34] sm:$0xf] %v3089
      %3106 = vst [vmem:[%s248 + $0x38] sm:$0xf] %v3090
      %3107 = vst [vmem:[%s248 + $0x3c] sm:$0xf] %v3091
      %s3108 = smul.u32 8, %s21
      %p3109 = scmp.lt.s32.totalorder %s20, 1
      %s3110 = scalar_select %p3109, %s20, 1
      %p3111 = scmp.lt.s32.totalorder %s3108, 15
      %s3112 = scalar_select %p3111, %s3108, 15
      %s3113 = smul.addr %s3112, 2
      %s3114 = smul.addr %s3110, 32
      %s3115 = sadd.s32 %s3113, %s3114
      %s3116 = smul.addr %s3115, 4
      %s3117 = scalar_lea.vmem %s5, %s3116
      // Predicated region
      $region41: #{basic_block_pallas.1} parent=39 // pred_check
        %p3118 = pneg %p158
      $region42: #{basic_block_pallas.1} parent=39 // pred_check_branch
        %3120 = sbr.rel (%p3118) target = $region44
      $region43: #{basic_block_pallas.1} parent=39 // pred_region
        %s3121 = smul.u32 8, %s21
      $region44: #{basic_block_pallas.1} parent=39 // pred_fallthru
        _
    $region40: #{basic_block_pallas.1} parent=5 // pred_fallthru
      _
    %p3122 = scmp.le.s32.totalorder 2, %s11
    // Predicated region
    $region45: #{basic_block_pallas.1} parent=5 // pred_check
      %p3123 = pneg %p3122
    $region46: #{basic_block_pallas.1} parent=5 // pred_check_branch
      %3125 = sbr.rel (%p3123) target = $region48
    $region47: #{basic_block_pallas.1} parent=5 // pred_region
      %s3126 = ssub.s32 %s11, 2
      // Predicated region
      $region49: #{basic_block_pallas.1} parent=47 // pred_check
        %p3127 = pneg %p164
      $region50: #{basic_block_pallas.1} parent=47 // pred_check_branch
        %3129 = sbr.rel (%p3127) target = $region52
      $region51: #{basic_block_pallas.1} parent=47 // pred_region
        %s3130 = smul.u32 8, %s23
        %p3131 = scmp.lt.s32.totalorder %s22, 1
        %s3132 = scalar_select %p3131, %s22, 1
        %p3133 = scmp.lt.s32.totalorder %s3130, 15
        %s3134 = scalar_select %p3133, %s3130, 15
        %s3135 = smul.addr %s3134, 2
        %s3136 = smul.addr %s3132, 32
        %s3137 = sadd.s32 %s3135, %s3136
        %s3138 = smul.addr %s3137, 4
        %s3139 = scalar_lea.vmem %s5, %s3138
      $region52: #{basic_block_pallas.1} parent=47 // pred_fallthru
        _
    $region48: #{basic_block_pallas.1} parent=5 // pred_fallthru
      _
  $region6: #{basic_block_pallas.1} parent=0 // loop_footer
    %s15 = sadd.s32 1, %s11
  $region7: #{basic_block_pallas.1} parent=0 // loop_footer_branch
    %10 = sbr.rel target = $region3
  $region8: #{basic_block_pallas.1} parent=0 // loop_exit
    _

// kernel: basic_block_pallas.1
$region0: #{basic_block_pallas.1}
  #allocation0 [shape = 'u32[]', space=smem, size = 0x4, offset = 0x4, fixed_abs, tag = 'smem constant byte address 0x4 - core index']
  #allocation1 [shape = 'u32[72,128]{1,0:T(1,128)}', space=vmem, size = 0x9000, scoped, tag = 'internal scratch']
  %s0 = inlined_call_operand.vmem [shape: bf16[2,20,16,128], index: 0, kind: input, shape index: {}]
  %s1 = inlined_call_operand.vmem [shape: bf16[3,384,128], index: 1, kind: input, shape index: {}]
  %s2 = inlined_call_operand.vmem [shape: bf16[3,384,128], index: 2, kind: input, shape index: {}]
  %s3 = inlined_call_operand.vmem [shape: f32[1,128], index: 3, kind: input, shape index: {}]
  %s4 = inlined_call_operand.vmem [shape: f32[1,128], index: 4, kind: input, shape index: {}]
  %s5 = inlined_call_operand.vmem [shape: bf16[2,16,16,128], index: 5, kind: output, shape index: {}]
  %s6 = sld [smem:[#allocation0]]
  $region53: #{basic_block_pallas.1} parent=0
    _
  %s8 = ssub.s32 1, %s6
  %s9 = scalar_select 0, %s8, %s6
  loop: start=0, step=1, limit=6
  $region2: #{basic_block_pallas.1} parent=0 // loop_pre_header
    _
  $region3: #{basic_block_pallas.1} parent=0 // loop_header
    %s11 = sphi 0, %s15
    %p12 = scmp.ge.s32.totalorder %s11, 6
    %s18 = sphi 0, %s30
    %s19 = sphi 0, %s26
    %s20 = sphi 0, %s18
    %s21 = sphi 0, %s19
    %s22 = sphi 0, %s20
    %s23 = sphi 0, %s21
    %s33 = sphi 0, %s35
    %s36 = sphi 0, %s33
    %s37 = sphi 0, %s36
    %s53 = sphi 0, %s37
    %s57 = sphi 0, %s57
    %s59 = sphi 0, %s57
    %s60 = sphi 0, %s59
    %s74 = sphi 0, %s60
    %s78 = sphi 0, %s78
    %s80 = sphi 0, %s78
    %s81 = sphi 0, %s80
    %s95 = sphi 0, %s81
    %s99 = sphi 0, %s99
    %s101 = sphi 0, %s99
    %s102 = sphi 0, %s101
    %s116 = sphi 0, %s102
    %s120 = sphi 0, %s120
    %s122 = sphi 0, %s120
    %s123 = sphi 0, %s122
    %s137 = sphi 0, %s123
    %s145 = sphi 0, %s147
    %s148 = sphi 0, %s145
    %s149 = sphi 0, %s148
    %s165 = sphi 0, %s149
  $region4: #{basic_block_pallas.1} parent=0 // loop_header_branch
    %14 = sbr.rel (%p12) target = $region8
  $region5: #{basic_block_pallas.1} parent=0 // loop_body
    %s16 = ssub.s32 %s11, 1
    %s17 = ssub.s32 %s11, 2
    %s24 = sadd.s32 1, %s19
    %p25 = scmp.ge.s32.totalorder %s24, 2
    %s26 = scalar_select %p25, 0, %s24
    %s27 = sadd.s32 1, %s18
    %s28 = scalar_select %p25, %s27, %s18
    %p29 = scmp.ge.s32.totalorder %s28, 2
    %s30 = scalar_select %p29, 0, %s28
    %s31 = ssub.s32 %s18, %s30
    %p32 = scmp.eq.s32.totalorder %s31, 0
    %s34 = sadd.s32 %s33, 1
    %s35 = scalar_select %p32, %s33, %s34
    %p38 = pneg %p32
    %p39 = scmp.eq.s32.totalorder %s11, 3
    %p40 = por %p38, %p39
    %p41 = scmp.ne.s32.totalorder %s33, %s36
    %p42 = scmp.eq.s32.totalorder %s11, 0
    %p43 = por %p41, %p42
    %p44 = scmp.ne.s32.totalorder %s33, %s36
    %p45 = scmp.eq.s32.totalorder %s16, 3
    %p46 = por %p44, %p45
    %p47 = scmp.ne.s32.totalorder %s36, %s37
    %p48 = scmp.eq.s32.totalorder %s16, 0
    %p49 = por %p47, %p48
    %p50 = scmp.ne.s32.totalorder %s36, %s37
    %p51 = scmp.eq.s32.totalorder %s17, 3
    %p52 = por %p50, %p51
    %p54 = scmp.ne.s32.totalorder %s37, %s53
    %p55 = scmp.eq.s32.totalorder %s17, 0
    %p56 = por %p54, %p55
    %s58 = sadd.s32 %s57, 1
    %p61 = scmp.eq.s32.totalorder %s11, 3
    %p62 = scmp.ne.s32.totalorder %s57, %s59
    %p63 = scmp.eq.s32.totalorder %s11, 0
    %p64 = por %p62, %p63
    %p65 = scmp.ne.s32.totalorder %s57, %s59
    %p66 = scmp.eq.s32.totalorder %s16, 3
    %p67 = por %p65, %p66
    %p68 = scmp.ne.s32.totalorder %s59, %s60
    %p69 = scmp.eq.s32.totalorder %s16, 0
    %p70 = por %p68, %p69
    %p71 = scmp.ne.s32.totalorder %s59, %s60
    %p72 = scmp.eq.s32.totalorder %s17, 3
    %p73 = por %p71, %p72
    %p75 = scmp.ne.s32.totalorder %s60, %s74
    %p76 = scmp.eq.s32.totalorder %s17, 0
    %p77 = por %p75, %p76
    %s79 = sadd.s32 %s78, 1
    %p82 = scmp.eq.s32.totalorder %s11, 3
    %p83 = scmp.ne.s32.totalorder %s78, %s80
    %p84 = scmp.eq.s32.totalorder %s11, 0
    %p85 = por %p83, %p84
    %p86 = scmp.ne.s32.totalorder %s78, %s80
    %p87 = scmp.eq.s32.totalorder %s16, 3
    %p88 = por %p86, %p87
    %p89 = scmp.ne.s32.totalorder %s80, %s81
    %p90 = scmp.eq.s32.totalorder %s16, 0
    %p91 = por %p89, %p90
    %p92 = scmp.ne.s32.totalorder %s80, %s81
    %p93 = scmp.eq.s32.totalorder %s17, 3
    %p94 = por %p92, %p93
    %p96 = scmp.ne.s32.totalorder %s81, %s95
    %p97 = scmp.eq.s32.totalorder %s17, 0
    %p98 = por %p96, %p97
    %s100 = sadd.s32 %s99, 1
    %p103 = scmp.eq.s32.totalorder %s11, 3
    %p104 = scmp.ne.s32.totalorder %s99, %s101
    %p105 = scmp.eq.s32.totalorder %s11, 0
    %p106 = por %p104, %p105
    %p107 = scmp.ne.s32.totalorder %s99, %s101
    %p108 = scmp.eq.s32.totalorder %s16, 3
    %p109 = por %p107, %p108
    %p110 = scmp.ne.s32.totalorder %s101, %s102
    %p111 = scmp.eq.s32.totalorder %s16, 0
    %p112 = por %p110, %p111
    %p113 = scmp.ne.s32.totalorder %s101, %s102
    %p114 = scmp.eq.s32.totalorder %s17, 3
    %p115 = por %p113, %p114
    %p117 = scmp.ne.s32.totalorder %s102, %s116
    %p118 = scmp.eq.s32.totalorder %s17, 0
    %p119 = por %p117, %p118
    %s121 = sadd.s32 %s120, 1
    %p124 = scmp.eq.s32.totalorder %s11, 3
    %p125 = scmp.ne.s32.totalorder %s120, %s122
    %p126 = scmp.eq.s32.totalorder %s11, 0
    %p127 = por %p125, %p126
    %p128 = scmp.ne.s32.totalorder %s120, %s122
    %p129 = scmp.eq.s32.totalorder %s16, 3
    %p130 = por %p128, %p129
    %p131 = scmp.ne.s32.totalorder %s122, %s123
    %p132 = scmp.eq.s32.totalorder %s16, 0
    %p133 = por %p131, %p132
    %p134 = scmp.ne.s32.totalorder %s122, %s123
    %p135 = scmp.eq.s32.totalorder %s17, 3
    %p136 = por %p134, %p135
    %p138 = scmp.ne.s32.totalorder %s123, %s137
    %p139 = scmp.eq.s32.totalorder %s17, 0
    %p140 = por %p138, %p139
    %s141 = ssub.s32 %s18, %s30
    %s142 = ssub.s32 %s19, %s26
    %s143 = sor.u32 %s141, %s142
    %p144 = scmp.eq.s32.totalorder %s143, 0
    %s146 = sadd.s32 %s145, 1
    %s147 = scalar_select %p144, %s145, %s146
    %p150 = pneg %p144
    %p151 = scmp.eq.s32.totalorder %s11, 3
    %p152 = por %p150, %p151
    %p153 = scmp.ne.s32.totalorder %s145, %s148
    %p154 = scmp.eq.s32.totalorder %s11, 0
    %p155 = por %p153, %p154
    %p156 = scmp.ne.s32.totalorder %s145, %s148
    %p157 = scmp.eq.s32.totalorder %s16, 3
    %p158 = por %p156, %p157
    %p159 = scmp.ne.s32.totalorder %s148, %s149
    %p160 = scmp.eq.s32.totalorder %s16, 0
    %p161 = por %p159, %p160
    %p162 = scmp.ne.s32.totalorder %s148, %s149
    %p163 = scmp.eq.s32.totalorder %s17, 3
    %p164 = por %p162, %p163
    %p166 = scmp.ne.s32.totalorder %s149, %s165
    %p167 = scmp.eq.s32.totalorder %s17, 0
    %p168 = por %p166, %p167
    %p169 = scmp.le.s32.totalorder 1, %s11
    %p170 = scmp.lt.s32.totalorder %s11, 5
    %p171 = pnand %p169, %p170
    %p172 = pneg %p171
    // Predicated region
    $region9: #{basic_block_pallas.1} parent=5 // pred_check
      _
    $region10: #{basic_block_pallas.1} parent=5 // pred_check_branch
      %174 = sbr.rel (%p171) target = $region12
    $region11: #{basic_block_pallas.1} parent=5 // pred_region
      %s175 = ssub.s32 %s11, 1
      // Predicated region
      $region13: #{basic_block_pallas.1} parent=11 // pred_check
        %p176 = pneg %p70
      $region14: #{basic_block_pallas.1} parent=11 // pred_check_branch
        %178 = sbr.rel (%p176) target = $region16
      $region15: #{basic_block_pallas.1} parent=11 // pred_region
        _
      $region16: #{basic_block_pallas.1} parent=11 // pred_fallthru
        _
      // Predicated region
      $region17: #{basic_block_pallas.1} parent=11 // pred_check
        %p179 = pneg %p91
      $region18: #{basic_block_pallas.1} parent=11 // pred_check_branch
        %181 = sbr.rel (%p179) target = $region20
      $region19: #{basic_block_pallas.1} parent=11 // pred_region
        _
      $region20: #{basic_block_pallas.1} parent=11 // pred_fallthru
        _
      // Predicated region
      $region21: #{basic_block_pallas.1} parent=11 // pred_check
        %p182 = pneg %p112
      $region22: #{basic_block_pallas.1} parent=11 // pred_check_branch
        %184 = sbr.rel (%p182) target = $region24
      $region23: #{basic_block_pallas.1} parent=11 // pred_region
        _
      $region24: #{basic_block_pallas.1} parent=11 // pred_fallthru
        _
      // Predicated region
      $region25: #{basic_block_pallas.1} parent=11 // pred_check
        %p185 = pneg %p133
      $region26: #{basic_block_pallas.1} parent=11 // pred_check_branch
        %187 = sbr.rel (%p185) target = $region28
      $region27: #{basic_block_pallas.1} parent=11 // pred_region
        _
      $region28: #{basic_block_pallas.1} parent=11 // pred_fallthru
        _
    $region12: #{basic_block_pallas.1} parent=5 // pred_fallthru
      _
    %p188 = scmp.lt.s32.totalorder %s11, 4
    // Predicated region
    $region29: #{basic_block_pallas.1} parent=5 // pred_check
      %p189 = pneg %p188
    $region30: #{basic_block_pallas.1} parent=5 // pred_check_branch
      %191 = sbr.rel (%p189) target = $region32
    $region31: #{basic_block_pallas.1} parent=5 // pred_region
      // Predicated region
      $region33: #{basic_block_pallas.1} parent=31 // pred_check
        %p192 = pneg %p43
      $region34: #{basic_block_pallas.1} parent=31 // pred_check_branch
        %194 = sbr.rel (%p192) target = $region36
      $region35: #{basic_block_pallas.1} parent=31 // pred_region
        %p195 = scmp.lt.s32.totalorder %s18, 1
        %s196 = scalar_select %p195, %s18, 1
        %s197 = smul.addr %s196, 40
        %s198 = smul.addr %s197, 4
        %s199 = scalar_lea.vmem %s0, %s198
      $region36: #{basic_block_pallas.1} parent=31 // pred_fallthru
        _
    $region32: #{basic_block_pallas.1} parent=5 // pred_fallthru
      _
    %p200 = scmp.le.s32.totalorder 1, %s11
    %p201 = scmp.lt.s32.totalorder %s11, 5
    %p202 = pnand %p200, %p201
    %p203 = pneg %p202
    // Predicated region
    $region37: #{basic_block_pallas.1} parent=5 // pred_check
      _
    $region38: #{basic_block_pallas.1} parent=5 // pred_check_branch
      %205 = sbr.rel (%p202) target = $region40
    $region39: #{basic_block_pallas.1} parent=5 // pred_region
      %s206 = ssub.s32 %s11, 1
      %p207 = scmp.lt.s32.totalorder %s20, 1
      %s208 = scalar_select %p207, %s20, 1
      %s209 = smul.addr %s208, 40
      %s210 = smul.addr %s209, 4
      %s211 = scalar_lea.vmem %s0, %s210
      %p212 = pneg %p49
      %p213 = pneg %p46
      %p214 = pneg %p70
      %p215 = pneg %p67
      %p216 = pneg %p91
      %p217 = pneg %p88
      %p218 = pneg %p112
      %p219 = pneg %p109
      %p220 = pneg %p133
      %p221 = pneg %p130
      %p222 = pneg %p161
      %p223 = pneg %p158
      %s224 = smul.u32 8, %s21
      %p225 = scmp.lt.s32.totalorder %s20, 1
      %s226 = scalar_select %p225, %s20, 1
      %p227 = scmp.lt.s32.totalorder %s224, 15
      %s228 = scalar_select %p227, %s224, 15
      %s229 = smul.addr %s228, 2
      %s230 = smul.addr %s226, 32
      %s231 = sadd.s32 %s229, %s230
      %s232 = smul.addr %s231, 4
      %s233 = scalar_lea.vmem %s5, %s232
      %p234 = scmp.lt.s32.totalorder %s20, 1
      %s235 = scalar_select %p234, %s20, 1
      %s236 = smul.addr %s235, 40
      %s237 = smul.addr %s236, 4
      %s238 = scalar_lea.vmem %s0, %s237
      %s239 = smul.u32 8, %s21
      %p240 = scmp.lt.s32.totalorder %s20, 1
      %s241 = scalar_select %p240, %s20, 1
      %p242 = scmp.lt.s32.totalorder %s239, 15
      %s243 = scalar_select %p242, %s239, 15
      %s244 = smul.addr %s243, 2
      %s245 = smul.addr %s241, 32
      %s246 = sadd.s32 %s244, %s245
      %s247 = smul.addr %s246, 4
      %s248 = scalar_lea.vmem %s5, %s247
      %s249 = smul.u32 8, %s21
      %s250 = smul.u32 %s21, 8
      %s251 = smul.u32 %s250, 2
      %s252 = smul.addr %s251, 4
      %s253 = scalar_lea.vmem %s238, %s252
      %v254 = vld [vmem:[%s253] sm:$0xf]
      %v255 = vld [vmem:[%s253 + $0x4] sm:$0xf]
      %v256 = vld [vmem:[%s253 + $0x8] sm:$0xf]
      %v257 = vld [vmem:[%s253 + $0xc] sm:$0xf]
      %v258 = vld [vmem:[%s253 + $0x10] sm:$0xf]
      %v259 = vld [vmem:[%s253 + $0x14] sm:$0xf]
      %v260 = vld [vmem:[%s253 + $0x18] sm:$0xf]
      %v261 = vld [vmem:[%s253 + $0x1c] sm:$0xf]
      %v262 = vld [vmem:[%s253 + $0x20] sm:$0xf]
      %v263 = vld [vmem:[%s253 + $0x24] sm:$0xf]
      %v264 = vld [vmem:[%s253 + $0x28] sm:$0xf]
      %v265 = vld [vmem:[%s253 + $0x2c] sm:$0xf]
      %v266 = vld [vmem:[%s253 + $0x30] sm:$0xf]
      %v267 = vld [vmem:[%s253 + $0x34] sm:$0xf]
      %v268 = vld [vmem:[%s253 + $0x38] sm:$0xf]
      %v269 = vld [vmem:[%s253 + $0x3c] sm:$0xf]
      %v270 = vld [vmem:[%s253 + $0x40] sm:$0xf]
      %v271 = vld [vmem:[%s253 + $0x44] sm:$0xf]
      %v272 = vld [vmem:[%s253 + $0x48] sm:$0xf]
      %v273 = vld [vmem:[%s253 + $0x4c] sm:$0xf]
      %v274 = vld [vmem:[%s253 + $0x50] sm:$0xf]
      %v275 = vld [vmem:[%s253 + $0x54] sm:$0xf]
      %v276 = vld [vmem:[%s253 + $0x58] sm:$0xf]
      %v277 = vld [vmem:[%s253 + $0x5c] sm:$0xf]
      %v298 = vunpack.c.l.b16 %v254
      %v299 = vunpack.c.l.b16 %v255
      %v300 = vunpack.c.l.b16 %v256
      %v301 = vunpack.c.l.b16 %v257
      %v302 = vunpack.c.l.b16 %v258
      %v303 = vunpack.c.l.b16 %v259
      %v304 = vunpack.c.l.b16 %v260
      %v305 = vunpack.c.l.b16 %v261
      %v306 = vunpack.c.l.b16 %v262
      %v307 = vunpack.c.l.b16 %v263
      %v308 = vunpack.c.l.b16 %v264
      %v309 = vunpack.c.l.b16 %v265
      %v310 = vunpack.c.l.b16 %v266
      %v311 = vunpack.c.l.b16 %v267
      %v312 = vunpack.c.l.b16 %v268
      %v313 = vunpack.c.l.b16 %v269
      %v314 = vunpack.c.l.b16 %v270
      %v315 = vunpack.c.l.b16 %v271
      %v316 = vunpack.c.l.b16 %v272
      %v317 = vunpack.c.l.b16 %v273
      %v318 = vpack.c.b16 %v299, %v298
      %v319 = vpack.c.b16 %v301, %v300
      %v320 = vpack.c.b16 %v303, %v302
      %v321 = vpack.c.b16 %v305, %v304
      %v322 = vpack.c.b16 %v307, %v306
      %v323 = vpack.c.b16 %v309, %v308
      %v324 = vpack.c.b16 %v311, %v310
      %v325 = vpack.c.b16 %v313, %v312
      %v326 = vpack.c.b16 %v315, %v314
      %v327 = vpack.c.b16 %v317, %v316
      %v340 = vunpack.c.l.b16 %v274
      %v341 = vunpack.c.l.b16 %v275
      %v342 = vpack.c.b16 %v341, %v340
      %v346 = vunpack.c.l.b16 %v276
      %v347 = vunpack.c.l.b16 %v277
      %v348 = vpack.c.b16 %v347, %v346
      %v350 = vlaneseq
      %v351 = vshrl.u32 %v350, 7
      %v352 = vadd.s32 %v351, 8
      %v353 = vld [vmem:[%s1] sm:$0xf]
      %v354 = vld [vmem:[%s1 + $0x4] sm:$0xf]
      %v355 = vld [vmem:[%s1 + $0x8] sm:$0xf]
      %v356 = vld [vmem:[%s1 + $0xc] sm:$0xf]
      %v357 = vld [vmem:[%s1 + $0x10] sm:$0xf]
      %v358 = vld [vmem:[%s1 + $0x14] sm:$0xf]
      %v359 = vld [vmem:[%s1 + $0x18] sm:$0xf]
      %v360 = vld [vmem:[%s1 + $0x1c] sm:$0xf]
      %v361 = vld [vmem:[%s1 + $0x20] sm:$0xf]
      %v362 = vld [vmem:[%s1 + $0x24] sm:$0xf]
      %v363 = vld [vmem:[%s1 + $0x28] sm:$0xf]
      %v364 = vld [vmem:[%s1 + $0x2c] sm:$0xf]
      %v365 = vld [vmem:[%s1 + $0x30] sm:$0xf]
      %v366 = vld [vmem:[%s1 + $0x34] sm:$0xf]
      %v367 = vld [vmem:[%s1 + $0x38] sm:$0xf]
      %v368 = vld [vmem:[%s1 + $0x3c] sm:$0xf]
      %v369 = vld [vmem:[%s1 + $0x40] sm:$0xf]
      %v370 = vld [vmem:[%s1 + $0x44] sm:$0xf]
      %v371 = vld [vmem:[%s1 + $0x48] sm:$0xf]
      %v372 = vld [vmem:[%s1 + $0x4c] sm:$0xf]
      %v373 = vld [vmem:[%s1 + $0x50] sm:$0xf]
      %v374 = vld [vmem:[%s1 + $0x54] sm:$0xf]
      %v375 = vld [vmem:[%s1 + $0x58] sm:$0xf]
      %v376 = vld [vmem:[%s1 + $0x5c] sm:$0xf]
      %v377 = vld [vmem:[%s1 + $0x60] sm:$0xf]
      %v378 = vld [vmem:[%s1 + $0x64] sm:$0xf]
      %v379 = vld [vmem:[%s1 + $0x68] sm:$0xf]
      %v380 = vld [vmem:[%s1 + $0x6c] sm:$0xf]
      %v381 = vld [vmem:[%s1 + $0x70] sm:$0xf]
      %v382 = vld [vmem:[%s1 + $0x74] sm:$0xf]
      %v383 = vld [vmem:[%s1 + $0x78] sm:$0xf]
      %v384 = vld [vmem:[%s1 + $0x7c] sm:$0xf]
      %v385 = vld [vmem:[%s1 + $0x80] sm:$0xf]
      %v386 = vld [vmem:[%s1 + $0x84] sm:$0xf]
      %v387 = vld [vmem:[%s1 + $0x88] sm:$0xf]
      %v388 = vld [vmem:[%s1 + $0x8c] sm:$0xf]
      %v389 = vld [vmem:[%s1 + $0x90] sm:$0xf]
      %v390 = vld [vmem:[%s1 + $0x94] sm:$0xf]
      %v391 = vld [vmem:[%s1 + $0x98] sm:$0xf]
      %v392 = vld [vmem:[%s1 + $0x9c] sm:$0xf]
      %v393 = vld [vmem:[%s1 + $0xa0] sm:$0xf]
      %v394 = vld [vmem:[%s1 + $0xa4] sm:$0xf]
      %v395 = vld [vmem:[%s1 + $0xa8] sm:$0xf]
      %v396 = vld [vmem:[%s1 + $0xac] sm:$0xf]
      %v397 = vld [vmem:[%s1 + $0xb0] sm:$0xf]
      %v398 = vld [vmem:[%s1 + $0xb4] sm:$0xf]
      %v399 = vld [vmem:[%s1 + $0xb8] sm:$0xf]
      %v400 = vld [vmem:[%s1 + $0xbc] sm:$0xf]
      %v449 = vunpack.c.l.b16 %v353
      %v450 = vunpack.c.l.b16 %v354
      %v451 = vunpack.c.l.b16 %v355
      %v452 = vunpack.c.l.b16 %v356
      %v453 = vunpack.c.l.b16 %v357
      %v454 = vunpack.c.l.b16 %v358
      %v455 = vunpack.c.l.b16 %v359
      %v456 = vunpack.c.l.b16 %v360
      %v457 = vunpack.c.l.b16 %v361
      %v458 = vunpack.c.l.b16 %v362
      %v459 = vunpack.c.l.b16 %v363
      %v460 = vunpack.c.l.b16 %v364
      %v461 = vunpack.c.l.b16 %v365
      %v462 = vunpack.c.l.b16 %v366
      %v463 = vunpack.c.l.b16 %v367
      %v464 = vunpack.c.l.b16 %v368
      %v465 = vunpack.c.l.b16 %v369
      %v466 = vunpack.c.l.b16 %v370
      %v467 = vunpack.c.l.b16 %v371
      %v468 = vunpack.c.l.b16 %v372
      %v469 = vunpack.c.l.b16 %v373
      %v470 = vunpack.c.l.b16 %v374
      %v471 = vunpack.c.l.b16 %v375
      %v472 = vunpack.c.l.b16 %v376
      %v473 = vunpack.c.l.b16 %v377
      %v474 = vunpack.c.l.b16 %v378
      %v475 = vunpack.c.l.b16 %v379
      %v476 = vunpack.c.l.b16 %v380
      %v477 = vunpack.c.l.b16 %v381
      %v478 = vunpack.c.l.b16 %v382
      %v479 = vunpack.c.l.b16 %v383
      %v480 = vunpack.c.l.b16 %v384
      %v481 = vunpack.c.l.b16 %v385
      %v482 = vunpack.c.l.b16 %v386
      %v483 = vunpack.c.l.b16 %v387
      %v484 = vunpack.c.l.b16 %v388
      %v485 = vunpack.c.l.b16 %v389
      %v486 = vunpack.c.l.b16 %v390
      %v487 = vunpack.c.l.b16 %v391
      %v488 = vunpack.c.l.b16 %v392
      %v489 = vunpack.c.l.b16 %v393
      %v490 = vunpack.c.l.b16 %v394
      %v491 = vunpack.c.l.b16 %v395
      %v492 = vunpack.c.l.b16 %v396
      %v493 = vunpack.c.l.b16 %v397
      %v494 = vunpack.c.l.b16 %v398
      %v495 = vunpack.c.l.b16 %v399
      %v496 = vunpack.c.l.b16 %v400
      %v497 = vpack.c.b16 %v450, %v449
      %v498 = vpack.c.b16 %v452, %v451
      %v499 = vpack.c.b16 %v454, %v453
      %v500 = vpack.c.b16 %v456, %v455
      %v501 = vpack.c.b16 %v458, %v457
      %v502 = vpack.c.b16 %v460, %v459
      %v503 = vpack.c.b16 %v462, %v461
      %v504 = vpack.c.b16 %v464, %v463
      %v505 = vpack.c.b16 %v466, %v465
      %v506 = vpack.c.b16 %v468, %v467
      %v507 = vpack.c.b16 %v470, %v469
      %v508 = vpack.c.b16 %v472, %v471
      %v509 = vpack.c.b16 %v474, %v473
      %v510 = vpack.c.b16 %v476, %v475
      %v511 = vpack.c.b16 %v478, %v477
      %v512 = vpack.c.b16 %v480, %v479
      %v513 = vpack.c.b16 %v482, %v481
      %v514 = vpack.c.b16 %v484, %v483
      %v515 = vpack.c.b16 %v486, %v485
      %v516 = vpack.c.b16 %v488, %v487
      %v517 = vpack.c.b16 %v490, %v489
      %v518 = vpack.c.b16 %v492, %v491
      %v519 = vpack.c.b16 %v494, %v493
      %v520 = vpack.c.b16 %v496, %v495
      %545 = vmatpush.bf16.msra.mxu0 %v504
      %546 = vmatpush.bf16.msra.mxu0 %v503
      %547 = vmatpush.bf16.msra.mxu0 %v502
      %548 = vmatpush.bf16.msra.mxu0 %v501
      %549 = vmatpush.bf16.msra.mxu0 %v500
      %550 = vmatpush.bf16.msra.mxu0 %v499
      %551 = vmatpush.bf16.msra.mxu0 %v498
      %552 = vmatpush.bf16.msra.mxu0 %v497
      %553 = vmatmul.bf16.gmra.mxu0 %v318
      %v554 = vpop.f32.mrf.mxu0
      %v555 = vadd.f32 0.0, %v554
      %v556 = vpop.f32.mrf.mxu0
      %v557 = vadd.f32 0.0, %v556
      %558 = vmatmul.bf16.gmra.mxu0 %v319
      %v559 = vpop.f32.mrf.mxu0
      %v560 = vadd.f32 0.0, %v559
      %v561 = vpop.f32.mrf.mxu0
      %v562 = vadd.f32 0.0, %v561
      %563 = vmatmul.bf16.gmra.mxu0 %v320
      %v564 = vpop.f32.mrf.mxu0
      %v565 = vadd.f32 0.0, %v564
      %v566 = vpop.f32.mrf.mxu0
      %v567 = vadd.f32 0.0, %v566
      %568 = vmatmul.bf16.gmra.mxu0 %v321
      %v569 = vpop.f32.mrf.mxu0
      %v570 = vadd.f32 0.0, %v569
      %v571 = vpop.f32.mrf.mxu0
      %v572 = vadd.f32 0.0, %v571
      %573 = vmatmul.bf16.gmra.mxu0 %v322
      %v574 = vpop.f32.mrf.mxu0
      %v575 = vadd.f32 0.0, %v574
      %v576 = vpop.f32.mrf.mxu0
      %v577 = vadd.f32 0.0, %v576
      %578 = vmatmul.bf16.gmra.mxu0 %v323
      %v579 = vpop.f32.mrf.mxu0
      %v580 = vadd.f32 0.0, %v579
      %v581 = vpop.f32.mrf.mxu0
      %v582 = vadd.f32 0.0, %v581
      %583 = vmatmul.bf16.gmra.mxu0 %v324
      %v584 = vpop.f32.mrf.mxu0
      %v585 = vadd.f32 0.0, %v584
      %v586 = vpop.f32.mrf.mxu0
      %v587 = vadd.f32 0.0, %v586
      %588 = vmatmul.bf16.gmra.mxu0 %v325
      %v589 = vpop.f32.mrf.mxu0
      %v590 = vadd.f32 0.0, %v589
      %v591 = vpop.f32.mrf.mxu0
      %v592 = vadd.f32 0.0, %v591
      %593 = vmatmul.bf16.gmra.mxu0 %v326
      %v594 = vpop.f32.mrf.mxu0
      %v595 = vadd.f32 0.0, %v594
      %v596 = vpop.f32.mrf.mxu0
      %v597 = vadd.f32 0.0, %v596
      %598 = vmatmul.bf16.gmra.mxu0 %v327
      %v599 = vpop.f32.mrf.mxu0
      %v600 = vadd.f32 0.0, %v599
      %v601 = vpop.f32.mrf.mxu0
      %v602 = vadd.f32 0.0, %v601
      %603 = vdwg.mxu0
      %604 = vmatpush.bf16.msra.mxu0 %v512
      %605 = vmatpush.bf16.msra.mxu0 %v511
      %606 = vmatpush.bf16.msra.mxu0 %v510
      %607 = vmatpush.bf16.msra.mxu0 %v509
      %608 = vmatpush.bf16.msra.mxu0 %v508
      %609 = vmatpush.bf16.msra.mxu0 %v507
      %610 = vmatpush.bf16.msra.mxu0 %v506
      %611 = vmatpush.bf16.msra.mxu0 %v505
      %612 = vmatmul.bf16.gmra.mxu0 %v319
      %v613 = vpop.f32.mrf.mxu0
      %v614 = vadd.f32 %v555, %v613
      %v615 = vpop.f32.mrf.mxu0
      %v616 = vadd.f32 %v557, %v615
      %617 = vmatmul.bf16.gmra.mxu0 %v320
      %v618 = vpop.f32.mrf.mxu0
      %v619 = vadd.f32 %v560, %v618
      %v620 = vpop.f32.mrf.mxu0
      %v621 = vadd.f32 %v562, %v620
      %622 = vmatmul.bf16.gmra.mxu0 %v321
      %v623 = vpop.f32.mrf.mxu0
      %v624 = vadd.f32 %v565, %v623
      %v625 = vpop.f32.mrf.mxu0
      %v626 = vadd.f32 %v567, %v625
      %627 = vmatmul.bf16.gmra.mxu0 %v322
      %v628 = vpop.f32.mrf.mxu0
      %v629 = vadd.f32 %v570, %v628
      %v630 = vpop.f32.mrf.mxu0
      %v631 = vadd.f32 %v572, %v630
      %632 = vmatmul.bf16.gmra.mxu0 %v323
      %v633 = vpop.f32.mrf.mxu0
      %v634 = vadd.f32 %v575, %v633
      %v635 = vpop.f32.mrf.mxu0
      %v636 = vadd.f32 %v577, %v635
      %637 = vmatmul.bf16.gmra.mxu0 %v324
      %v638 = vpop.f32.mrf.mxu0
      %v639 = vadd.f32 %v580, %v638
      %v640 = vpop.f32.mrf.mxu0
      %v641 = vadd.f32 %v582, %v640
      %642 = vmatmul.bf16.gmra.mxu0 %v325
      %v643 = vpop.f32.mrf.mxu0
      %v644 = vadd.f32 %v585, %v643
      %v645 = vpop.f32.mrf.mxu0
      %v646 = vadd.f32 %v587, %v645
      %647 = vmatmul.bf16.gmra.mxu0 %v326
      %v648 = vpop.f32.mrf.mxu0
      %v649 = vadd.f32 %v590, %v648
      %v650 = vpop.f32.mrf.mxu0
      %v651 = vadd.f32 %v592, %v650
      %652 = vmatmul.bf16.gmra.mxu0 %v327
      %v653 = vpop.f32.mrf.mxu0
      %v654 = vadd.f32 %v595, %v653
      %v655 = vpop.f32.mrf.mxu0
      %v656 = vadd.f32 %v597, %v655
      %657 = vmatmul.bf16.gmra.mxu0 %v342
      %v658 = vpop.f32.mrf.mxu0
      %v659 = vadd.f32 %v600, %v658
      %v660 = vpop.f32.mrf.mxu0
      %v661 = vadd.f32 %v602, %v660
      %662 = vdwg.mxu0
      %663 = vmatpush.bf16.msra.mxu0 %v520
      %664 = vmatpush.bf16.msra.mxu0 %v519
      %665 = vmatpush.bf16.msra.mxu0 %v518
      %666 = vmatpush.bf16.msra.mxu0 %v517
      %667 = vmatpush.bf16.msra.mxu0 %v516
      %668 = vmatpush.bf16.msra.mxu0 %v515
      %669 = vmatpush.bf16.msra.mxu0 %v514
      %670 = vmatpush.bf16.msra.mxu0 %v513
      %671 = vmatmul.bf16.gmra.mxu0 %v320
      %v672 = vpop.f32.mrf.mxu0
      %v673 = vadd.f32 %v614, %v672
      %v674 = vpop.f32.mrf.mxu0
      %v675 = vadd.f32 %v616, %v674
      %676 = vmatmul.bf16.gmra.mxu0 %v321
      %v677 = vpop.f32.mrf.mxu0
      %v678 = vadd.f32 %v619, %v677
      %v679 = vpop.f32.mrf.mxu0
      %v680 = vadd.f32 %v621, %v679
      %681 = vmatmul.bf16.gmra.mxu0 %v322
      %v682 = vpop.f32.mrf.mxu0
      %v683 = vadd.f32 %v624, %v682
      %v684 = vpop.f32.mrf.mxu0
      %v685 = vadd.f32 %v626, %v684
      %686 = vmatmul.bf16.gmra.mxu0 %v323
      %v687 = vpop.f32.mrf.mxu0
      %v688 = vadd.f32 %v629, %v687
      %v689 = vpop.f32.mrf.mxu0
      %v690 = vadd.f32 %v631, %v689
      %691 = vmatmul.bf16.gmra.mxu0 %v324
      %v692 = vpop.f32.mrf.mxu0
      %v693 = vadd.f32 %v634, %v692
      %v694 = vpop.f32.mrf.mxu0
      %v695 = vadd.f32 %v636, %v694
      %696 = vmatmul.bf16.gmra.mxu0 %v325
      %v697 = vpop.f32.mrf.mxu0
      %v698 = vadd.f32 %v639, %v697
      %v699 = vpop.f32.mrf.mxu0
      %v700 = vadd.f32 %v641, %v699
      %701 = vmatmul.bf16.gmra.mxu0 %v326
      %v702 = vpop.f32.mrf.mxu0
      %v703 = vadd.f32 %v644, %v702
      %v704 = vpop.f32.mrf.mxu0
      %v705 = vadd.f32 %v646, %v704
      %706 = vmatmul.bf16.gmra.mxu0 %v327
      %v707 = vpop.f32.mrf.mxu0
      %v708 = vadd.f32 %v649, %v707
      %v709 = vpop.f32.mrf.mxu0
      %v710 = vadd.f32 %v651, %v709
      %711 = vmatmul.bf16.gmra.mxu0 %v342
      %v712 = vpop.f32.mrf.mxu0
      %v713 = vadd.f32 %v654, %v712
      %v714 = vpop.f32.mrf.mxu0
      %v715 = vadd.f32 %v656, %v714
      %716 = vmatmul.bf16.gmra.mxu0 %v348
      %v717 = vpop.f32.mrf.mxu0
      %v718 = vadd.f32 %v659, %v717
      %v719 = vpop.f32.mrf.mxu0
      %v720 = vadd.f32 %v661, %v719
      %721 = vdwg.mxu0
      %s722 = scalar_lea.vmem %s1, 192
      %v723 = vld [vmem:[%s722] sm:$0xf]
      %v724 = vld [vmem:[%s722 + $0x4] sm:$0xf]
      %v725 = vld [vmem:[%s722 + $0x8] sm:$0xf]
      %v726 = vld [vmem:[%s722 + $0xc] sm:$0xf]
      %v727 = vld [vmem:[%s722 + $0x10] sm:$0xf]
      %v728 = vld [vmem:[%s722 + $0x14] sm:$0xf]
      %v729 = vld [vmem:[%s722 + $0x18] sm:$0xf]
      %v730 = vld [vmem:[%s722 + $0x1c] sm:$0xf]
      %v731 = vld [vmem:[%s722 + $0x20] sm:$0xf]
      %v732 = vld [vmem:[%s722 + $0x24] sm:$0xf]
      %v733 = vld [vmem:[%s722 + $0x28] sm:$0xf]
      %v734 = vld [vmem:[%s722 + $0x2c] sm:$0xf]
      %v735 = vld [vmem:[%s722 + $0x30] sm:$0xf]
      %v736 = vld [vmem:[%s722 + $0x34] sm:$0xf]
      %v737 = vld [vmem:[%s722 + $0x38] sm:$0xf]
      %v738 = vld [vmem:[%s722 + $0x3c] sm:$0xf]
      %v739 = vld [vmem:[%s722 + $0x40] sm:$0xf]
      %v740 = vld [vmem:[%s722 + $0x44] sm:$0xf]
      %v741 = vld [vmem:[%s722 + $0x48] sm:$0xf]
      %v742 = vld [vmem:[%s722 + $0x4c] sm:$0xf]
      %v743 = vld [vmem:[%s722 + $0x50] sm:$0xf]
      %v744 = vld [vmem:[%s722 + $0x54] sm:$0xf]
      %v745 = vld [vmem:[%s722 + $0x58] sm:$0xf]
      %v746 = vld [vmem:[%s722 + $0x5c] sm:$0xf]
      %v747 = vld [vmem:[%s722 + $0x60] sm:$0xf]
      %v748 = vld [vmem:[%s722 + $0x64] sm:$0xf]
      %v749 = vld [vmem:[%s722 + $0x68] sm:$0xf]
      %v750 = vld [vmem:[%s722 + $0x6c] sm:$0xf]
      %v751 = vld [vmem:[%s722 + $0x70] sm:$0xf]
      %v752 = vld [vmem:[%s722 + $0x74] sm:$0xf]
      %v753 = vld [vmem:[%s722 + $0x78] sm:$0xf]
      %v754 = vld [vmem:[%s722 + $0x7c] sm:$0xf]
      %v755 = vld [vmem:[%s722 + $0x80] sm:$0xf]
      %v756 = vld [vmem:[%s722 + $0x84] sm:$0xf]
      %v757 = vld [vmem:[%s722 + $0x88] sm:$0xf]
      %v758 = vld [vmem:[%s722 + $0x8c] sm:$0xf]
      %v759 = vld [vmem:[%s722 + $0x90] sm:$0xf]
      %v760 = vld [vmem:[%s722 + $0x94] sm:$0xf]
      %v761 = vld [vmem:[%s722 + $0x98] sm:$0xf]
      %v762 = vld [vmem:[%s722 + $0x9c] sm:$0xf]
      %v763 = vld [vmem:[%s722 + $0xa0] sm:$0xf]
      %v764 = vld [vmem:[%s722 + $0xa4] sm:$0xf]
      %v765 = vld [vmem:[%s722 + $0xa8] sm:$0xf]
      %v766 = vld [vmem:[%s722 + $0xac] sm:$0xf]
      %v767 = vld [vmem:[%s722 + $0xb0] sm:$0xf]
      %v768 = vld [vmem:[%s722 + $0xb4] sm:$0xf]
      %v769 = vld [vmem:[%s722 + $0xb8] sm:$0xf]
      %v770 = vld [vmem:[%s722 + $0xbc] sm:$0xf]
      %v819 = vunpack.c.l.b16 %v723
      %v820 = vunpack.c.l.b16 %v724
      %v821 = vunpack.c.l.b16 %v725
      %v822 = vunpack.c.l.b16 %v726
      %v823 = vunpack.c.l.b16 %v727
      %v824 = vunpack.c.l.b16 %v728
      %v825 = vunpack.c.l.b16 %v729
      %v826 = vunpack.c.l.b16 %v730
      %v827 = vunpack.c.l.b16 %v731
      %v828 = vunpack.c.l.b16 %v732
      %v829 = vunpack.c.l.b16 %v733
      %v830 = vunpack.c.l.b16 %v734
      %v831 = vunpack.c.l.b16 %v735
      %v832 = vunpack.c.l.b16 %v736
      %v833 = vunpack.c.l.b16 %v737
      %v834 = vunpack.c.l.b16 %v738
      %v835 = vunpack.c.l.b16 %v739
      %v836 = vunpack.c.l.b16 %v740
      %v837 = vunpack.c.l.b16 %v741
      %v838 = vunpack.c.l.b16 %v742
      %v839 = vunpack.c.l.b16 %v743
      %v840 = vunpack.c.l.b16 %v744
      %v841 = vunpack.c.l.b16 %v745
      %v842 = vunpack.c.l.b16 %v746
      %v843 = vunpack.c.l.b16 %v747
      %v844 = vunpack.c.l.b16 %v748
      %v845 = vunpack.c.l.b16 %v749
      %v846 = vunpack.c.l.b16 %v750
      %v847 = vunpack.c.l.b16 %v751
      %v848 = vunpack.c.l.b16 %v752
      %v849 = vunpack.c.l.b16 %v753
      %v850 = vunpack.c.l.b16 %v754
      %v851 = vunpack.c.l.b16 %v755
      %v852 = vunpack.c.l.b16 %v756
      %v853 = vunpack.c.l.b16 %v757
      %v854 = vunpack.c.l.b16 %v758
      %v855 = vunpack.c.l.b16 %v759
      %v856 = vunpack.c.l.b16 %v760
      %v857 = vunpack.c.l.b16 %v761
      %v858 = vunpack.c.l.b16 %v762
      %v859 = vunpack.c.l.b16 %v763
      %v860 = vunpack.c.l.b16 %v764
      %v861 = vunpack.c.l.b16 %v765
      %v862 = vunpack.c.l.b16 %v766
      %v863 = vunpack.c.l.b16 %v767
      %v864 = vunpack.c.l.b16 %v768
      %v865 = vunpack.c.l.b16 %v769
      %v866 = vunpack.c.l.b16 %v770
      %v867 = vpack.c.b16 %v820, %v819
      %v868 = vpack.c.b16 %v822, %v821
      %v869 = vpack.c.b16 %v824, %v823
      %v870 = vpack.c.b16 %v826, %v825
      %v871 = vpack.c.b16 %v828, %v827
      %v872 = vpack.c.b16 %v830, %v829
      %v873 = vpack.c.b16 %v832, %v831
      %v874 = vpack.c.b16 %v834, %v833
      %v875 = vpack.c.b16 %v836, %v835
      %v876 = vpack.c.b16 %v838, %v837
      %v877 = vpack.c.b16 %v840, %v839
      %v878 = vpack.c.b16 %v842, %v841
      %v879 = vpack.c.b16 %v844, %v843
      %v880 = vpack.c.b16 %v846, %v845
      %v881 = vpack.c.b16 %v848, %v847
      %v882 = vpack.c.b16 %v850, %v849
      %v883 = vpack.c.b16 %v852, %v851
      %v884 = vpack.c.b16 %v854, %v853
      %v885 = vpack.c.b16 %v856, %v855
      %v886 = vpack.c.b16 %v858, %v857
      %v887 = vpack.c.b16 %v860, %v859
      %v888 = vpack.c.b16 %v862, %v861
      %v889 = vpack.c.b16 %v864, %v863
      %v890 = vpack.c.b16 %v866, %v865
      %915 = vmatpush.bf16.msra.mxu0 %v874
      %916 = vmatpush.bf16.msra.mxu0 %v873
      %917 = vmatpush.bf16.msra.mxu0 %v872
      %918 = vmatpush.bf16.msra.mxu0 %v871
      %919 = vmatpush.bf16.msra.mxu0 %v870
      %920 = vmatpush.bf16.msra.mxu0 %v869
      %921 = vmatpush.bf16.msra.mxu0 %v868
      %922 = vmatpush.bf16.msra.mxu0 %v867
      %923 = vmatmul.bf16.gmra.mxu0 %v318
      %v924 = vpop.f32.mrf.mxu0
      %v925 = vadd.f32 0.0, %v924
      %v926 = vpop.f32.mrf.mxu0
      %v927 = vadd.f32 0.0, %v926
      %928 = vmatmul.bf16.gmra.mxu0 %v319
      %v929 = vpop.f32.mrf.mxu0
      %v930 = vadd.f32 0.0, %v929
      %v931 = vpop.f32.mrf.mxu0
      %v932 = vadd.f32 0.0, %v931
      %933 = vmatmul.bf16.gmra.mxu0 %v320
      %v934 = vpop.f32.mrf.mxu0
      %v935 = vadd.f32 0.0, %v934
      %v936 = vpop.f32.mrf.mxu0
      %v937 = vadd.f32 0.0, %v936
      %938 = vmatmul.bf16.gmra.mxu0 %v321
      %v939 = vpop.f32.mrf.mxu0
      %v940 = vadd.f32 0.0, %v939
      %v941 = vpop.f32.mrf.mxu0
      %v942 = vadd.f32 0.0, %v941
      %943 = vmatmul.bf16.gmra.mxu0 %v322
      %v944 = vpop.f32.mrf.mxu0
      %v945 = vadd.f32 0.0, %v944
      %v946 = vpop.f32.mrf.mxu0
      %v947 = vadd.f32 0.0, %v946
      %948 = vmatmul.bf16.gmra.mxu0 %v323
      %v949 = vpop.f32.mrf.mxu0
      %v950 = vadd.f32 0.0, %v949
      %v951 = vpop.f32.mrf.mxu0
      %v952 = vadd.f32 0.0, %v951
      %953 = vmatmul.bf16.gmra.mxu0 %v324
      %v954 = vpop.f32.mrf.mxu0
      %v955 = vadd.f32 0.0, %v954
      %v956 = vpop.f32.mrf.mxu0
      %v957 = vadd.f32 0.0, %v956
      %958 = vmatmul.bf16.gmra.mxu0 %v325
      %v959 = vpop.f32.mrf.mxu0
      %v960 = vadd.f32 0.0, %v959
      %v961 = vpop.f32.mrf.mxu0
      %v962 = vadd.f32 0.0, %v961
      %963 = vmatmul.bf16.gmra.mxu0 %v326
      %v964 = vpop.f32.mrf.mxu0
      %v965 = vadd.f32 0.0, %v964
      %v966 = vpop.f32.mrf.mxu0
      %v967 = vadd.f32 0.0, %v966
      %968 = vmatmul.bf16.gmra.mxu0 %v327
      %v969 = vpop.f32.mrf.mxu0
      %v970 = vadd.f32 0.0, %v969
      %v971 = vpop.f32.mrf.mxu0
      %v972 = vadd.f32 0.0, %v971
      %973 = vdwg.mxu0
      %974 = vmatpush.bf16.msra.mxu0 %v882
      %975 = vmatpush.bf16.msra.mxu0 %v881
      %976 = vmatpush.bf16.msra.mxu0 %v880
      %977 = vmatpush.bf16.msra.mxu0 %v879
      %978 = vmatpush.bf16.msra.mxu0 %v878
      %979 = vmatpush.bf16.msra.mxu0 %v877
      %980 = vmatpush.bf16.msra.mxu0 %v876
      %981 = vmatpush.bf16.msra.mxu0 %v875
      %982 = vmatmul.bf16.gmra.mxu0 %v319
      %v983 = vpop.f32.mrf.mxu0
      %v984 = vadd.f32 %v925, %v983
      %v985 = vpop.f32.mrf.mxu0
      %v986 = vadd.f32 %v927, %v985
      %987 = vmatmul.bf16.gmra.mxu0 %v320
      %v988 = vpop.f32.mrf.mxu0
      %v989 = vadd.f32 %v930, %v988
      %v990 = vpop.f32.mrf.mxu0
      %v991 = vadd.f32 %v932, %v990
      %992 = vmatmul.bf16.gmra.mxu0 %v321
      %v993 = vpop.f32.mrf.mxu0
      %v994 = vadd.f32 %v935, %v993
      %v995 = vpop.f32.mrf.mxu0
      %v996 = vadd.f32 %v937, %v995
      %997 = vmatmul.bf16.gmra.mxu0 %v322
      %v998 = vpop.f32.mrf.mxu0
      %v999 = vadd.f32 %v940, %v998
      %v1000 = vpop.f32.mrf.mxu0
      %v1001 = vadd.f32 %v942, %v1000
      %1002 = vmatmul.bf16.gmra.mxu0 %v323
      %v1003 = vpop.f32.mrf.mxu0
      %v1004 = vadd.f32 %v945, %v1003
      %v1005 = vpop.f32.mrf.mxu0
      %v1006 = vadd.f32 %v947, %v1005
      %1007 = vmatmul.bf16.gmra.mxu0 %v324
      %v1008 = vpop.f32.mrf.mxu0
      %v1009 = vadd.f32 %v950, %v1008
      %v1010 = vpop.f32.mrf.mxu0
      %v1011 = vadd.f32 %v952, %v1010
      %1012 = vmatmul.bf16.gmra.mxu0 %v325
      %v1013 = vpop.f32.mrf.mxu0
      %v1014 = vadd.f32 %v955, %v1013
      %v1015 = vpop.f32.mrf.mxu0
      %v1016 = vadd.f32 %v957, %v1015
      %1017 = vmatmul.bf16.gmra.mxu0 %v326
      %v1018 = vpop.f32.mrf.mxu0
      %v1019 = vadd.f32 %v960, %v1018
      %v1020 = vpop.f32.mrf.mxu0
      %v1021 = vadd.f32 %v962, %v1020
      %1022 = vmatmul.bf16.gmra.mxu0 %v327
      %v1023 = vpop.f32.mrf.mxu0
      %v1024 = vadd.f32 %v965, %v1023
      %v1025 = vpop.f32.mrf.mxu0
      %v1026 = vadd.f32 %v967, %v1025
      %1027 = vmatmul.bf16.gmra.mxu0 %v342
      %v1028 = vpop.f32.mrf.mxu0
      %v1029 = vadd.f32 %v970, %v1028
      %v1030 = vpop.f32.mrf.mxu0
      %v1031 = vadd.f32 %v972, %v1030
      %1032 = vdwg.mxu0
      %1033 = vmatpush.bf16.msra.mxu0 %v890
      %1034 = vmatpush.bf16.msra.mxu0 %v889
      %1035 = vmatpush.bf16.msra.mxu0 %v888
      %1036 = vmatpush.bf16.msra.mxu0 %v887
      %1037 = vmatpush.bf16.msra.mxu0 %v886
      %1038 = vmatpush.bf16.msra.mxu0 %v885
      %1039 = vmatpush.bf16.msra.mxu0 %v884
      %1040 = vmatpush.bf16.msra.mxu0 %v883
      %1041 = vmatmul.bf16.gmra.mxu0 %v320
      %v1042 = vpop.f32.mrf.mxu0
      %v1043 = vadd.f32 %v984, %v1042
      %v1044 = vpop.f32.mrf.mxu0
      %v1045 = vadd.f32 %v986, %v1044
      %1046 = vmatmul.bf16.gmra.mxu0 %v321
      %v1047 = vpop.f32.mrf.mxu0
      %v1048 = vadd.f32 %v989, %v1047
      %v1049 = vpop.f32.mrf.mxu0
      %v1050 = vadd.f32 %v991, %v1049
      %1051 = vmatmul.bf16.gmra.mxu0 %v322
      %v1052 = vpop.f32.mrf.mxu0
      %v1053 = vadd.f32 %v994, %v1052
      %v1054 = vpop.f32.mrf.mxu0
      %v1055 = vadd.f32 %v996, %v1054
      %1056 = vmatmul.bf16.gmra.mxu0 %v323
      %v1057 = vpop.f32.mrf.mxu0
      %v1058 = vadd.f32 %v999, %v1057
      %v1059 = vpop.f32.mrf.mxu0
      %v1060 = vadd.f32 %v1001, %v1059
      %1061 = vmatmul.bf16.gmra.mxu0 %v324
      %v1062 = vpop.f32.mrf.mxu0
      %v1063 = vadd.f32 %v1004, %v1062
      %v1064 = vpop.f32.mrf.mxu0
      %v1065 = vadd.f32 %v1006, %v1064
      %1066 = vmatmul.bf16.gmra.mxu0 %v325
      %v1067 = vpop.f32.mrf.mxu0
      %v1068 = vadd.f32 %v1009, %v1067
      %v1069 = vpop.f32.mrf.mxu0
      %v1070 = vadd.f32 %v1011, %v1069
      %1071 = vmatmul.bf16.gmra.mxu0 %v326
      %v1072 = vpop.f32.mrf.mxu0
      %v1073 = vadd.f32 %v1014, %v1072
      %v1074 = vpop.f32.mrf.mxu0
      %v1075 = vadd.f32 %v1016, %v1074
      %1076 = vmatmul.bf16.gmra.mxu0 %v327
      %v1077 = vpop.f32.mrf.mxu0
      %v1078 = vadd.f32 %v1019, %v1077
      %v1079 = vpop.f32.mrf.mxu0
      %v1080 = vadd.f32 %v1021, %v1079
      %1081 = vmatmul.bf16.gmra.mxu0 %v342
      %v1082 = vpop.f32.mrf.mxu0
      %v1083 = vadd.f32 %v1024, %v1082
      %v1084 = vpop.f32.mrf.mxu0
      %v1085 = vadd.f32 %v1026, %v1084
      %1086 = vmatmul.bf16.gmra.mxu0 %v348
      %v1087 = vpop.f32.mrf.mxu0
      %v1088 = vadd.f32 %v1029, %v1087
      %v1089 = vpop.f32.mrf.mxu0
      %v1090 = vadd.f32 %v1031, %v1089
      %1091 = vdwg.mxu0
      %s1092 = scalar_lea.vmem %s1, 384
      %v1093 = vld [vmem:[%s1092] sm:$0xf]
      %v1094 = vld [vmem:[%s1092 + $0x4] sm:$0xf]
      %v1095 = vld [vmem:[%s1092 + $0x8] sm:$0xf]
      %v1096 = vld [vmem:[%s1092 + $0xc] sm:$0xf]
      %v1097 = vld [vmem:[%s1092 + $0x10] sm:$0xf]
      %v1098 = vld [vmem:[%s1092 + $0x14] sm:$0xf]
      %v1099 = vld [vmem:[%s1092 + $0x18] sm:$0xf]
      %v1100 = vld [vmem:[%s1092 + $0x1c] sm:$0xf]
      %v1101 = vld [vmem:[%s1092 + $0x20] sm:$0xf]
      %v1102 = vld [vmem:[%s1092 + $0x24] sm:$0xf]
      %v1103 = vld [vmem:[%s1092 + $0x28] sm:$0xf]
      %v1104 = vld [vmem:[%s1092 + $0x2c] sm:$0xf]
      %v1105 = vld [vmem:[%s1092 + $0x30] sm:$0xf]
      %v1106 = vld [vmem:[%s1092 + $0x34] sm:$0xf]
      %v1107 = vld [vmem:[%s1092 + $0x38] sm:$0xf]
      %v1108 = vld [vmem:[%s1092 + $0x3c] sm:$0xf]
      %v1109 = vld [vmem:[%s1092 + $0x40] sm:$0xf]
      %v1110 = vld [vmem:[%s1092 + $0x44] sm:$0xf]
      %v1111 = vld [vmem:[%s1092 + $0x48] sm:$0xf]
      %v1112 = vld [vmem:[%s1092 + $0x4c] sm:$0xf]
      %v1113 = vld [vmem:[%s1092 + $0x50] sm:$0xf]
      %v1114 = vld [vmem:[%s1092 + $0x54] sm:$0xf]
      %v1115 = vld [vmem:[%s1092 + $0x58] sm:$0xf]
      %v1116 = vld [vmem:[%s1092 + $0x5c] sm:$0xf]
      %v1117 = vld [vmem:[%s1092 + $0x60] sm:$0xf]
      %v1118 = vld [vmem:[%s1092 + $0x64] sm:$0xf]
      %v1119 = vld [vmem:[%s1092 + $0x68] sm:$0xf]
      %v1120 = vld [vmem:[%s1092 + $0x6c] sm:$0xf]
      %v1121 = vld [vmem:[%s1092 + $0x70] sm:$0xf]
      %v1122 = vld [vmem:[%s1092 + $0x74] sm:$0xf]
      %v1123 = vld [vmem:[%s1092 + $0x78] sm:$0xf]
      %v1124 = vld [vmem:[%s1092 + $0x7c] sm:$0xf]
      %v1125 = vld [vmem:[%s1092 + $0x80] sm:$0xf]
      %v1126 = vld [vmem:[%s1092 + $0x84] sm:$0xf]
      %v1127 = vld [vmem:[%s1092 + $0x88] sm:$0xf]
      %v1128 = vld [vmem:[%s1092 + $0x8c] sm:$0xf]
      %v1129 = vld [vmem:[%s1092 + $0x90] sm:$0xf]
      %v1130 = vld [vmem:[%s1092 + $0x94] sm:$0xf]
      %v1131 = vld [vmem:[%s1092 + $0x98] sm:$0xf]
      %v1132 = vld [vmem:[%s1092 + $0x9c] sm:$0xf]
      %v1133 = vld [vmem:[%s1092 + $0xa0] sm:$0xf]
      %v1134 = vld [vmem:[%s1092 + $0xa4] sm:$0xf]
      %v1135 = vld [vmem:[%s1092 + $0xa8] sm:$0xf]
      %v1136 = vld [vmem:[%s1092 + $0xac] sm:$0xf]
      %v1137 = vld [vmem:[%s1092 + $0xb0] sm:$0xf]
      %v1138 = vld [vmem:[%s1092 + $0xb4] sm:$0xf]
      %v1139 = vld [vmem:[%s1092 + $0xb8] sm:$0xf]
      %v1140 = vld [vmem:[%s1092 + $0xbc] sm:$0xf]
      %v1189 = vunpack.c.l.b16 %v1093
      %v1190 = vunpack.c.l.b16 %v1094
      %v1191 = vunpack.c.l.b16 %v1095
      %v1192 = vunpack.c.l.b16 %v1096
      %v1193 = vunpack.c.l.b16 %v1097
      %v1194 = vunpack.c.l.b16 %v1098
      %v1195 = vunpack.c.l.b16 %v1099
      %v1196 = vunpack.c.l.b16 %v1100
      %v1197 = vunpack.c.l.b16 %v1101
      %v1198 = vunpack.c.l.b16 %v1102
      %v1199 = vunpack.c.l.b16 %v1103
      %v1200 = vunpack.c.l.b16 %v1104
      %v1201 = vunpack.c.l.b16 %v1105
      %v1202 = vunpack.c.l.b16 %v1106
      %v1203 = vunpack.c.l.b16 %v1107
      %v1204 = vunpack.c.l.b16 %v1108
      %v1205 = vunpack.c.l.b16 %v1109
      %v1206 = vunpack.c.l.b16 %v1110
      %v1207 = vunpack.c.l.b16 %v1111
      %v1208 = vunpack.c.l.b16 %v1112
      %v1209 = vunpack.c.l.b16 %v1113
      %v1210 = vunpack.c.l.b16 %v1114
      %v1211 = vunpack.c.l.b16 %v1115
      %v1212 = vunpack.c.l.b16 %v1116
      %v1213 = vunpack.c.l.b16 %v1117
      %v1214 = vunpack.c.l.b16 %v1118
      %v1215 = vunpack.c.l.b16 %v1119
      %v1216 = vunpack.c.l.b16 %v1120
      %v1217 = vunpack.c.l.b16 %v1121
      %v1218 = vunpack.c.l.b16 %v1122
      %v1219 = vunpack.c.l.b16 %v1123
      %v1220 = vunpack.c.l.b16 %v1124
      %v1221 = vunpack.c.l.b16 %v1125
      %v1222 = vunpack.c.l.b16 %v1126
      %v1223 = vunpack.c.l.b16 %v1127
      %v1224 = vunpack.c.l.b16 %v1128
      %v1225 = vunpack.c.l.b16 %v1129
      %v1226 = vunpack.c.l.b16 %v1130
      %v1227 = vunpack.c.l.b16 %v1131
      %v1228 = vunpack.c.l.b16 %v1132
      %v1229 = vunpack.c.l.b16 %v1133
      %v1230 = vunpack.c.l.b16 %v1134
      %v1231 = vunpack.c.l.b16 %v1135
      %v1232 = vunpack.c.l.b16 %v1136
      %v1233 = vunpack.c.l.b16 %v1137
      %v1234 = vunpack.c.l.b16 %v1138
      %v1235 = vunpack.c.l.b16 %v1139
      %v1236 = vunpack.c.l.b16 %v1140
      %v1237 = vpack.c.b16 %v1190, %v1189
      %v1238 = vpack.c.b16 %v1192, %v1191
      %v1239 = vpack.c.b16 %v1194, %v1193
      %v1240 = vpack.c.b16 %v1196, %v1195
      %v1241 = vpack.c.b16 %v1198, %v1197
      %v1242 = vpack.c.b16 %v1200, %v1199
      %v1243 = vpack.c.b16 %v1202, %v1201
      %v1244 = vpack.c.b16 %v1204, %v1203
      %v1245 = vpack.c.b16 %v1206, %v1205
      %v1246 = vpack.c.b16 %v1208, %v1207
      %v1247 = vpack.c.b16 %v1210, %v1209
      %v1248 = vpack.c.b16 %v1212, %v1211
      %v1249 = vpack.c.b16 %v1214, %v1213
      %v1250 = vpack.c.b16 %v1216, %v1215
      %v1251 = vpack.c.b16 %v1218, %v1217
      %v1252 = vpack.c.b16 %v1220, %v1219
      %v1253 = vpack.c.b16 %v1222, %v1221
      %v1254 = vpack.c.b16 %v1224, %v1223
      %v1255 = vpack.c.b16 %v1226, %v1225
      %v1256 = vpack.c.b16 %v1228, %v1227
      %v1257 = vpack.c.b16 %v1230, %v1229
      %v1258 = vpack.c.b16 %v1232, %v1231
      %v1259 = vpack.c.b16 %v1234, %v1233
      %v1260 = vpack.c.b16 %v1236, %v1235
      %1285 = vmatpush.bf16.msra.mxu0 %v1244
      %1286 = vmatpush.bf16.msra.mxu0 %v1243
      %1287 = vmatpush.bf16.msra.mxu0 %v1242
      %1288 = vmatpush.bf16.msra.mxu0 %v1241
      %1289 = vmatpush.bf16.msra.mxu0 %v1240
      %1290 = vmatpush.bf16.msra.mxu0 %v1239
      %1291 = vmatpush.bf16.msra.mxu0 %v1238
      %1292 = vmatpush.bf16.msra.mxu0 %v1237
      %1293 = vmatmul.bf16.gmra.mxu0 %v318
      %v1294 = vpop.f32.mrf.mxu0
      %v1295 = vadd.f32 0.0, %v1294
      %v1296 = vpop.f32.mrf.mxu0
      %v1297 = vadd.f32 0.0, %v1296
      %1298 = vmatmul.bf16.gmra.mxu0 %v319
      %v1299 = vpop.f32.mrf.mxu0
      %v1300 = vadd.f32 0.0, %v1299
      %v1301 = vpop.f32.mrf.mxu0
      %v1302 = vadd.f32 0.0, %v1301
      %1303 = vmatmul.bf16.gmra.mxu0 %v320
      %v1304 = vpop.f32.mrf.mxu0
      %v1305 = vadd.f32 0.0, %v1304
      %v1306 = vpop.f32.mrf.mxu0
      %v1307 = vadd.f32 0.0, %v1306
      %1308 = vmatmul.bf16.gmra.mxu0 %v321
      %v1309 = vpop.f32.mrf.mxu0
      %v1310 = vadd.f32 0.0, %v1309
      %v1311 = vpop.f32.mrf.mxu0
      %v1312 = vadd.f32 0.0, %v1311
      %1313 = vmatmul.bf16.gmra.mxu0 %v322
      %v1314 = vpop.f32.mrf.mxu0
      %v1315 = vadd.f32 0.0, %v1314
      %v1316 = vpop.f32.mrf.mxu0
      %v1317 = vadd.f32 0.0, %v1316
      %1318 = vmatmul.bf16.gmra.mxu0 %v323
      %v1319 = vpop.f32.mrf.mxu0
      %v1320 = vadd.f32 0.0, %v1319
      %v1321 = vpop.f32.mrf.mxu0
      %v1322 = vadd.f32 0.0, %v1321
      %1323 = vmatmul.bf16.gmra.mxu0 %v324
      %v1324 = vpop.f32.mrf.mxu0
      %v1325 = vadd.f32 0.0, %v1324
      %v1326 = vpop.f32.mrf.mxu0
      %v1327 = vadd.f32 0.0, %v1326
      %1328 = vmatmul.bf16.gmra.mxu0 %v325
      %v1329 = vpop.f32.mrf.mxu0
      %v1330 = vadd.f32 0.0, %v1329
      %v1331 = vpop.f32.mrf.mxu0
      %v1332 = vadd.f32 0.0, %v1331
      %1333 = vmatmul.bf16.gmra.mxu0 %v326
      %v1334 = vpop.f32.mrf.mxu0
      %v1335 = vadd.f32 0.0, %v1334
      %v1336 = vpop.f32.mrf.mxu0
      %v1337 = vadd.f32 0.0, %v1336
      %1338 = vmatmul.bf16.gmra.mxu0 %v327
      %v1339 = vpop.f32.mrf.mxu0
      %v1340 = vadd.f32 0.0, %v1339
      %v1341 = vpop.f32.mrf.mxu0
      %v1342 = vadd.f32 0.0, %v1341
      %1343 = vdwg.mxu0
      %1344 = vmatpush.bf16.msra.mxu0 %v1252
      %1345 = vmatpush.bf16.msra.mxu0 %v1251
      %1346 = vmatpush.bf16.msra.mxu0 %v1250
      %1347 = vmatpush.bf16.msra.mxu0 %v1249
      %1348 = vmatpush.bf16.msra.mxu0 %v1248
      %1349 = vmatpush.bf16.msra.mxu0 %v1247
      %1350 = vmatpush.bf16.msra.mxu0 %v1246
      %1351 = vmatpush.bf16.msra.mxu0 %v1245
      %1352 = vmatmul.bf16.gmra.mxu0 %v319
      %v1353 = vpop.f32.mrf.mxu0
      %v1354 = vadd.f32 %v1295, %v1353
      %v1355 = vpop.f32.mrf.mxu0
      %v1356 = vadd.f32 %v1297, %v1355
      %1357 = vmatmul.bf16.gmra.mxu0 %v320
      %v1358 = vpop.f32.mrf.mxu0
      %v1359 = vadd.f32 %v1300, %v1358
      %v1360 = vpop.f32.mrf.mxu0
      %v1361 = vadd.f32 %v1302, %v1360
      %1362 = vmatmul.bf16.gmra.mxu0 %v321
      %v1363 = vpop.f32.mrf.mxu0
      %v1364 = vadd.f32 %v1305, %v1363
      %v1365 = vpop.f32.mrf.mxu0
      %v1366 = vadd.f32 %v1307, %v1365
      %1367 = vmatmul.bf16.gmra.mxu0 %v322
      %v1368 = vpop.f32.mrf.mxu0
      %v1369 = vadd.f32 %v1310, %v1368
      %v1370 = vpop.f32.mrf.mxu0
      %v1371 = vadd.f32 %v1312, %v1370
      %1372 = vmatmul.bf16.gmra.mxu0 %v323
      %v1373 = vpop.f32.mrf.mxu0
      %v1374 = vadd.f32 %v1315, %v1373
      %v1375 = vpop.f32.mrf.mxu0
      %v1376 = vadd.f32 %v1317, %v1375
      %1377 = vmatmul.bf16.gmra.mxu0 %v324
      %v1378 = vpop.f32.mrf.mxu0
      %v1379 = vadd.f32 %v1320, %v1378
      %v1380 = vpop.f32.mrf.mxu0
      %v1381 = vadd.f32 %v1322, %v1380
      %1382 = vmatmul.bf16.gmra.mxu0 %v325
      %v1383 = vpop.f32.mrf.mxu0
      %v1384 = vadd.f32 %v1325, %v1383
      %v1385 = vpop.f32.mrf.mxu0
      %v1386 = vadd.f32 %v1327, %v1385
      %1387 = vmatmul.bf16.gmra.mxu0 %v326
      %v1388 = vpop.f32.mrf.mxu0
      %v1389 = vadd.f32 %v1330, %v1388
      %v1390 = vpop.f32.mrf.mxu0
      %v1391 = vadd.f32 %v1332, %v1390
      %1392 = vmatmul.bf16.gmra.mxu0 %v327
      %v1393 = vpop.f32.mrf.mxu0
      %v1394 = vadd.f32 %v1335, %v1393
      %v1395 = vpop.f32.mrf.mxu0
      %v1396 = vadd.f32 %v1337, %v1395
      %1397 = vmatmul.bf16.gmra.mxu0 %v342
      %v1398 = vpop.f32.mrf.mxu0
      %v1399 = vadd.f32 %v1340, %v1398
      %v1400 = vpop.f32.mrf.mxu0
      %v1401 = vadd.f32 %v1342, %v1400
      %1402 = vdwg.mxu0
      %1403 = vmatpush.bf16.msra.mxu0 %v1260
      %1404 = vmatpush.bf16.msra.mxu0 %v1259
      %1405 = vmatpush.bf16.msra.mxu0 %v1258
      %1406 = vmatpush.bf16.msra.mxu0 %v1257
      %1407 = vmatpush.bf16.msra.mxu0 %v1256
      %1408 = vmatpush.bf16.msra.mxu0 %v1255
      %1409 = vmatpush.bf16.msra.mxu0 %v1254
      %1410 = vmatpush.bf16.msra.mxu0 %v1253
      %1411 = vmatmul.bf16.gmra.mxu0 %v320
      %v1412 = vpop.f32.mrf.mxu0
      %v1413 = vadd.f32 %v1354, %v1412
      %v1414 = vpop.f32.mrf.mxu0
      %v1415 = vadd.f32 %v1356, %v1414
      %1416 = vmatmul.bf16.gmra.mxu0 %v321
      %v1417 = vpop.f32.mrf.mxu0
      %v1418 = vadd.f32 %v1359, %v1417
      %v1419 = vpop.f32.mrf.mxu0
      %v1420 = vadd.f32 %v1361, %v1419
      %1421 = vmatmul.bf16.gmra.mxu0 %v322
      %v1422 = vpop.f32.mrf.mxu0
      %v1423 = vadd.f32 %v1364, %v1422
      %v1424 = vpop.f32.mrf.mxu0
      %v1425 = vadd.f32 %v1366, %v1424
      %1426 = vmatmul.bf16.gmra.mxu0 %v323
      %v1427 = vpop.f32.mrf.mxu0
      %v1428 = vadd.f32 %v1369, %v1427
      %v1429 = vpop.f32.mrf.mxu0
      %v1430 = vadd.f32 %v1371, %v1429
      %1431 = vmatmul.bf16.gmra.mxu0 %v324
      %v1432 = vpop.f32.mrf.mxu0
      %v1433 = vadd.f32 %v1374, %v1432
      %v1434 = vpop.f32.mrf.mxu0
      %v1435 = vadd.f32 %v1376, %v1434
      %1436 = vmatmul.bf16.gmra.mxu0 %v325
      %v1437 = vpop.f32.mrf.mxu0
      %v1438 = vadd.f32 %v1379, %v1437
      %v1439 = vpop.f32.mrf.mxu0
      %v1440 = vadd.f32 %v1381, %v1439
      %1441 = vmatmul.bf16.gmra.mxu0 %v326
      %v1442 = vpop.f32.mrf.mxu0
      %v1443 = vadd.f32 %v1384, %v1442
      %v1444 = vpop.f32.mrf.mxu0
      %v1445 = vadd.f32 %v1386, %v1444
      %1446 = vmatmul.bf16.gmra.mxu0 %v327
      %v1447 = vpop.f32.mrf.mxu0
      %v1448 = vadd.f32 %v1389, %v1447
      %v1449 = vpop.f32.mrf.mxu0
      %v1450 = vadd.f32 %v1391, %v1449
      %1451 = vmatmul.bf16.gmra.mxu0 %v342
      %v1452 = vpop.f32.mrf.mxu0
      %v1453 = vadd.f32 %v1394, %v1452
      %v1454 = vpop.f32.mrf.mxu0
      %v1455 = vadd.f32 %v1396, %v1454
      %1456 = vmatmul.bf16.gmra.mxu0 %v348
      %v1457 = vpop.f32.mrf.mxu0
      %v1458 = vadd.f32 %v1399, %v1457
      %v1459 = vpop.f32.mrf.mxu0
      %v1460 = vadd.f32 %v1401, %v1459
      %1461 = vdwg.mxu0
      %vm1462 = vcmp.eq.s32.totalorder %v351, 0
      %vm1463 = vcmp.eq.s32.totalorder %v352, 0
      %v1474 = vrot.slane %v675, 7
      %v1475 = vrot.slane %v680, 7
      %v1476 = vrot.slane %v685, 7
      %v1477 = vrot.slane %v690, 7
      %v1478 = vrot.slane %v695, 7
      %v1479 = vrot.slane %v700, 7
      %v1480 = vrot.slane %v705, 7
      %v1481 = vrot.slane %v710, 7
      %v1482 = vrot.slane %v715, 7
      %v1483 = vrot.slane %v720, 7
      %vm1504 = vcmask 1040384
      %v1505 = vrot.slane %v673, 7
      %v1506 = vsel %vm1504, %v1505, %v1474
      %v1507 = vrot.slane %v678, 7
      %v1508 = vsel %vm1504, %v1507, %v1475
      %v1509 = vrot.slane %v683, 7
      %v1510 = vsel %vm1504, %v1509, %v1476
      %v1511 = vrot.slane %v688, 7
      %v1512 = vsel %vm1504, %v1511, %v1477
      %v1513 = vrot.slane %v693, 7
      %v1514 = vsel %vm1504, %v1513, %v1478
      %v1515 = vrot.slane %v698, 7
      %v1516 = vsel %vm1504, %v1515, %v1479
      %v1517 = vrot.slane %v703, 7
      %v1518 = vsel %vm1504, %v1517, %v1480
      %v1519 = vrot.slane %v708, 7
      %v1520 = vsel %vm1504, %v1519, %v1481
      %v1521 = vrot.slane %v713, 7
      %v1522 = vsel %vm1504, %v1521, %v1482
      %v1523 = vrot.slane %v718, 7
      %v1524 = vsel %vm1504, %v1523, %v1483
      %v1545 = vsel %vm1504, %v1474, %v1505
      %v1546 = vsel %vm1504, %v1475, %v1507
      %v1547 = vsel %vm1504, %v1476, %v1509
      %v1548 = vsel %vm1504, %v1477, %v1511
      %v1549 = vsel %vm1504, %v1478, %v1513
      %v1550 = vsel %vm1504, %v1479, %v1515
      %v1551 = vsel %vm1504, %v1480, %v1517
      %v1552 = vsel %vm1504, %v1481, %v1519
      %v1553 = vsel %vm1504, %v1482, %v1521
      %v1554 = vsel %vm1504, %v1483, %v1523
      %v1555 = vsel %vm1462, 1, 0
      %v1556 = vsel %vm1463, 1, 0
      %vm1557 = vcmp.eq.s32.totalorder %v1555, 1
      %vm1558 = vcmp.eq.s32.totalorder %v1556, 1
      %v1559 = vsel %vm1557, 0.0, %v1545
      %v1560 = vsel %vm1558, 0.0, %v1506
      %v1561 = vsel %vm1557, 0.0, %v1546
      %v1562 = vsel %vm1558, 0.0, %v1508
      %v1563 = vsel %vm1557, 0.0, %v1547
      %v1564 = vsel %vm1558, 0.0, %v1510
      %v1565 = vsel %vm1557, 0.0, %v1548
      %v1566 = vsel %vm1558, 0.0, %v1512
      %v1567 = vsel %vm1557, 0.0, %v1549
      %v1568 = vsel %vm1558, 0.0, %v1514
      %v1569 = vsel %vm1557, 0.0, %v1550
      %v1570 = vsel %vm1558, 0.0, %v1516
      %v1571 = vsel %vm1557, 0.0, %v1551
      %v1572 = vsel %vm1558, 0.0, %v1518
      %v1573 = vsel %vm1557, 0.0, %v1552
      %v1574 = vsel %vm1558, 0.0, %v1520
      %v1575 = vsel %vm1557, 0.0, %v1553
      %v1576 = vsel %vm1558, 0.0, %v1522
      %v1577 = vsel %vm1557, 0.0, %v1554
      %v1578 = vsel %vm1558, 0.0, %v1524
      %vm1579 = vcmp.eq.s32.totalorder %v351, 15
      %vm1580 = vcmp.eq.s32.totalorder %v352, 15
      %vm1601 = vcmask 1046528
      %v1602 = vrot.slane %v1413, 1
      %v1603 = vrot.slane %v1415, 1
      %v1604 = vsel %vm1601, %v1602, %v1603
      %v1605 = vrot.slane %v1418, 1
      %v1606 = vrot.slane %v1420, 1
      %v1607 = vsel %vm1601, %v1605, %v1606
      %v1608 = vrot.slane %v1423, 1
      %v1609 = vrot.slane %v1425, 1
      %v1610 = vsel %vm1601, %v1608, %v1609
      %v1611 = vrot.slane %v1428, 1
      %v1612 = vrot.slane %v1430, 1
      %v1613 = vsel %vm1601, %v1611, %v1612
      %v1614 = vrot.slane %v1433, 1
      %v1615 = vrot.slane %v1435, 1
      %v1616 = vsel %vm1601, %v1614, %v1615
      %v1617 = vrot.slane %v1438, 1
      %v1618 = vrot.slane %v1440, 1
      %v1619 = vsel %vm1601, %v1617, %v1618
      %v1620 = vrot.slane %v1443, 1
      %v1621 = vrot.slane %v1445, 1
      %v1622 = vsel %vm1601, %v1620, %v1621
      %v1623 = vrot.slane %v1448, 1
      %v1624 = vrot.slane %v1450, 1
      %v1625 = vsel %vm1601, %v1623, %v1624
      %v1626 = vrot.slane %v1453, 1
      %v1627 = vrot.slane %v1455, 1
      %v1628 = vsel %vm1601, %v1626, %v1627
      %v1629 = vrot.slane %v1458, 1
      %v1630 = vrot.slane %v1460, 1
      %v1631 = vsel %vm1601, %v1629, %v1630
      %v1662 = vsel %vm1601, %v1603, %v1602
      %v1663 = vsel %vm1601, %v1606, %v1605
      %v1664 = vsel %vm1601, %v1609, %v1608
      %v1665 = vsel %vm1601, %v1612, %v1611
      %v1666 = vsel %vm1601, %v1615, %v1614
      %v1667 = vsel %vm1601, %v1618, %v1617
      %v1668 = vsel %vm1601, %v1621, %v1620
      %v1669 = vsel %vm1601, %v1624, %v1623
      %v1670 = vsel %vm1601, %v1627, %v1626
      %v1671 = vsel %vm1601, %v1630, %v1629
      %v1672 = vsel %vm1579, 1, 0
      %v1673 = vsel %vm1580, 1, 0
      %vm1674 = vcmp.eq.s32.totalorder %v1672, 1
      %vm1675 = vcmp.eq.s32.totalorder %v1673, 1
      %v1676 = vsel %vm1674, 0.0, %v1604
      %v1677 = vsel %vm1675, 0.0, %v1662
      %v1678 = vsel %vm1674, 0.0, %v1607
      %v1679 = vsel %vm1675, 0.0, %v1663
      %v1680 = vsel %vm1674, 0.0, %v1610
      %v1681 = vsel %vm1675, 0.0, %v1664
      %v1682 = vsel %vm1674, 0.0, %v1613
      %v1683 = vsel %vm1675, 0.0, %v1665
      %v1684 = vsel %vm1674, 0.0, %v1616
      %v1685 = vsel %vm1675, 0.0, %v1666
      %v1686 = vsel %vm1674, 0.0, %v1619
      %v1687 = vsel %vm1675, 0.0, %v1667
      %v1688 = vsel %vm1674, 0.0, %v1622
      %v1689 = vsel %vm1675, 0.0, %v1668
      %v1690 = vsel %vm1674, 0.0, %v1625
      %v1691 = vsel %vm1675, 0.0, %v1669
      %v1692 = vsel %vm1674, 0.0, %v1628
      %v1693 = vsel %vm1675, 0.0, %v1670
      %v1694 = vsel %vm1674, 0.0, %v1631
      %v1695 = vsel %vm1675, 0.0, %v1671
      %v1696 = vadd.f32 %v1559, %v1043
      %v1697 = vadd.f32 %v1560, %v1045
      %v1698 = vadd.f32 %v1561, %v1048
      %v1699 = vadd.f32 %v1562, %v1050
      %v1700 = vadd.f32 %v1563, %v1053
      %v1701 = vadd.f32 %v1564, %v1055
      %v1702 = vadd.f32 %v1565, %v1058
      %v1703 = vadd.f32 %v1566, %v1060
      %v1704 = vadd.f32 %v1567, %v1063
      %v1705 = vadd.f32 %v1568, %v1065
      %v1706 = vadd.f32 %v1569, %v1068
      %v1707 = vadd.f32 %v1570, %v1070
      %v1708 = vadd.f32 %v1571, %v1073
      %v1709 = vadd.f32 %v1572, %v1075
      %v1710 = vadd.f32 %v1573, %v1078
      %v1711 = vadd.f32 %v1574, %v1080
      %v1712 = vadd.f32 %v1575, %v1083
      %v1713 = vadd.f32 %v1576, %v1085
      %v1714 = vadd.f32 %v1577, %v1088
      %v1715 = vadd.f32 %v1578, %v1090
      %v1716 = vadd.f32 %v1696, %v1676
      %v1717 = vadd.f32 %v1697, %v1677
      %v1718 = vadd.f32 %v1698, %v1678
      %v1719 = vadd.f32 %v1699, %v1679
      %v1720 = vadd.f32 %v1700, %v1680
      %v1721 = vadd.f32 %v1701, %v1681
      %v1722 = vadd.f32 %v1702, %v1682
      %v1723 = vadd.f32 %v1703, %v1683
      %v1724 = vadd.f32 %v1704, %v1684
      %v1725 = vadd.f32 %v1705, %v1685
      %v1726 = vadd.f32 %v1706, %v1686
      %v1727 = vadd.f32 %v1707, %v1687
      %v1728 = vadd.f32 %v1708, %v1688
      %v1729 = vadd.f32 %v1709, %v1689
      %v1730 = vadd.f32 %v1710, %v1690
      %v1731 = vadd.f32 %v1711, %v1691
      %v1732 = vadd.f32 %v1712, %v1692
      %v1733 = vadd.f32 %v1713, %v1693
      %v1734 = vadd.f32 %v1714, %v1694
      %v1735 = vadd.f32 %v1715, %v1695
      %v1736 = vld [vmem:[%s3] sm:$0x1]
      %v1738 = vperm.slane %v1736, 0
      %v1740 = vadd.f32 %v1716, %v1738
      %v1741 = vadd.f32 %v1717, %v1738
      %v1742 = vadd.f32 %v1718, %v1738
      %v1743 = vadd.f32 %v1719, %v1738
      %v1744 = vadd.f32 %v1720, %v1738
      %v1745 = vadd.f32 %v1721, %v1738
      %v1746 = vadd.f32 %v1722, %v1738
      %v1747 = vadd.f32 %v1723, %v1738
      %v1748 = vadd.f32 %v1724, %v1738
      %v1749 = vadd.f32 %v1725, %v1738
      %v1750 = vadd.f32 %v1726, %v1738
      %v1751 = vadd.f32 %v1727, %v1738
      %v1752 = vadd.f32 %v1728, %v1738
      %v1753 = vadd.f32 %v1729, %v1738
      %v1754 = vadd.f32 %v1730, %v1738
      %v1755 = vadd.f32 %v1731, %v1738
      %v1756 = vadd.f32 %v1732, %v1738
      %v1757 = vadd.f32 %v1733, %v1738
      %v1758 = vadd.f32 %v1734, %v1738
      %v1759 = vadd.f32 %v1735, %v1738
      %v1760 = vmax.f32 %v1740, 0.0
      %v1761 = vmax.f32 %v1741, 0.0
      %v1762 = vmax.f32 %v1742, 0.0
      %v1763 = vmax.f32 %v1743, 0.0
      %v1764 = vmax.f32 %v1744, 0.0
      %v1765 = vmax.f32 %v1745, 0.0
      %v1766 = vmax.f32 %v1746, 0.0
      %v1767 = vmax.f32 %v1747, 0.0
      %v1768 = vmax.f32 %v1748, 0.0
      %v1769 = vmax.f32 %v1749, 0.0
      %v1770 = vmax.f32 %v1750, 0.0
      %v1771 = vmax.f32 %v1751, 0.0
      %v1772 = vmax.f32 %v1752, 0.0
      %v1773 = vmax.f32 %v1753, 0.0
      %v1774 = vmax.f32 %v1754, 0.0
      %v1775 = vmax.f32 %v1755, 0.0
      %v1776 = vmax.f32 %v1756, 0.0
      %v1777 = vmax.f32 %v1757, 0.0
      %v1778 = vmax.f32 %v1758, 0.0
      %v1779 = vmax.f32 %v1759, 0.0
      %s1780 = ssub.s32 %s250, 1
      %v1781 = vstv %s1780
      %v1782 = vadd.s32 %v1781, 1
      %v1783 = vadd.s32 %v1781, 2
      %v1784 = vadd.s32 %v1781, 3
      %v1785 = vadd.s32 %v1781, 4
      %v1786 = vadd.s32 %v1781, 5
      %v1787 = vadd.s32 %v1781, 6
      %v1788 = vadd.s32 %v1781, 7
      %v1789 = vadd.s32 %v1781, 8
      %v1790 = vadd.s32 %v1781, 9
      %vm1791 = vcmp.ge.s32.totalorder %v1781, 0
      %vm1792 = vcmp.ge.s32.totalorder %v1782, 0
      %vm1793 = vcmp.ge.s32.totalorder %v1783, 0
      %vm1794 = vcmp.ge.s32.totalorder %v1784, 0
      %vm1795 = vcmp.ge.s32.totalorder %v1785, 0
      %vm1796 = vcmp.ge.s32.totalorder %v1786, 0
      %vm1797 = vcmp.ge.s32.totalorder %v1787, 0
      %vm1798 = vcmp.ge.s32.totalorder %v1788, 0
      %vm1799 = vcmp.ge.s32.totalorder %v1789, 0
      %vm1800 = vcmp.ge.s32.totalorder %v1790, 0
      %vm1801 = vcmp.lt.s32.totalorder %v1781, 16
      %vm1802 = vcmp.lt.s32.totalorder %v1782, 16
      %vm1803 = vcmp.lt.s32.totalorder %v1783, 16
      %vm1804 = vcmp.lt.s32.totalorder %v1784, 16
      %vm1805 = vcmp.lt.s32.totalorder %v1785, 16
      %vm1806 = vcmp.lt.s32.totalorder %v1786, 16
      %vm1807 = vcmp.lt.s32.totalorder %v1787, 16
      %vm1808 = vcmp.lt.s32.totalorder %v1788, 16
      %vm1809 = vcmp.lt.s32.totalorder %v1789, 16
      %vm1810 = vcmp.lt.s32.totalorder %v1790, 16
      %vm1811 = vmand %vm1791, %vm1801
      %vm1812 = vmand %vm1792, %vm1802
      %vm1813 = vmand %vm1793, %vm1803
      %vm1814 = vmand %vm1794, %vm1804
      %vm1815 = vmand %vm1795, %vm1805
      %vm1816 = vmand %vm1796, %vm1806
      %vm1817 = vmand %vm1797, %vm1807
      %vm1818 = vmand %vm1798, %vm1808
      %vm1819 = vmand %vm1799, %vm1809
      %vm1820 = vmand %vm1800, %vm1810
      %v1821 = vsel %vm1811, 1, 0
      %v1822 = vsel %vm1812, 1, 0
      %v1823 = vsel %vm1813, 1, 0
      %v1824 = vsel %vm1814, 1, 0
      %v1825 = vsel %vm1815, 1, 0
      %v1826 = vsel %vm1816, 1, 0
      %v1827 = vsel %vm1817, 1, 0
      %v1828 = vsel %vm1818, 1, 0
      %v1829 = vsel %vm1819, 1, 0
      %v1830 = vsel %vm1820, 1, 0
      %vm1831 = vcmp.eq.s32.totalorder %v1821, 1
      %vm1832 = vcmp.eq.s32.totalorder %v1822, 1
      %vm1833 = vcmp.eq.s32.totalorder %v1823, 1
      %vm1834 = vcmp.eq.s32.totalorder %v1824, 1
      %vm1835 = vcmp.eq.s32.totalorder %v1825, 1
      %vm1836 = vcmp.eq.s32.totalorder %v1826, 1
      %vm1837 = vcmp.eq.s32.totalorder %v1827, 1
      %vm1838 = vcmp.eq.s32.totalorder %v1828, 1
      %vm1839 = vcmp.eq.s32.totalorder %v1829, 1
      %vm1840 = vcmp.eq.s32.totalorder %v1830, 1
      %v1841 = vsel %vm1831, %v1760, 0.0
      %v1842 = vsel %vm1831, %v1761, 0.0
      %v1843 = vsel %vm1832, %v1762, 0.0
      %v1844 = vsel %vm1832, %v1763, 0.0
      %v1845 = vsel %vm1833, %v1764, 0.0
      %v1846 = vsel %vm1833, %v1765, 0.0
      %v1847 = vsel %vm1834, %v1766, 0.0
      %v1848 = vsel %vm1834, %v1767, 0.0
      %v1849 = vsel %vm1835, %v1768, 0.0
      %v1850 = vsel %vm1835, %v1769, 0.0
      %v1851 = vsel %vm1836, %v1770, 0.0
      %v1852 = vsel %vm1836, %v1771, 0.0
      %v1853 = vsel %vm1837, %v1772, 0.0
      %v1854 = vsel %vm1837, %v1773, 0.0
      %v1855 = vsel %vm1838, %v1774, 0.0
      %v1856 = vsel %vm1838, %v1775, 0.0
      %v1857 = vsel %vm1839, %v1776, 0.0
      %v1858 = vsel %vm1839, %v1777, 0.0
      %v1859 = vsel %vm1840, %v1778, 0.0
      %v1860 = vsel %vm1840, %v1779, 0.0
      %v1861 = vpack.c.bf16 %v1841, %v1841
      %v1862 = vpack.c.bf16 %v1842, %v1842
      %v1863 = vpack.c.bf16 %v1843, %v1843
      %v1864 = vpack.c.bf16 %v1844, %v1844
      %v1865 = vpack.c.bf16 %v1845, %v1845
      %v1866 = vpack.c.bf16 %v1846, %v1846
      %v1867 = vpack.c.bf16 %v1847, %v1847
      %v1868 = vpack.c.bf16 %v1848, %v1848
      %v1869 = vpack.c.bf16 %v1849, %v1849
      %v1870 = vpack.c.bf16 %v1850, %v1850
      %v1871 = vpack.c.bf16 %v1851, %v1851
      %v1872 = vpack.c.bf16 %v1852, %v1852
      %v1873 = vpack.c.bf16 %v1853, %v1853
      %v1874 = vpack.c.bf16 %v1854, %v1854
      %v1875 = vpack.c.bf16 %v1855, %v1855
      %v1876 = vpack.c.bf16 %v1856, %v1856
      %v1877 = vpack.c.bf16 %v1857, %v1857
      %v1878 = vpack.c.bf16 %v1858, %v1858
      %v1879 = vpack.c.bf16 %v1859, %v1859
      %v1880 = vpack.c.bf16 %v1860, %v1860
      %v1897 = vunpack.c.l.b16 %v1861
      %v1898 = vunpack.c.l.b16 %v1862
      %v1899 = vunpack.c.l.b16 %v1863
      %v1900 = vunpack.c.l.b16 %v1864
      %v1901 = vunpack.c.l.b16 %v1865
      %v1902 = vunpack.c.l.b16 %v1866
      %v1903 = vunpack.c.l.b16 %v1867
      %v1904 = vunpack.c.l.b16 %v1868
      %v1905 = vunpack.c.l.b16 %v1869
      %v1906 = vunpack.c.l.b16 %v1870
      %v1907 = vunpack.c.l.b16 %v1871
      %v1908 = vunpack.c.l.b16 %v1872
      %v1909 = vunpack.c.l.b16 %v1873
      %v1910 = vunpack.c.l.b16 %v1874
      %v1911 = vunpack.c.l.b16 %v1875
      %v1912 = vunpack.c.l.b16 %v1876
      %v1913 = vpack.c.b16 %v1898, %v1897
      %v1914 = vpack.c.b16 %v1900, %v1899
      %v1915 = vpack.c.b16 %v1902, %v1901
      %v1916 = vpack.c.b16 %v1904, %v1903
      %v1917 = vpack.c.b16 %v1906, %v1905
      %v1918 = vpack.c.b16 %v1908, %v1907
      %v1919 = vpack.c.b16 %v1910, %v1909
      %v1920 = vpack.c.b16 %v1912, %v1911
      %v1931 = vunpack.c.l.b16 %v1877
      %v1932 = vunpack.c.l.b16 %v1878
      %v1933 = vpack.c.b16 %v1932, %v1931
      %v1937 = vunpack.c.l.b16 %v1879
      %v1938 = vunpack.c.l.b16 %v1880
      %v1939 = vpack.c.b16 %v1938, %v1937
      %v1941 = vld [vmem:[%s2] sm:$0xf]
      %v1942 = vld [vmem:[%s2 + $0x4] sm:$0xf]
      %v1943 = vld [vmem:[%s2 + $0x8] sm:$0xf]
      %v1944 = vld [vmem:[%s2 + $0xc] sm:$0xf]
      %v1945 = vld [vmem:[%s2 + $0x10] sm:$0xf]
      %v1946 = vld [vmem:[%s2 + $0x14] sm:$0xf]
      %v1947 = vld [vmem:[%s2 + $0x18] sm:$0xf]
      %v1948 = vld [vmem:[%s2 + $0x1c] sm:$0xf]
      %v1949 = vld [vmem:[%s2 + $0x20] sm:$0xf]
      %v1950 = vld [vmem:[%s2 + $0x24] sm:$0xf]
      %v1951 = vld [vmem:[%s2 + $0x28] sm:$0xf]
      %v1952 = vld [vmem:[%s2 + $0x2c] sm:$0xf]
      %v1953 = vld [vmem:[%s2 + $0x30] sm:$0xf]
      %v1954 = vld [vmem:[%s2 + $0x34] sm:$0xf]
      %v1955 = vld [vmem:[%s2 + $0x38] sm:$0xf]
      %v1956 = vld [vmem:[%s2 + $0x3c] sm:$0xf]
      %v1957 = vld [vmem:[%s2 + $0x40] sm:$0xf]
      %v1958 = vld [vmem:[%s2 + $0x44] sm:$0xf]
      %v1959 = vld [vmem:[%s2 + $0x48] sm:$0xf]
      %v1960 = vld [vmem:[%s2 + $0x4c] sm:$0xf]
      %v1961 = vld [vmem:[%s2 + $0x50] sm:$0xf]
      %v1962 = vld [vmem:[%s2 + $0x54] sm:$0xf]
      %v1963 = vld [vmem:[%s2 + $0x58] sm:$0xf]
      %v1964 = vld [vmem:[%s2 + $0x5c] sm:$0xf]
      %v1965 = vld [vmem:[%s2 + $0x60] sm:$0xf]
      %v1966 = vld [vmem:[%s2 + $0x64] sm:$0xf]
      %v1967 = vld [vmem:[%s2 + $0x68] sm:$0xf]
      %v1968 = vld [vmem:[%s2 + $0x6c] sm:$0xf]
      %v1969 = vld [vmem:[%s2 + $0x70] sm:$0xf]
      %v1970 = vld [vmem:[%s2 + $0x74] sm:$0xf]
      %v1971 = vld [vmem:[%s2 + $0x78] sm:$0xf]
      %v1972 = vld [vmem:[%s2 + $0x7c] sm:$0xf]
      %v1973 = vld [vmem:[%s2 + $0x80] sm:$0xf]
      %v1974 = vld [vmem:[%s2 + $0x84] sm:$0xf]
      %v1975 = vld [vmem:[%s2 + $0x88] sm:$0xf]
      %v1976 = vld [vmem:[%s2 + $0x8c] sm:$0xf]
      %v1977 = vld [vmem:[%s2 + $0x90] sm:$0xf]
      %v1978 = vld [vmem:[%s2 + $0x94] sm:$0xf]
      %v1979 = vld [vmem:[%s2 + $0x98] sm:$0xf]
      %v1980 = vld [vmem:[%s2 + $0x9c] sm:$0xf]
      %v1981 = vld [vmem:[%s2 + $0xa0] sm:$0xf]
      %v1982 = vld [vmem:[%s2 + $0xa4] sm:$0xf]
      %v1983 = vld [vmem:[%s2 + $0xa8] sm:$0xf]
      %v1984 = vld [vmem:[%s2 + $0xac] sm:$0xf]
      %v1985 = vld [vmem:[%s2 + $0xb0] sm:$0xf]
      %v1986 = vld [vmem:[%s2 + $0xb4] sm:$0xf]
      %v1987 = vld [vmem:[%s2 + $0xb8] sm:$0xf]
      %v1988 = vld [vmem:[%s2 + $0xbc] sm:$0xf]
      %v2037 = vunpack.c.l.b16 %v1941
      %v2038 = vunpack.c.l.b16 %v1942
      %v2039 = vunpack.c.l.b16 %v1943
      %v2040 = vunpack.c.l.b16 %v1944
      %v2041 = vunpack.c.l.b16 %v1945
      %v2042 = vunpack.c.l.b16 %v1946
      %v2043 = vunpack.c.l.b16 %v1947
      %v2044 = vunpack.c.l.b16 %v1948
      %v2045 = vunpack.c.l.b16 %v1949
      %v2046 = vunpack.c.l.b16 %v1950
      %v2047 = vunpack.c.l.b16 %v1951
      %v2048 = vunpack.c.l.b16 %v1952
      %v2049 = vunpack.c.l.b16 %v1953
      %v2050 = vunpack.c.l.b16 %v1954
      %v2051 = vunpack.c.l.b16 %v1955
      %v2052 = vunpack.c.l.b16 %v1956
      %v2053 = vunpack.c.l.b16 %v1957
      %v2054 = vunpack.c.l.b16 %v1958
      %v2055 = vunpack.c.l.b16 %v1959
      %v2056 = vunpack.c.l.b16 %v1960
      %v2057 = vunpack.c.l.b16 %v1961
      %v2058 = vunpack.c.l.b16 %v1962
      %v2059 = vunpack.c.l.b16 %v1963
      %v2060 = vunpack.c.l.b16 %v1964
      %v2061 = vunpack.c.l.b16 %v1965
      %v2062 = vunpack.c.l.b16 %v1966
      %v2063 = vunpack.c.l.b16 %v1967
      %v2064 = vunpack.c.l.b16 %v1968
      %v2065 = vunpack.c.l.b16 %v1969
      %v2066 = vunpack.c.l.b16 %v1970
      %v2067 = vunpack.c.l.b16 %v1971
      %v2068 = vunpack.c.l.b16 %v1972
      %v2069 = vunpack.c.l.b16 %v1973
      %v2070 = vunpack.c.l.b16 %v1974
      %v2071 = vunpack.c.l.b16 %v1975
      %v2072 = vunpack.c.l.b16 %v1976
      %v2073 = vunpack.c.l.b16 %v1977
      %v2074 = vunpack.c.l.b16 %v1978
      %v2075 = vunpack.c.l.b16 %v1979
      %v2076 = vunpack.c.l.b16 %v1980
      %v2077 = vunpack.c.l.b16 %v1981
      %v2078 = vunpack.c.l.b16 %v1982
      %v2079 = vunpack.c.l.b16 %v1983
      %v2080 = vunpack.c.l.b16 %v1984
      %v2081 = vunpack.c.l.b16 %v1985
      %v2082 = vunpack.c.l.b16 %v1986
      %v2083 = vunpack.c.l.b16 %v1987
      %v2084 = vunpack.c.l.b16 %v1988
      %v2085 = vpack.c.b16 %v2038, %v2037
      %v2086 = vpack.c.b16 %v2040, %v2039
      %v2087 = vpack.c.b16 %v2042, %v2041
      %v2088 = vpack.c.b16 %v2044, %v2043
      %v2089 = vpack.c.b16 %v2046, %v2045
      %v2090 = vpack.c.b16 %v2048, %v2047
      %v2091 = vpack.c.b16 %v2050, %v2049
      %v2092 = vpack.c.b16 %v2052, %v2051
      %v2093 = vpack.c.b16 %v2054, %v2053
      %v2094 = vpack.c.b16 %v2056, %v2055
      %v2095 = vpack.c.b16 %v2058, %v2057
      %v2096 = vpack.c.b16 %v2060, %v2059
      %v2097 = vpack.c.b16 %v2062, %v2061
      %v2098 = vpack.c.b16 %v2064, %v2063
      %v2099 = vpack.c.b16 %v2066, %v2065
      %v2100 = vpack.c.b16 %v2068, %v2067
      %v2101 = vpack.c.b16 %v2070, %v2069
      %v2102 = vpack.c.b16 %v2072, %v2071
      %v2103 = vpack.c.b16 %v2074, %v2073
      %v2104 = vpack.c.b16 %v2076, %v2075
      %v2105 = vpack.c.b16 %v2078, %v2077
      %v2106 = vpack.c.b16 %v2080, %v2079
      %v2107 = vpack.c.b16 %v2082, %v2081
      %v2108 = vpack.c.b16 %v2084, %v2083
      %2133 = vmatpush.bf16.msra.mxu0 %v2092
      %2134 = vmatpush.bf16.msra.mxu0 %v2091
      %2135 = vmatpush.bf16.msra.mxu0 %v2090
      %2136 = vmatpush.bf16.msra.mxu0 %v2089
      %2137 = vmatpush.bf16.msra.mxu0 %v2088
      %2138 = vmatpush.bf16.msra.mxu0 %v2087
      %2139 = vmatpush.bf16.msra.mxu0 %v2086
      %2140 = vmatpush.bf16.msra.mxu0 %v2085
      %2141 = vmatmul.bf16.gmra.mxu0 %v1913
      %v2142 = vpop.f32.mrf.mxu0
      %v2143 = vadd.f32 0.0, %v2142
      %v2144 = vpop.f32.mrf.mxu0
      %v2145 = vadd.f32 0.0, %v2144
      %2146 = vmatmul.bf16.gmra.mxu0 %v1914
      %v2147 = vpop.f32.mrf.mxu0
      %v2148 = vadd.f32 0.0, %v2147
      %v2149 = vpop.f32.mrf.mxu0
      %v2150 = vadd.f32 0.0, %v2149
      %2151 = vmatmul.bf16.gmra.mxu0 %v1915
      %v2152 = vpop.f32.mrf.mxu0
      %v2153 = vadd.f32 0.0, %v2152
      %v2154 = vpop.f32.mrf.mxu0
      %v2155 = vadd.f32 0.0, %v2154
      %2156 = vmatmul.bf16.gmra.mxu0 %v1916
      %v2157 = vpop.f32.mrf.mxu0
      %v2158 = vadd.f32 0.0, %v2157
      %v2159 = vpop.f32.mrf.mxu0
      %v2160 = vadd.f32 0.0, %v2159
      %2161 = vmatmul.bf16.gmra.mxu0 %v1917
      %v2162 = vpop.f32.mrf.mxu0
      %v2163 = vadd.f32 0.0, %v2162
      %v2164 = vpop.f32.mrf.mxu0
      %v2165 = vadd.f32 0.0, %v2164
      %2166 = vmatmul.bf16.gmra.mxu0 %v1918
      %v2167 = vpop.f32.mrf.mxu0
      %v2168 = vadd.f32 0.0, %v2167
      %v2169 = vpop.f32.mrf.mxu0
      %v2170 = vadd.f32 0.0, %v2169
      %2171 = vmatmul.bf16.gmra.mxu0 %v1919
      %v2172 = vpop.f32.mrf.mxu0
      %v2173 = vadd.f32 0.0, %v2172
      %v2174 = vpop.f32.mrf.mxu0
      %v2175 = vadd.f32 0.0, %v2174
      %2176 = vmatmul.bf16.gmra.mxu0 %v1920
      %v2177 = vpop.f32.mrf.mxu0
      %v2178 = vadd.f32 0.0, %v2177
      %v2179 = vpop.f32.mrf.mxu0
      %v2180 = vadd.f32 0.0, %v2179
      %2181 = vdwg.mxu0
      %2182 = vmatpush.bf16.msra.mxu0 %v2100
      %2183 = vmatpush.bf16.msra.mxu0 %v2099
      %2184 = vmatpush.bf16.msra.mxu0 %v2098
      %2185 = vmatpush.bf16.msra.mxu0 %v2097
      %2186 = vmatpush.bf16.msra.mxu0 %v2096
      %2187 = vmatpush.bf16.msra.mxu0 %v2095
      %2188 = vmatpush.bf16.msra.mxu0 %v2094
      %2189 = vmatpush.bf16.msra.mxu0 %v2093
      %2190 = vmatmul.bf16.gmra.mxu0 %v1914
      %v2191 = vpop.f32.mrf.mxu0
      %v2192 = vadd.f32 %v2143, %v2191
      %v2193 = vpop.f32.mrf.mxu0
      %v2194 = vadd.f32 %v2145, %v2193
      %2195 = vmatmul.bf16.gmra.mxu0 %v1915
      %v2196 = vpop.f32.mrf.mxu0
      %v2197 = vadd.f32 %v2148, %v2196
      %v2198 = vpop.f32.mrf.mxu0
      %v2199 = vadd.f32 %v2150, %v2198
      %2200 = vmatmul.bf16.gmra.mxu0 %v1916
      %v2201 = vpop.f32.mrf.mxu0
      %v2202 = vadd.f32 %v2153, %v2201
      %v2203 = vpop.f32.mrf.mxu0
      %v2204 = vadd.f32 %v2155, %v2203
      %2205 = vmatmul.bf16.gmra.mxu0 %v1917
      %v2206 = vpop.f32.mrf.mxu0
      %v2207 = vadd.f32 %v2158, %v2206
      %v2208 = vpop.f32.mrf.mxu0
      %v2209 = vadd.f32 %v2160, %v2208
      %2210 = vmatmul.bf16.gmra.mxu0 %v1918
      %v2211 = vpop.f32.mrf.mxu0
      %v2212 = vadd.f32 %v2163, %v2211
      %v2213 = vpop.f32.mrf.mxu0
      %v2214 = vadd.f32 %v2165, %v2213
      %2215 = vmatmul.bf16.gmra.mxu0 %v1919
      %v2216 = vpop.f32.mrf.mxu0
      %v2217 = vadd.f32 %v2168, %v2216
      %v2218 = vpop.f32.mrf.mxu0
      %v2219 = vadd.f32 %v2170, %v2218
      %2220 = vmatmul.bf16.gmra.mxu0 %v1920
      %v2221 = vpop.f32.mrf.mxu0
      %v2222 = vadd.f32 %v2173, %v2221
      %v2223 = vpop.f32.mrf.mxu0
      %v2224 = vadd.f32 %v2175, %v2223
      %2225 = vmatmul.bf16.gmra.mxu0 %v1933
      %v2226 = vpop.f32.mrf.mxu0
      %v2227 = vadd.f32 %v2178, %v2226
      %v2228 = vpop.f32.mrf.mxu0
      %v2229 = vadd.f32 %v2180, %v2228
      %2230 = vdwg.mxu0
      %2231 = vmatpush.bf16.msra.mxu0 %v2108
      %2232 = vmatpush.bf16.msra.mxu0 %v2107
      %2233 = vmatpush.bf16.msra.mxu0 %v2106
      %2234 = vmatpush.bf16.msra.mxu0 %v2105
      %2235 = vmatpush.bf16.msra.mxu0 %v2104
      %2236 = vmatpush.bf16.msra.mxu0 %v2103
      %2237 = vmatpush.bf16.msra.mxu0 %v2102
      %2238 = vmatpush.bf16.msra.mxu0 %v2101
      %2239 = vmatmul.bf16.gmra.mxu0 %v1915
      %v2240 = vpop.f32.mrf.mxu0
      %v2241 = vadd.f32 %v2192, %v2240
      %v2242 = vpop.f32.mrf.mxu0
      %v2243 = vadd.f32 %v2194, %v2242
      %2244 = vmatmul.bf16.gmra.mxu0 %v1916
      %v2245 = vpop.f32.mrf.mxu0
      %v2246 = vadd.f32 %v2197, %v2245
      %v2247 = vpop.f32.mrf.mxu0
      %v2248 = vadd.f32 %v2199, %v2247
      %2249 = vmatmul.bf16.gmra.mxu0 %v1917
      %v2250 = vpop.f32.mrf.mxu0
      %v2251 = vadd.f32 %v2202, %v2250
      %v2252 = vpop.f32.mrf.mxu0
      %v2253 = vadd.f32 %v2204, %v2252
      %2254 = vmatmul.bf16.gmra.mxu0 %v1918
      %v2255 = vpop.f32.mrf.mxu0
      %v2256 = vadd.f32 %v2207, %v2255
      %v2257 = vpop.f32.mrf.mxu0
      %v2258 = vadd.f32 %v2209, %v2257
      %2259 = vmatmul.bf16.gmra.mxu0 %v1919
      %v2260 = vpop.f32.mrf.mxu0
      %v2261 = vadd.f32 %v2212, %v2260
      %v2262 = vpop.f32.mrf.mxu0
      %v2263 = vadd.f32 %v2214, %v2262
      %2264 = vmatmul.bf16.gmra.mxu0 %v1920
      %v2265 = vpop.f32.mrf.mxu0
      %v2266 = vadd.f32 %v2217, %v2265
      %v2267 = vpop.f32.mrf.mxu0
      %v2268 = vadd.f32 %v2219, %v2267
      %2269 = vmatmul.bf16.gmra.mxu0 %v1933
      %v2270 = vpop.f32.mrf.mxu0
      %v2271 = vadd.f32 %v2222, %v2270
      %v2272 = vpop.f32.mrf.mxu0
      %v2273 = vadd.f32 %v2224, %v2272
      %2274 = vmatmul.bf16.gmra.mxu0 %v1939
      %v2275 = vpop.f32.mrf.mxu0
      %v2276 = vadd.f32 %v2227, %v2275
      %v2277 = vpop.f32.mrf.mxu0
      %v2278 = vadd.f32 %v2229, %v2277
      %2279 = vdwg.mxu0
      %s2280 = scalar_lea.vmem %s2, 192
      %v2281 = vld [vmem:[%s2280] sm:$0xf]
      %v2282 = vld [vmem:[%s2280 + $0x4] sm:$0xf]
      %v2283 = vld [vmem:[%s2280 + $0x8] sm:$0xf]
      %v2284 = vld [vmem:[%s2280 + $0xc] sm:$0xf]
      %v2285 = vld [vmem:[%s2280 + $0x10] sm:$0xf]
      %v2286 = vld [vmem:[%s2280 + $0x14] sm:$0xf]
      %v2287 = vld [vmem:[%s2280 + $0x18] sm:$0xf]
      %v2288 = vld [vmem:[%s2280 + $0x1c] sm:$0xf]
      %v2289 = vld [vmem:[%s2280 + $0x20] sm:$0xf]
      %v2290 = vld [vmem:[%s2280 + $0x24] sm:$0xf]
      %v2291 = vld [vmem:[%s2280 + $0x28] sm:$0xf]
      %v2292 = vld [vmem:[%s2280 + $0x2c] sm:$0xf]
      %v2293 = vld [vmem:[%s2280 + $0x30] sm:$0xf]
      %v2294 = vld [vmem:[%s2280 + $0x34] sm:$0xf]
      %v2295 = vld [vmem:[%s2280 + $0x38] sm:$0xf]
      %v2296 = vld [vmem:[%s2280 + $0x3c] sm:$0xf]
      %v2297 = vld [vmem:[%s2280 + $0x40] sm:$0xf]
      %v2298 = vld [vmem:[%s2280 + $0x44] sm:$0xf]
      %v2299 = vld [vmem:[%s2280 + $0x48] sm:$0xf]
      %v2300 = vld [vmem:[%s2280 + $0x4c] sm:$0xf]
      %v2301 = vld [vmem:[%s2280 + $0x50] sm:$0xf]
      %v2302 = vld [vmem:[%s2280 + $0x54] sm:$0xf]
      %v2303 = vld [vmem:[%s2280 + $0x58] sm:$0xf]
      %v2304 = vld [vmem:[%s2280 + $0x5c] sm:$0xf]
      %v2305 = vld [vmem:[%s2280 + $0x60] sm:$0xf]
      %v2306 = vld [vmem:[%s2280 + $0x64] sm:$0xf]
      %v2307 = vld [vmem:[%s2280 + $0x68] sm:$0xf]
      %v2308 = vld [vmem:[%s2280 + $0x6c] sm:$0xf]
      %v2309 = vld [vmem:[%s2280 + $0x70] sm:$0xf]
      %v2310 = vld [vmem:[%s2280 + $0x74] sm:$0xf]
      %v2311 = vld [vmem:[%s2280 + $0x78] sm:$0xf]
      %v2312 = vld [vmem:[%s2280 + $0x7c] sm:$0xf]
      %v2313 = vld [vmem:[%s2280 + $0x80] sm:$0xf]
      %v2314 = vld [vmem:[%s2280 + $0x84] sm:$0xf]
      %v2315 = vld [vmem:[%s2280 + $0x88] sm:$0xf]
      %v2316 = vld [vmem:[%s2280 + $0x8c] sm:$0xf]
      %v2317 = vld [vmem:[%s2280 + $0x90] sm:$0xf]
      %v2318 = vld [vmem:[%s2280 + $0x94] sm:$0xf]
      %v2319 = vld [vmem:[%s2280 + $0x98] sm:$0xf]
      %v2320 = vld [vmem:[%s2280 + $0x9c] sm:$0xf]
      %v2321 = vld [vmem:[%s2280 + $0xa0] sm:$0xf]
      %v2322 = vld [vmem:[%s2280 + $0xa4] sm:$0xf]
      %v2323 = vld [vmem:[%s2280 + $0xa8] sm:$0xf]
      %v2324 = vld [vmem:[%s2280 + $0xac] sm:$0xf]
      %v2325 = vld [vmem:[%s2280 + $0xb0] sm:$0xf]
      %v2326 = vld [vmem:[%s2280 + $0xb4] sm:$0xf]
      %v2327 = vld [vmem:[%s2280 + $0xb8] sm:$0xf]
      %v2328 = vld [vmem:[%s2280 + $0xbc] sm:$0xf]
      %v2377 = vunpack.c.l.b16 %v2281
      %v2378 = vunpack.c.l.b16 %v2282
      %v2379 = vunpack.c.l.b16 %v2283
      %v2380 = vunpack.c.l.b16 %v2284
      %v2381 = vunpack.c.l.b16 %v2285
      %v2382 = vunpack.c.l.b16 %v2286
      %v2383 = vunpack.c.l.b16 %v2287
      %v2384 = vunpack.c.l.b16 %v2288
      %v2385 = vunpack.c.l.b16 %v2289
      %v2386 = vunpack.c.l.b16 %v2290
      %v2387 = vunpack.c.l.b16 %v2291
      %v2388 = vunpack.c.l.b16 %v2292
      %v2389 = vunpack.c.l.b16 %v2293
      %v2390 = vunpack.c.l.b16 %v2294
      %v2391 = vunpack.c.l.b16 %v2295
      %v2392 = vunpack.c.l.b16 %v2296
      %v2393 = vunpack.c.l.b16 %v2297
      %v2394 = vunpack.c.l.b16 %v2298
      %v2395 = vunpack.c.l.b16 %v2299
      %v2396 = vunpack.c.l.b16 %v2300
      %v2397 = vunpack.c.l.b16 %v2301
      %v2398 = vunpack.c.l.b16 %v2302
      %v2399 = vunpack.c.l.b16 %v2303
      %v2400 = vunpack.c.l.b16 %v2304
      %v2401 = vunpack.c.l.b16 %v2305
      %v2402 = vunpack.c.l.b16 %v2306
      %v2403 = vunpack.c.l.b16 %v2307
      %v2404 = vunpack.c.l.b16 %v2308
      %v2405 = vunpack.c.l.b16 %v2309
      %v2406 = vunpack.c.l.b16 %v2310
      %v2407 = vunpack.c.l.b16 %v2311
      %v2408 = vunpack.c.l.b16 %v2312
      %v2409 = vunpack.c.l.b16 %v2313
      %v2410 = vunpack.c.l.b16 %v2314
      %v2411 = vunpack.c.l.b16 %v2315
      %v2412 = vunpack.c.l.b16 %v2316
      %v2413 = vunpack.c.l.b16 %v2317
      %v2414 = vunpack.c.l.b16 %v2318
      %v2415 = vunpack.c.l.b16 %v2319
      %v2416 = vunpack.c.l.b16 %v2320
      %v2417 = vunpack.c.l.b16 %v2321
      %v2418 = vunpack.c.l.b16 %v2322
      %v2419 = vunpack.c.l.b16 %v2323
      %v2420 = vunpack.c.l.b16 %v2324
      %v2421 = vunpack.c.l.b16 %v2325
      %v2422 = vunpack.c.l.b16 %v2326
      %v2423 = vunpack.c.l.b16 %v2327
      %v2424 = vunpack.c.l.b16 %v2328
      %v2425 = vpack.c.b16 %v2378, %v2377
      %v2426 = vpack.c.b16 %v2380, %v2379
      %v2427 = vpack.c.b16 %v2382, %v2381
      %v2428 = vpack.c.b16 %v2384, %v2383
      %v2429 = vpack.c.b16 %v2386, %v2385
      %v2430 = vpack.c.b16 %v2388, %v2387
      %v2431 = vpack.c.b16 %v2390, %v2389
      %v2432 = vpack.c.b16 %v2392, %v2391
      %v2433 = vpack.c.b16 %v2394, %v2393
      %v2434 = vpack.c.b16 %v2396, %v2395
      %v2435 = vpack.c.b16 %v2398, %v2397
      %v2436 = vpack.c.b16 %v2400, %v2399
      %v2437 = vpack.c.b16 %v2402, %v2401
      %v2438 = vpack.c.b16 %v2404, %v2403
      %v2439 = vpack.c.b16 %v2406, %v2405
      %v2440 = vpack.c.b16 %v2408, %v2407
      %v2441 = vpack.c.b16 %v2410, %v2409
      %v2442 = vpack.c.b16 %v2412, %v2411
      %v2443 = vpack.c.b16 %v2414, %v2413
      %v2444 = vpack.c.b16 %v2416, %v2415
      %v2445 = vpack.c.b16 %v2418, %v2417
      %v2446 = vpack.c.b16 %v2420, %v2419
      %v2447 = vpack.c.b16 %v2422, %v2421
      %v2448 = vpack.c.b16 %v2424, %v2423
      %2473 = vmatpush.bf16.msra.mxu0 %v2432
      %2474 = vmatpush.bf16.msra.mxu0 %v2431
      %2475 = vmatpush.bf16.msra.mxu0 %v2430
      %2476 = vmatpush.bf16.msra.mxu0 %v2429
      %2477 = vmatpush.bf16.msra.mxu0 %v2428
      %2478 = vmatpush.bf16.msra.mxu0 %v2427
      %2479 = vmatpush.bf16.msra.mxu0 %v2426
      %2480 = vmatpush.bf16.msra.mxu0 %v2425
      %2481 = vmatmul.bf16.gmra.mxu0 %v1913
      %v2482 = vpop.f32.mrf.mxu0
      %v2483 = vadd.f32 0.0, %v2482
      %v2484 = vpop.f32.mrf.mxu0
      %v2485 = vadd.f32 0.0, %v2484
      %2486 = vmatmul.bf16.gmra.mxu0 %v1914
      %v2487 = vpop.f32.mrf.mxu0
      %v2488 = vadd.f32 0.0, %v2487
      %v2489 = vpop.f32.mrf.mxu0
      %v2490 = vadd.f32 0.0, %v2489
      %2491 = vmatmul.bf16.gmra.mxu0 %v1915
      %v2492 = vpop.f32.mrf.mxu0
      %v2493 = vadd.f32 0.0, %v2492
      %v2494 = vpop.f32.mrf.mxu0
      %v2495 = vadd.f32 0.0, %v2494
      %2496 = vmatmul.bf16.gmra.mxu0 %v1916
      %v2497 = vpop.f32.mrf.mxu0
      %v2498 = vadd.f32 0.0, %v2497
      %v2499 = vpop.f32.mrf.mxu0
      %v2500 = vadd.f32 0.0, %v2499
      %2501 = vmatmul.bf16.gmra.mxu0 %v1917
      %v2502 = vpop.f32.mrf.mxu0
      %v2503 = vadd.f32 0.0, %v2502
      %v2504 = vpop.f32.mrf.mxu0
      %v2505 = vadd.f32 0.0, %v2504
      %2506 = vmatmul.bf16.gmra.mxu0 %v1918
      %v2507 = vpop.f32.mrf.mxu0
      %v2508 = vadd.f32 0.0, %v2507
      %v2509 = vpop.f32.mrf.mxu0
      %v2510 = vadd.f32 0.0, %v2509
      %2511 = vmatmul.bf16.gmra.mxu0 %v1919
      %v2512 = vpop.f32.mrf.mxu0
      %v2513 = vadd.f32 0.0, %v2512
      %v2514 = vpop.f32.mrf.mxu0
      %v2515 = vadd.f32 0.0, %v2514
      %2516 = vmatmul.bf16.gmra.mxu0 %v1920
      %v2517 = vpop.f32.mrf.mxu0
      %v2518 = vadd.f32 0.0, %v2517
      %v2519 = vpop.f32.mrf.mxu0
      %v2520 = vadd.f32 0.0, %v2519
      %2521 = vdwg.mxu0
      %2522 = vmatpush.bf16.msra.mxu0 %v2440
      %2523 = vmatpush.bf16.msra.mxu0 %v2439
      %2524 = vmatpush.bf16.msra.mxu0 %v2438
      %2525 = vmatpush.bf16.msra.mxu0 %v2437
      %2526 = vmatpush.bf16.msra.mxu0 %v2436
      %2527 = vmatpush.bf16.msra.mxu0 %v2435
      %2528 = vmatpush.bf16.msra.mxu0 %v2434
      %2529 = vmatpush.bf16.msra.mxu0 %v2433
      %2530 = vmatmul.bf16.gmra.mxu0 %v1914
      %v2531 = vpop.f32.mrf.mxu0
      %v2532 = vadd.f32 %v2483, %v2531
      %v2533 = vpop.f32.mrf.mxu0
      %v2534 = vadd.f32 %v2485, %v2533
      %2535 = vmatmul.bf16.gmra.mxu0 %v1915
      %v2536 = vpop.f32.mrf.mxu0
      %v2537 = vadd.f32 %v2488, %v2536
      %v2538 = vpop.f32.mrf.mxu0
      %v2539 = vadd.f32 %v2490, %v2538
      %2540 = vmatmul.bf16.gmra.mxu0 %v1916
      %v2541 = vpop.f32.mrf.mxu0
      %v2542 = vadd.f32 %v2493, %v2541
      %v2543 = vpop.f32.mrf.mxu0
      %v2544 = vadd.f32 %v2495, %v2543
      %2545 = vmatmul.bf16.gmra.mxu0 %v1917
      %v2546 = vpop.f32.mrf.mxu0
      %v2547 = vadd.f32 %v2498, %v2546
      %v2548 = vpop.f32.mrf.mxu0
      %v2549 = vadd.f32 %v2500, %v2548
      %2550 = vmatmul.bf16.gmra.mxu0 %v1918
      %v2551 = vpop.f32.mrf.mxu0
      %v2552 = vadd.f32 %v2503, %v2551
      %v2553 = vpop.f32.mrf.mxu0
      %v2554 = vadd.f32 %v2505, %v2553
      %2555 = vmatmul.bf16.gmra.mxu0 %v1919
      %v2556 = vpop.f32.mrf.mxu0
      %v2557 = vadd.f32 %v2508, %v2556
      %v2558 = vpop.f32.mrf.mxu0
      %v2559 = vadd.f32 %v2510, %v2558
      %2560 = vmatmul.bf16.gmra.mxu0 %v1920
      %v2561 = vpop.f32.mrf.mxu0
      %v2562 = vadd.f32 %v2513, %v2561
      %v2563 = vpop.f32.mrf.mxu0
      %v2564 = vadd.f32 %v2515, %v2563
      %2565 = vmatmul.bf16.gmra.mxu0 %v1933
      %v2566 = vpop.f32.mrf.mxu0
      %v2567 = vadd.f32 %v2518, %v2566
      %v2568 = vpop.f32.mrf.mxu0
      %v2569 = vadd.f32 %v2520, %v2568
      %2570 = vdwg.mxu0
      %2571 = vmatpush.bf16.msra.mxu0 %v2448
      %2572 = vmatpush.bf16.msra.mxu0 %v2447
      %2573 = vmatpush.bf16.msra.mxu0 %v2446
      %2574 = vmatpush.bf16.msra.mxu0 %v2445
      %2575 = vmatpush.bf16.msra.mxu0 %v2444
      %2576 = vmatpush.bf16.msra.mxu0 %v2443
      %2577 = vmatpush.bf16.msra.mxu0 %v2442
      %2578 = vmatpush.bf16.msra.mxu0 %v2441
      %2579 = vmatmul.bf16.gmra.mxu0 %v1915
      %v2580 = vpop.f32.mrf.mxu0
      %v2581 = vadd.f32 %v2532, %v2580
      %v2582 = vpop.f32.mrf.mxu0
      %v2583 = vadd.f32 %v2534, %v2582
      %2584 = vmatmul.bf16.gmra.mxu0 %v1916
      %v2585 = vpop.f32.mrf.mxu0
      %v2586 = vadd.f32 %v2537, %v2585
      %v2587 = vpop.f32.mrf.mxu0
      %v2588 = vadd.f32 %v2539, %v2587
      %2589 = vmatmul.bf16.gmra.mxu0 %v1917
      %v2590 = vpop.f32.mrf.mxu0
      %v2591 = vadd.f32 %v2542, %v2590
      %v2592 = vpop.f32.mrf.mxu0
      %v2593 = vadd.f32 %v2544, %v2592
      %2594 = vmatmul.bf16.gmra.mxu0 %v1918
      %v2595 = vpop.f32.mrf.mxu0
      %v2596 = vadd.f32 %v2547, %v2595
      %v2597 = vpop.f32.mrf.mxu0
      %v2598 = vadd.f32 %v2549, %v2597
      %2599 = vmatmul.bf16.gmra.mxu0 %v1919
      %v2600 = vpop.f32.mrf.mxu0
      %v2601 = vadd.f32 %v2552, %v2600
      %v2602 = vpop.f32.mrf.mxu0
      %v2603 = vadd.f32 %v2554, %v2602
      %2604 = vmatmul.bf16.gmra.mxu0 %v1920
      %v2605 = vpop.f32.mrf.mxu0
      %v2606 = vadd.f32 %v2557, %v2605
      %v2607 = vpop.f32.mrf.mxu0
      %v2608 = vadd.f32 %v2559, %v2607
      %2609 = vmatmul.bf16.gmra.mxu0 %v1933
      %v2610 = vpop.f32.mrf.mxu0
      %v2611 = vadd.f32 %v2562, %v2610
      %v2612 = vpop.f32.mrf.mxu0
      %v2613 = vadd.f32 %v2564, %v2612
      %2614 = vmatmul.bf16.gmra.mxu0 %v1939
      %v2615 = vpop.f32.mrf.mxu0
      %v2616 = vadd.f32 %v2567, %v2615
      %v2617 = vpop.f32.mrf.mxu0
      %v2618 = vadd.f32 %v2569, %v2617
      %2619 = vdwg.mxu0
      %s2620 = scalar_lea.vmem %s2, 384
      %v2621 = vld [vmem:[%s2620] sm:$0xf]
      %v2622 = vld [vmem:[%s2620 + $0x4] sm:$0xf]
      %v2623 = vld [vmem:[%s2620 + $0x8] sm:$0xf]
      %v2624 = vld [vmem:[%s2620 + $0xc] sm:$0xf]
      %v2625 = vld [vmem:[%s2620 + $0x10] sm:$0xf]
      %v2626 = vld [vmem:[%s2620 + $0x14] sm:$0xf]
      %v2627 = vld [vmem:[%s2620 + $0x18] sm:$0xf]
      %v2628 = vld [vmem:[%s2620 + $0x1c] sm:$0xf]
      %v2629 = vld [vmem:[%s2620 + $0x20] sm:$0xf]
      %v2630 = vld [vmem:[%s2620 + $0x24] sm:$0xf]
      %v2631 = vld [vmem:[%s2620 + $0x28] sm:$0xf]
      %v2632 = vld [vmem:[%s2620 + $0x2c] sm:$0xf]
      %v2633 = vld [vmem:[%s2620 + $0x30] sm:$0xf]
      %v2634 = vld [vmem:[%s2620 + $0x34] sm:$0xf]
      %v2635 = vld [vmem:[%s2620 + $0x38] sm:$0xf]
      %v2636 = vld [vmem:[%s2620 + $0x3c] sm:$0xf]
      %v2637 = vld [vmem:[%s2620 + $0x40] sm:$0xf]
      %v2638 = vld [vmem:[%s2620 + $0x44] sm:$0xf]
      %v2639 = vld [vmem:[%s2620 + $0x48] sm:$0xf]
      %v2640 = vld [vmem:[%s2620 + $0x4c] sm:$0xf]
      %v2641 = vld [vmem:[%s2620 + $0x50] sm:$0xf]
      %v2642 = vld [vmem:[%s2620 + $0x54] sm:$0xf]
      %v2643 = vld [vmem:[%s2620 + $0x58] sm:$0xf]
      %v2644 = vld [vmem:[%s2620 + $0x5c] sm:$0xf]
      %v2645 = vld [vmem:[%s2620 + $0x60] sm:$0xf]
      %v2646 = vld [vmem:[%s2620 + $0x64] sm:$0xf]
      %v2647 = vld [vmem:[%s2620 + $0x68] sm:$0xf]
      %v2648 = vld [vmem:[%s2620 + $0x6c] sm:$0xf]
      %v2649 = vld [vmem:[%s2620 + $0x70] sm:$0xf]
      %v2650 = vld [vmem:[%s2620 + $0x74] sm:$0xf]
      %v2651 = vld [vmem:[%s2620 + $0x78] sm:$0xf]
      %v2652 = vld [vmem:[%s2620 + $0x7c] sm:$0xf]
      %v2653 = vld [vmem:[%s2620 + $0x80] sm:$0xf]
      %v2654 = vld [vmem:[%s2620 + $0x84] sm:$0xf]
      %v2655 = vld [vmem:[%s2620 + $0x88] sm:$0xf]
      %v2656 = vld [vmem:[%s2620 + $0x8c] sm:$0xf]
      %v2657 = vld [vmem:[%s2620 + $0x90] sm:$0xf]
      %v2658 = vld [vmem:[%s2620 + $0x94] sm:$0xf]
      %v2659 = vld [vmem:[%s2620 + $0x98] sm:$0xf]
      %v2660 = vld [vmem:[%s2620 + $0x9c] sm:$0xf]
      %v2661 = vld [vmem:[%s2620 + $0xa0] sm:$0xf]
      %v2662 = vld [vmem:[%s2620 + $0xa4] sm:$0xf]
      %v2663 = vld [vmem:[%s2620 + $0xa8] sm:$0xf]
      %v2664 = vld [vmem:[%s2620 + $0xac] sm:$0xf]
      %v2665 = vld [vmem:[%s2620 + $0xb0] sm:$0xf]
      %v2666 = vld [vmem:[%s2620 + $0xb4] sm:$0xf]
      %v2667 = vld [vmem:[%s2620 + $0xb8] sm:$0xf]
      %v2668 = vld [vmem:[%s2620 + $0xbc] sm:$0xf]
      %v2717 = vunpack.c.l.b16 %v2621
      %v2718 = vunpack.c.l.b16 %v2622
      %v2719 = vunpack.c.l.b16 %v2623
      %v2720 = vunpack.c.l.b16 %v2624
      %v2721 = vunpack.c.l.b16 %v2625
      %v2722 = vunpack.c.l.b16 %v2626
      %v2723 = vunpack.c.l.b16 %v2627
      %v2724 = vunpack.c.l.b16 %v2628
      %v2725 = vunpack.c.l.b16 %v2629
      %v2726 = vunpack.c.l.b16 %v2630
      %v2727 = vunpack.c.l.b16 %v2631
      %v2728 = vunpack.c.l.b16 %v2632
      %v2729 = vunpack.c.l.b16 %v2633
      %v2730 = vunpack.c.l.b16 %v2634
      %v2731 = vunpack.c.l.b16 %v2635
      %v2732 = vunpack.c.l.b16 %v2636
      %v2733 = vunpack.c.l.b16 %v2637
      %v2734 = vunpack.c.l.b16 %v2638
      %v2735 = vunpack.c.l.b16 %v2639
      %v2736 = vunpack.c.l.b16 %v2640
      %v2737 = vunpack.c.l.b16 %v2641
      %v2738 = vunpack.c.l.b16 %v2642
      %v2739 = vunpack.c.l.b16 %v2643
      %v2740 = vunpack.c.l.b16 %v2644
      %v2741 = vunpack.c.l.b16 %v2645
      %v2742 = vunpack.c.l.b16 %v2646
      %v2743 = vunpack.c.l.b16 %v2647
      %v2744 = vunpack.c.l.b16 %v2648
      %v2745 = vunpack.c.l.b16 %v2649
      %v2746 = vunpack.c.l.b16 %v2650
      %v2747 = vunpack.c.l.b16 %v2651
      %v2748 = vunpack.c.l.b16 %v2652
      %v2749 = vunpack.c.l.b16 %v2653
      %v2750 = vunpack.c.l.b16 %v2654
      %v2751 = vunpack.c.l.b16 %v2655
      %v2752 = vunpack.c.l.b16 %v2656
      %v2753 = vunpack.c.l.b16 %v2657
      %v2754 = vunpack.c.l.b16 %v2658
      %v2755 = vunpack.c.l.b16 %v2659
      %v2756 = vunpack.c.l.b16 %v2660
      %v2757 = vunpack.c.l.b16 %v2661
      %v2758 = vunpack.c.l.b16 %v2662
      %v2759 = vunpack.c.l.b16 %v2663
      %v2760 = vunpack.c.l.b16 %v2664
      %v2761 = vunpack.c.l.b16 %v2665
      %v2762 = vunpack.c.l.b16 %v2666
      %v2763 = vunpack.c.l.b16 %v2667
      %v2764 = vunpack.c.l.b16 %v2668
      %v2765 = vpack.c.b16 %v2718, %v2717
      %v2766 = vpack.c.b16 %v2720, %v2719
      %v2767 = vpack.c.b16 %v2722, %v2721
      %v2768 = vpack.c.b16 %v2724, %v2723
      %v2769 = vpack.c.b16 %v2726, %v2725
      %v2770 = vpack.c.b16 %v2728, %v2727
      %v2771 = vpack.c.b16 %v2730, %v2729
      %v2772 = vpack.c.b16 %v2732, %v2731
      %v2773 = vpack.c.b16 %v2734, %v2733
      %v2774 = vpack.c.b16 %v2736, %v2735
      %v2775 = vpack.c.b16 %v2738, %v2737
      %v2776 = vpack.c.b16 %v2740, %v2739
      %v2777 = vpack.c.b16 %v2742, %v2741
      %v2778 = vpack.c.b16 %v2744, %v2743
      %v2779 = vpack.c.b16 %v2746, %v2745
      %v2780 = vpack.c.b16 %v2748, %v2747
      %v2781 = vpack.c.b16 %v2750, %v2749
      %v2782 = vpack.c.b16 %v2752, %v2751
      %v2783 = vpack.c.b16 %v2754, %v2753
      %v2784 = vpack.c.b16 %v2756, %v2755
      %v2785 = vpack.c.b16 %v2758, %v2757
      %v2786 = vpack.c.b16 %v2760, %v2759
      %v2787 = vpack.c.b16 %v2762, %v2761
      %v2788 = vpack.c.b16 %v2764, %v2763
      %2813 = vmatpush.bf16.msra.mxu0 %v2772
      %2814 = vmatpush.bf16.msra.mxu0 %v2771
      %2815 = vmatpush.bf16.msra.mxu0 %v2770
      %2816 = vmatpush.bf16.msra.mxu0 %v2769
      %2817 = vmatpush.bf16.msra.mxu0 %v2768
      %2818 = vmatpush.bf16.msra.mxu0 %v2767
      %2819 = vmatpush.bf16.msra.mxu0 %v2766
      %2820 = vmatpush.bf16.msra.mxu0 %v2765
      %2821 = vmatmul.bf16.gmra.mxu0 %v1913
      %v2822 = vpop.f32.mrf.mxu0
      %v2823 = vadd.f32 0.0, %v2822
      %v2824 = vpop.f32.mrf.mxu0
      %v2825 = vadd.f32 0.0, %v2824
      %2826 = vmatmul.bf16.gmra.mxu0 %v1914
      %v2827 = vpop.f32.mrf.mxu0
      %v2828 = vadd.f32 0.0, %v2827
      %v2829 = vpop.f32.mrf.mxu0
      %v2830 = vadd.f32 0.0, %v2829
      %2831 = vmatmul.bf16.gmra.mxu0 %v1915
      %v2832 = vpop.f32.mrf.mxu0
      %v2833 = vadd.f32 0.0, %v2832
      %v2834 = vpop.f32.mrf.mxu0
      %v2835 = vadd.f32 0.0, %v2834
      %2836 = vmatmul.bf16.gmra.mxu0 %v1916
      %v2837 = vpop.f32.mrf.mxu0
      %v2838 = vadd.f32 0.0, %v2837
      %v2839 = vpop.f32.mrf.mxu0
      %v2840 = vadd.f32 0.0, %v2839
      %2841 = vmatmul.bf16.gmra.mxu0 %v1917
      %v2842 = vpop.f32.mrf.mxu0
      %v2843 = vadd.f32 0.0, %v2842
      %v2844 = vpop.f32.mrf.mxu0
      %v2845 = vadd.f32 0.0, %v2844
      %2846 = vmatmul.bf16.gmra.mxu0 %v1918
      %v2847 = vpop.f32.mrf.mxu0
      %v2848 = vadd.f32 0.0, %v2847
      %v2849 = vpop.f32.mrf.mxu0
      %v2850 = vadd.f32 0.0, %v2849
      %2851 = vmatmul.bf16.gmra.mxu0 %v1919
      %v2852 = vpop.f32.mrf.mxu0
      %v2853 = vadd.f32 0.0, %v2852
      %v2854 = vpop.f32.mrf.mxu0
      %v2855 = vadd.f32 0.0, %v2854
      %2856 = vmatmul.bf16.gmra.mxu0 %v1920
      %v2857 = vpop.f32.mrf.mxu0
      %v2858 = vadd.f32 0.0, %v2857
      %v2859 = vpop.f32.mrf.mxu0
      %v2860 = vadd.f32 0.0, %v2859
      %2861 = vdwg.mxu0
      %2862 = vmatpush.bf16.msra.mxu0 %v2780
      %2863 = vmatpush.bf16.msra.mxu0 %v2779
      %2864 = vmatpush.bf16.msra.mxu0 %v2778
      %2865 = vmatpush.bf16.msra.mxu0 %v2777
      %2866 = vmatpush.bf16.msra.mxu0 %v2776
      %2867 = vmatpush.bf16.msra.mxu0 %v2775
      %2868 = vmatpush.bf16.msra.mxu0 %v2774
      %2869 = vmatpush.bf16.msra.mxu0 %v2773
      %2870 = vmatmul.bf16.gmra.mxu0 %v1914
      %v2871 = vpop.f32.mrf.mxu0
      %v2872 = vadd.f32 %v2823, %v2871
      %v2873 = vpop.f32.mrf.mxu0
      %v2874 = vadd.f32 %v2825, %v2873
      %2875 = vmatmul.bf16.gmra.mxu0 %v1915
      %v2876 = vpop.f32.mrf.mxu0
      %v2877 = vadd.f32 %v2828, %v2876
      %v2878 = vpop.f32.mrf.mxu0
      %v2879 = vadd.f32 %v2830, %v2878
      %2880 = vmatmul.bf16.gmra.mxu0 %v1916
      %v2881 = vpop.f32.mrf.mxu0
      %v2882 = vadd.f32 %v2833, %v2881
      %v2883 = vpop.f32.mrf.mxu0
      %v2884 = vadd.f32 %v2835, %v2883
      %2885 = vmatmul.bf16.gmra.mxu0 %v1917
      %v2886 = vpop.f32.mrf.mxu0
      %v2887 = vadd.f32 %v2838, %v2886
      %v2888 = vpop.f32.mrf.mxu0
      %v2889 = vadd.f32 %v2840, %v2888
      %2890 = vmatmul.bf16.gmra.mxu0 %v1918
      %v2891 = vpop.f32.mrf.mxu0
      %v2892 = vadd.f32 %v2843, %v2891
      %v2893 = vpop.f32.mrf.mxu0
      %v2894 = vadd.f32 %v2845, %v2893
      %2895 = vmatmul.bf16.gmra.mxu0 %v1919
      %v2896 = vpop.f32.mrf.mxu0
      %v2897 = vadd.f32 %v2848, %v2896
      %v2898 = vpop.f32.mrf.mxu0
      %v2899 = vadd.f32 %v2850, %v2898
      %2900 = vmatmul.bf16.gmra.mxu0 %v1920
      %v2901 = vpop.f32.mrf.mxu0
      %v2902 = vadd.f32 %v2853, %v2901
      %v2903 = vpop.f32.mrf.mxu0
      %v2904 = vadd.f32 %v2855, %v2903
      %2905 = vmatmul.bf16.gmra.mxu0 %v1933
      %v2906 = vpop.f32.mrf.mxu0
      %v2907 = vadd.f32 %v2858, %v2906
      %v2908 = vpop.f32.mrf.mxu0
      %v2909 = vadd.f32 %v2860, %v2908
      %2910 = vdwg.mxu0
      %2911 = vmatpush.bf16.msra.mxu0 %v2788
      %2912 = vmatpush.bf16.msra.mxu0 %v2787
      %2913 = vmatpush.bf16.msra.mxu0 %v2786
      %2914 = vmatpush.bf16.msra.mxu0 %v2785
      %2915 = vmatpush.bf16.msra.mxu0 %v2784
      %2916 = vmatpush.bf16.msra.mxu0 %v2783
      %2917 = vmatpush.bf16.msra.mxu0 %v2782
      %2918 = vmatpush.bf16.msra.mxu0 %v2781
      %2919 = vmatmul.bf16.gmra.mxu0 %v1915
      %v2920 = vpop.f32.mrf.mxu0
      %v2921 = vadd.f32 %v2872, %v2920
      %v2922 = vpop.f32.mrf.mxu0
      %v2923 = vadd.f32 %v2874, %v2922
      %2924 = vmatmul.bf16.gmra.mxu0 %v1916
      %v2925 = vpop.f32.mrf.mxu0
      %v2926 = vadd.f32 %v2877, %v2925
      %v2927 = vpop.f32.mrf.mxu0
      %v2928 = vadd.f32 %v2879, %v2927
      %2929 = vmatmul.bf16.gmra.mxu0 %v1917
      %v2930 = vpop.f32.mrf.mxu0
      %v2931 = vadd.f32 %v2882, %v2930
      %v2932 = vpop.f32.mrf.mxu0
      %v2933 = vadd.f32 %v2884, %v2932
      %2934 = vmatmul.bf16.gmra.mxu0 %v1918
      %v2935 = vpop.f32.mrf.mxu0
      %v2936 = vadd.f32 %v2887, %v2935
      %v2937 = vpop.f32.mrf.mxu0
      %v2938 = vadd.f32 %v2889, %v2937
      %2939 = vmatmul.bf16.gmra.mxu0 %v1919
      %v2940 = vpop.f32.mrf.mxu0
      %v2941 = vadd.f32 %v2892, %v2940
      %v2942 = vpop.f32.mrf.mxu0
      %v2943 = vadd.f32 %v2894, %v2942
      %2944 = vmatmul.bf16.gmra.mxu0 %v1920
      %v2945 = vpop.f32.mrf.mxu0
      %v2946 = vadd.f32 %v2897, %v2945
      %v2947 = vpop.f32.mrf.mxu0
      %v2948 = vadd.f32 %v2899, %v2947
      %2949 = vmatmul.bf16.gmra.mxu0 %v1933
      %v2950 = vpop.f32.mrf.mxu0
      %v2951 = vadd.f32 %v2902, %v2950
      %v2952 = vpop.f32.mrf.mxu0
      %v2953 = vadd.f32 %v2904, %v2952
      %2954 = vmatmul.bf16.gmra.mxu0 %v1939
      %v2955 = vpop.f32.mrf.mxu0
      %v2956 = vadd.f32 %v2907, %v2955
      %v2957 = vpop.f32.mrf.mxu0
      %v2958 = vadd.f32 %v2909, %v2957
      %2959 = vdwg.mxu0
      %v2968 = vrot.slane %v2243, 7
      %v2969 = vrot.slane %v2248, 7
      %v2970 = vrot.slane %v2253, 7
      %v2971 = vrot.slane %v2258, 7
      %v2972 = vrot.slane %v2263, 7
      %v2973 = vrot.slane %v2268, 7
      %v2974 = vrot.slane %v2273, 7
      %v2975 = vrot.slane %v2278, 7
      %v2992 = vrot.slane %v2241, 7
      %v2993 = vsel %vm1504, %v2992, %v2968
      %v2994 = vrot.slane %v2246, 7
      %v2995 = vsel %vm1504, %v2994, %v2969
      %v2996 = vrot.slane %v2251, 7
      %v2997 = vsel %vm1504, %v2996, %v2970
      %v2998 = vrot.slane %v2256, 7
      %v2999 = vsel %vm1504, %v2998, %v2971
      %v3000 = vrot.slane %v2261, 7
      %v3001 = vsel %vm1504, %v3000, %v2972
      %v3002 = vrot.slane %v2266, 7
      %v3003 = vsel %vm1504, %v3002, %v2973
      %v3004 = vrot.slane %v2271, 7
      %v3005 = vsel %vm1504, %v3004, %v2974
      %v3006 = vrot.slane %v2276, 7
      %v3007 = vsel %vm1504, %v3006, %v2975
      %v3024 = vsel %vm1504, %v2968, %v2992
      %v3025 = vsel %vm1504, %v2969, %v2994
      %v3026 = vsel %vm1504, %v2970, %v2996
      %v3027 = vsel %vm1504, %v2971, %v2998
      %v3028 = vsel %vm1504, %v2972, %v3000
      %v3029 = vsel %vm1504, %v2973, %v3002
      %v3030 = vsel %vm1504, %v2974, %v3004
      %v3031 = vsel %vm1504, %v2975, %v3006
      %v3032 = vsel %vm1557, 0.0, %v3024
      %v3033 = vsel %vm1558, 0.0, %v2993
      %v3034 = vsel %vm1557, 0.0, %v3025
      %v3035 = vsel %vm1558, 0.0, %v2995
      %v3036 = vsel %vm1557, 0.0, %v3026
      %v3037 = vsel %vm1558, 0.0, %v2997
      %v3038 = vsel %vm1557, 0.0, %v3027
      %v3039 = vsel %vm1558, 0.0, %v2999
      %v3040 = vsel %vm1557, 0.0, %v3028
      %v3041 = vsel %vm1558, 0.0, %v3001
      %v3042 = vsel %vm1557, 0.0, %v3029
      %v3043 = vsel %vm1558, 0.0, %v3003
      %v3044 = vsel %vm1557, 0.0, %v3030
      %v3045 = vsel %vm1558, 0.0, %v3005
      %v3046 = vsel %vm1557, 0.0, %v3031
      %v3047 = vsel %vm1558, 0.0, %v3007
      %v3064 = vrot.slane %v2921, 1
      %v3065 = vrot.slane %v2923, 1
      %v3066 = vsel %vm1601, %v3064, %v3065
      %v3067 = vrot.slane %v2926, 1
      %v3068 = vrot.slane %v2928, 1
      %v3069 = vsel %vm1601, %v3067, %v3068
      %v3070 = vrot.slane %v2931, 1
      %v3071 = vrot.slane %v2933, 1
      %v3072 = vsel %vm1601, %v3070, %v3071
      %v3073 = vrot.slane %v2936, 1
      %v3074 = vrot.slane %v2938, 1
      %v3075 = vsel %vm1601, %v3073, %v3074
      %v3076 = vrot.slane %v2941, 1
      %v3077 = vrot.slane %v2943, 1
      %v3078 = vsel %vm1601, %v3076, %v3077
      %v3079 = vrot.slane %v2946, 1
      %v3080 = vrot.slane %v2948, 1
      %v3081 = vsel %vm1601, %v3079, %v3080
      %v3082 = vrot.slane %v2951, 1
      %v3083 = vrot.slane %v2953, 1
      %v3084 = vsel %vm1601, %v3082, %v3083
      %v3085 = vrot.slane %v2956, 1
      %v3086 = vrot.slane %v2958, 1
      %v3087 = vsel %vm1601, %v3085, %v3086
      %v3112 = vsel %vm1601, %v3065, %v3064
      %v3113 = vsel %vm1601, %v3068, %v3067
      %v3114 = vsel %vm1601, %v3071, %v3070
      %v3115 = vsel %vm1601, %v3074, %v3073
      %v3116 = vsel %vm1601, %v3077, %v3076
      %v3117 = vsel %vm1601, %v3080, %v3079
      %v3118 = vsel %vm1601, %v3083, %v3082
      %v3119 = vsel %vm1601, %v3086, %v3085
      %v3120 = vsel %vm1674, 0.0, %v3066
      %v3121 = vsel %vm1675, 0.0, %v3112
      %v3122 = vsel %vm1674, 0.0, %v3069
      %v3123 = vsel %vm1675, 0.0, %v3113
      %v3124 = vsel %vm1674, 0.0, %v3072
      %v3125 = vsel %vm1675, 0.0, %v3114
      %v3126 = vsel %vm1674, 0.0, %v3075
      %v3127 = vsel %vm1675, 0.0, %v3115
      %v3128 = vsel %vm1674, 0.0, %v3078
      %v3129 = vsel %vm1675, 0.0, %v3116
      %v3130 = vsel %vm1674, 0.0, %v3081
      %v3131 = vsel %vm1675, 0.0, %v3117
      %v3132 = vsel %vm1674, 0.0, %v3084
      %v3133 = vsel %vm1675, 0.0, %v3118
      %v3134 = vsel %vm1674, 0.0, %v3087
      %v3135 = vsel %vm1675, 0.0, %v3119
      %v3136 = vadd.f32 %v3032, %v2581
      %v3137 = vadd.f32 %v3033, %v2583
      %v3138 = vadd.f32 %v3034, %v2586
      %v3139 = vadd.f32 %v3035, %v2588
      %v3140 = vadd.f32 %v3036, %v2591
      %v3141 = vadd.f32 %v3037, %v2593
      %v3142 = vadd.f32 %v3038, %v2596
      %v3143 = vadd.f32 %v3039, %v2598
      %v3144 = vadd.f32 %v3040, %v2601
      %v3145 = vadd.f32 %v3041, %v2603
      %v3146 = vadd.f32 %v3042, %v2606
      %v3147 = vadd.f32 %v3043, %v2608
      %v3148 = vadd.f32 %v3044, %v2611
      %v3149 = vadd.f32 %v3045, %v2613
      %v3150 = vadd.f32 %v3046, %v2616
      %v3151 = vadd.f32 %v3047, %v2618
      %v3152 = vadd.f32 %v3136, %v3120
      %v3153 = vadd.f32 %v3137, %v3121
      %v3154 = vadd.f32 %v3138, %v3122
      %v3155 = vadd.f32 %v3139, %v3123
      %v3156 = vadd.f32 %v3140, %v3124
      %v3157 = vadd.f32 %v3141, %v3125
      %v3158 = vadd.f32 %v3142, %v3126
      %v3159 = vadd.f32 %v3143, %v3127
      %v3160 = vadd.f32 %v3144, %v3128
      %v3161 = vadd.f32 %v3145, %v3129
      %v3162 = vadd.f32 %v3146, %v3130
      %v3163 = vadd.f32 %v3147, %v3131
      %v3164 = vadd.f32 %v3148, %v3132
      %v3165 = vadd.f32 %v3149, %v3133
      %v3166 = vadd.f32 %v3150, %v3134
      %v3167 = vadd.f32 %v3151, %v3135
      %v3168 = vld [vmem:[%s4] sm:$0x1]
      %v3170 = vperm.slane %v3168, 0
      %v3172 = vadd.f32 %v3152, %v3170
      %v3173 = vadd.f32 %v3153, %v3170
      %v3174 = vadd.f32 %v3154, %v3170
      %v3175 = vadd.f32 %v3155, %v3170
      %v3176 = vadd.f32 %v3156, %v3170
      %v3177 = vadd.f32 %v3157, %v3170
      %v3178 = vadd.f32 %v3158, %v3170
      %v3179 = vadd.f32 %v3159, %v3170
      %v3180 = vadd.f32 %v3160, %v3170
      %v3181 = vadd.f32 %v3161, %v3170
      %v3182 = vadd.f32 %v3162, %v3170
      %v3183 = vadd.f32 %v3163, %v3170
      %v3184 = vadd.f32 %v3164, %v3170
      %v3185 = vadd.f32 %v3165, %v3170
      %v3186 = vadd.f32 %v3166, %v3170
      %v3187 = vadd.f32 %v3167, %v3170
      %s3188 = sadd.s32 %s250, 2
      %s3189 = smul.u32 %s3188, 2
      %s3190 = smul.addr %s3189, 4
      %s3191 = scalar_lea.vmem %s238, %s3190
      %v3192 = vld [vmem:[%s3191] sm:$0xf]
      %v3193 = vld [vmem:[%s3191 + $0x4] sm:$0xf]
      %v3194 = vld [vmem:[%s3191 + $0x8] sm:$0xf]
      %v3195 = vld [vmem:[%s3191 + $0xc] sm:$0xf]
      %v3196 = vld [vmem:[%s3191 + $0x10] sm:$0xf]
      %v3197 = vld [vmem:[%s3191 + $0x14] sm:$0xf]
      %v3198 = vld [vmem:[%s3191 + $0x18] sm:$0xf]
      %v3199 = vld [vmem:[%s3191 + $0x1c] sm:$0xf]
      %v3200 = vld [vmem:[%s3191 + $0x20] sm:$0xf]
      %v3201 = vld [vmem:[%s3191 + $0x24] sm:$0xf]
      %v3202 = vld [vmem:[%s3191 + $0x28] sm:$0xf]
      %v3203 = vld [vmem:[%s3191 + $0x2c] sm:$0xf]
      %v3204 = vld [vmem:[%s3191 + $0x30] sm:$0xf]
      %v3205 = vld [vmem:[%s3191 + $0x34] sm:$0xf]
      %v3206 = vld [vmem:[%s3191 + $0x38] sm:$0xf]
      %v3207 = vld [vmem:[%s3191 + $0x3c] sm:$0xf]
      %v3208 = vunpack.c.l.bf16 %v3192
      %v3209 = vunpack.c.l.bf16 %v3193
      %v3210 = vunpack.c.l.bf16 %v3194
      %v3211 = vunpack.c.l.bf16 %v3195
      %v3212 = vunpack.c.l.bf16 %v3196
      %v3213 = vunpack.c.l.bf16 %v3197
      %v3214 = vunpack.c.l.bf16 %v3198
      %v3215 = vunpack.c.l.bf16 %v3199
      %v3216 = vunpack.c.l.bf16 %v3200
      %v3217 = vunpack.c.l.bf16 %v3201
      %v3218 = vunpack.c.l.bf16 %v3202
      %v3219 = vunpack.c.l.bf16 %v3203
      %v3220 = vunpack.c.l.bf16 %v3204
      %v3221 = vunpack.c.l.bf16 %v3205
      %v3222 = vunpack.c.l.bf16 %v3206
      %v3223 = vunpack.c.l.bf16 %v3207
      %v3224 = vadd.f32 %v3172, %v3208
      %v3225 = vadd.f32 %v3173, %v3209
      %v3226 = vadd.f32 %v3174, %v3210
      %v3227 = vadd.f32 %v3175, %v3211
      %v3228 = vadd.f32 %v3176, %v3212
      %v3229 = vadd.f32 %v3177, %v3213
      %v3230 = vadd.f32 %v3178, %v3214
      %v3231 = vadd.f32 %v3179, %v3215
      %v3232 = vadd.f32 %v3180, %v3216
      %v3233 = vadd.f32 %v3181, %v3217
      %v3234 = vadd.f32 %v3182, %v3218
      %v3235 = vadd.f32 %v3183, %v3219
      %v3236 = vadd.f32 %v3184, %v3220
      %v3237 = vadd.f32 %v3185, %v3221
      %v3238 = vadd.f32 %v3186, %v3222
      %v3239 = vadd.f32 %v3187, %v3223
      %v3240 = vmax.f32 %v3224, 0.0
      %v3241 = vmax.f32 %v3225, 0.0
      %v3242 = vmax.f32 %v3226, 0.0
      %v3243 = vmax.f32 %v3227, 0.0
      %v3244 = vmax.f32 %v3228, 0.0
      %v3245 = vmax.f32 %v3229, 0.0
      %v3246 = vmax.f32 %v3230, 0.0
      %v3247 = vmax.f32 %v3231, 0.0
      %v3248 = vmax.f32 %v3232, 0.0
      %v3249 = vmax.f32 %v3233, 0.0
      %v3250 = vmax.f32 %v3234, 0.0
      %v3251 = vmax.f32 %v3235, 0.0
      %v3252 = vmax.f32 %v3236, 0.0
      %v3253 = vmax.f32 %v3237, 0.0
      %v3254 = vmax.f32 %v3238, 0.0
      %v3255 = vmax.f32 %v3239, 0.0
      %v3256 = vpack.c.bf16 %v3240, %v3240
      %v3257 = vpack.c.bf16 %v3241, %v3241
      %v3258 = vpack.c.bf16 %v3242, %v3242
      %v3259 = vpack.c.bf16 %v3243, %v3243
      %v3260 = vpack.c.bf16 %v3244, %v3244
      %v3261 = vpack.c.bf16 %v3245, %v3245
      %v3262 = vpack.c.bf16 %v3246, %v3246
      %v3263 = vpack.c.bf16 %v3247, %v3247
      %v3264 = vpack.c.bf16 %v3248, %v3248
      %v3265 = vpack.c.bf16 %v3249, %v3249
      %v3266 = vpack.c.bf16 %v3250, %v3250
      %v3267 = vpack.c.bf16 %v3251, %v3251
      %v3268 = vpack.c.bf16 %v3252, %v3252
      %v3269 = vpack.c.bf16 %v3253, %v3253
      %v3270 = vpack.c.bf16 %v3254, %v3254
      %v3271 = vpack.c.bf16 %v3255, %v3255
      %3272 = vst [vmem:[%s248] sm:$0xf] %v3256
      %3273 = vst [vmem:[%s248 + $0x4] sm:$0xf] %v3257
      %3274 = vst [vmem:[%s248 + $0x8] sm:$0xf] %v3258
      %3275 = vst [vmem:[%s248 + $0xc] sm:$0xf] %v3259
      %3276 = vst [vmem:[%s248 + $0x10] sm:$0xf] %v3260
      %3277 = vst [vmem:[%s248 + $0x14] sm:$0xf] %v3261
      %3278 = vst [vmem:[%s248 + $0x18] sm:$0xf] %v3262
      %3279 = vst [vmem:[%s248 + $0x1c] sm:$0xf] %v3263
      %3280 = vst [vmem:[%s248 + $0x20] sm:$0xf] %v3264
      %3281 = vst [vmem:[%s248 + $0x24] sm:$0xf] %v3265
      %3282 = vst [vmem:[%s248 + $0x28] sm:$0xf] %v3266
      %3283 = vst [vmem:[%s248 + $0x2c] sm:$0xf] %v3267
      %3284 = vst [vmem:[%s248 + $0x30] sm:$0xf] %v3268
      %3285 = vst [vmem:[%s248 + $0x34] sm:$0xf] %v3269
      %3286 = vst [vmem:[%s248 + $0x38] sm:$0xf] %v3270
      %3287 = vst [vmem:[%s248 + $0x3c] sm:$0xf] %v3271
      %s3288 = smul.u32 8, %s21
      %p3289 = scmp.lt.s32.totalorder %s20, 1
      %s3290 = scalar_select %p3289, %s20, 1
      %p3291 = scmp.lt.s32.totalorder %s3288, 15
      %s3292 = scalar_select %p3291, %s3288, 15
      %s3293 = smul.addr %s3292, 2
      %s3294 = smul.addr %s3290, 32
      %s3295 = sadd.s32 %s3293, %s3294
      %s3296 = smul.addr %s3295, 4
      %s3297 = scalar_lea.vmem %s5, %s3296
      // Predicated region
      $region41: #{basic_block_pallas.1} parent=39 // pred_check
        %p3298 = pneg %p158
      $region42: #{basic_block_pallas.1} parent=39 // pred_check_branch
        %3300 = sbr.rel (%p3298) target = $region44
      $region43: #{basic_block_pallas.1} parent=39 // pred_region
        %s3301 = smul.u32 8, %s21
      $region44: #{basic_block_pallas.1} parent=39 // pred_fallthru
        _
    $region40: #{basic_block_pallas.1} parent=5 // pred_fallthru
      _
    %p3302 = scmp.le.s32.totalorder 2, %s11
    // Predicated region
    $region45: #{basic_block_pallas.1} parent=5 // pred_check
      %p3303 = pneg %p3302
    $region46: #{basic_block_pallas.1} parent=5 // pred_check_branch
      %3305 = sbr.rel (%p3303) target = $region48
    $region47: #{basic_block_pallas.1} parent=5 // pred_region
      %s3306 = ssub.s32 %s11, 2
      // Predicated region
      $region49: #{basic_block_pallas.1} parent=47 // pred_check
        %p3307 = pneg %p164
      $region50: #{basic_block_pallas.1} parent=47 // pred_check_branch
        %3309 = sbr.rel (%p3307) target = $region52
      $region51: #{basic_block_pallas.1} parent=47 // pred_region
        %s3310 = smul.u32 8, %s23
        %p3311 = scmp.lt.s32.totalorder %s22, 1
        %s3312 = scalar_select %p3311, %s22, 1
        %p3313 = scmp.lt.s32.totalorder %s3310, 15
        %s3314 = scalar_select %p3313, %s3310, 15
        %s3315 = smul.addr %s3314, 2
        %s3316 = smul.addr %s3312, 32
        %s3317 = sadd.s32 %s3315, %s3316
        %s3318 = smul.addr %s3317, 4
        %s3319 = scalar_lea.vmem %s5, %s3318
      $region52: #{basic_block_pallas.1} parent=47 // pred_fallthru
        _
    $region48: #{basic_block_pallas.1} parent=5 // pred_fallthru
      _
  $region6: #{basic_block_pallas.1} parent=0 // loop_footer
    %s15 = sadd.s32 1, %s11
  $region7: #{basic_block_pallas.1} parent=0 // loop_footer_branch
    %10 = sbr.rel target = $region3
  $region8: #{basic_block_pallas.1} parent=0 // loop_exit
    _

</llo_original>
